<compile_context>
chip_gen: v7x
topology: tpu7x:2x2x1
jax: 0.10.0
libtpu: 0.0.40
codegen_flags: <defaults>
</compile_context>

<pallas_src>
import numpy as np
import jax
import jax.numpy as jnp
from jax.experimental import pallas as pl
from jax.experimental.pallas import tpu as pltpu

KSIZE = 4  # every Conv1d in the model uses kernel_size=4


# --------------------- host-side gather-matrix construction ---------------- #

def _gather_matrix(l_in, l_out, lp_out, stride, pad):
    """One-hot matrix S (K*lp_out, l_in) such that  S @ x  stacks the K conv
    taps on sublanes:  (S @ x)[k*lp_out + l] == x[stride*l + k - pad]  (or 0 if
    that index falls in the zero padding).  lp_out is l_out rounded up to a
    multiple of 8 so every tap block starts on a sublane-tile boundary."""
    S = np.zeros((KSIZE * lp_out, l_in), np.float32)
    for k in range(KSIZE):
        for l in range(l_out):
            src = stride * l + k - pad
            if 0 <= src < l_in:
                S[k * lp_out + l, src] = 1.0
    return jnp.asarray(S)


# ------------------------------ fused kernel ------------------------------- #

def _make_kernel(l_outs, lp_outs, normalizes, activates):
    """Pallas kernel running ONE sample through all 5 conv blocks (unrolled)."""
    n_blocks = len(l_outs)

    def leaky_relu(y):
        return jnp.maximum(y, 0.2 * y)                      # LeakyReLU(0.2)

    def instance_norm(y):
        # InstanceNorm1d(affine=False): per-channel stats over length,
        # biased variance, eps = 1e-5.  Kept in f32.
        m = jnp.mean(y, axis=0, keepdims=True)
        d = y - m
        v = jnp.mean(d * d, axis=0, keepdims=True)
        return d * jax.lax.rsqrt(v + 1e-5)

    def kernel(x_ref,
               s1_ref, w1_ref, b1_ref,
               s2_ref, w2_ref,
               s3_ref, w3_ref,
               s4_ref, w4_ref,
               s5_ref, w5_ref, b5_ref,
               o_ref):
        s_refs = (s1_ref, s2_ref, s3_ref, s4_ref, s5_ref)
        w_refs = (w1_ref, w2_ref, w3_ref, w4_ref, w5_ref)
        # Biases of the InstanceNorm'd blocks are cancelled exactly by the norm,
        # so they are not even passed to the kernel.
        b_refs = (b1_ref, None, None, None, b5_ref)

        y = x_ref[0]                                        # (L, C_in) for this sample
        for i in range(n_blocks):                           # static, fully unrolled
            lo, lp = l_outs[i], lp_outs[i]
            # One gather matmul: stacks all K taps (padding handled by zero rows).
            xg = jnp.dot(s_refs[i][...], y,
                         preferred_element_type=jnp.float32)   # (K*lp, C_in)
            acc = jnp.dot(xg[0:lo], w_refs[i][0],
                          preferred_element_type=jnp.float32)  # (lo, C_out)
            for k in range(1, KSIZE):                       # static, unrolled
                acc = acc + jnp.dot(xg[k * lp:k * lp + lo], w_refs[i][k],
                                    preferred_element_type=jnp.float32)
            y = acc
            if b_refs[i] is not None:
                y = y + b_refs[i][...]                      # (1, C_out) broadcast
            if normalizes[i]:
                y = instance_norm(y)
            if activates[i]:
                y = leaky_relu(y)
        o_ref[0] = y                                        # (L_final, 1)

    return kernel


# ------------------------------ model wrapper ------------------------------ #

def discriminator_forward(img_ncl, params):
    """img_ncl: (N, C, L) float32 (PyTorch layout).  Returns (N, 1, L_final)."""
    N, C, L = img_ncl.shape
    x_nlc = jnp.transpose(img_ncl, (0, 2, 1)).astype(jnp.float32)   # channels -> lanes

    strides = (2, 2, 2, 2, 1)
    pads = (1, 1, 1, 1, 2)      # last block = ConstantPad1d((1,1),0) + Conv1d(pad=1)
    normalizes = (False, True, True, True, False)
    activates = (True, True, True, True, False)

    lengths = [L]
    for s, p in zip(strides, pads):
        lengths.append((lengths[-1] + 2 * p - KSIZE) // s + 1)
    l_outs = tuple(lengths[1:])
    lp_outs = tuple(max(8, ((lo + 7) // 8) * 8) for lo in l_outs)
    l_final = lengths[-1]

    gathers = [_gather_matrix(lengths[i], l_outs[i], lp_outs[i], strides[i], pads[i])
               for i in range(5)]

    (w1, b1), (w2, _), (w3, _), (w4, _), (w5, b5) = params
    # PyTorch weight (C_out, C_in, K) -> (K, C_in, C_out) so w[k] is tap k's matrix.
    wt = [jnp.transpose(w, (2, 1, 0)).astype(jnp.float32)
          for w in (w1, w2, w3, w4, w5)]
    b1_row = b1.reshape(1, -1).astype(jnp.float32)          # (1, 64)
    b5_row = b5.reshape(1, 1).astype(jnp.float32)           # (1, 1)

    kernel = _make_kernel(l_outs, lp_outs, normalizes, activates)

    c2 = lambda n: (0, 0)       # constant blocks: DMA'd to VMEM once
    c3 = lambda n: (0, 0, 0)
    out = pl.pallas_call(
        kernel,
        out_shape=jax.ShapeDtypeStruct((N, l_final, 1), jnp.float32),
        grid=(N,),
        in_specs=[
            pl.BlockSpec((1, L, C), lambda n: (n, 0, 0)),   # one sample per grid step
            pl.BlockSpec(gathers[0].shape, c2),
            pl.BlockSpec(wt[0].shape, c3),
            pl.BlockSpec(b1_row.shape, c2),
            pl.BlockSpec(gathers[1].shape, c2),
            pl.BlockSpec(wt[1].shape, c3),
            pl.BlockSpec(gathers[2].shape, c2),
            pl.BlockSpec(wt[2].shape, c3),
            pl.BlockSpec(gathers[3].shape, c2),
            pl.BlockSpec(wt[3].shape, c3),
            pl.BlockSpec(gathers[4].shape, c2),
            pl.BlockSpec(wt[4].shape, c3),
            pl.BlockSpec(b5_row.shape, c2),
        ],
        out_specs=pl.BlockSpec((1, l_final, 1), lambda n: (n, 0, 0)),
        compiler_params=pltpu.CompilerParams(
            dimension_semantics=("parallel",)),             # samples -> 2 TCs on v7x
    )(x_nlc,
      gathers[0], wt[0], b1_row,
      gathers[1], wt[1],
      gathers[2], wt[2],
      gathers[3], wt[3],
      gathers[4], wt[4], b5_row)

    return jnp.transpose(out, (0, 2, 1))                    # (N, 1, L_final)


# ------------------------------ param init --------------------------------- #

def init_params(key, channels):
    """Deterministic init mimicking PyTorch Conv1d default (uniform +/- 1/sqrt(fan_in))."""
    cfgs = [(channels, 64), (64, 128), (128, 256), (256, 512), (512, 1)]
    params = []
    for cin, cout in cfgs:
        key, kw, kb = jax.random.split(key, 3)
        bound = 1.0 / jnp.sqrt(jnp.float32(cin * KSIZE))
        w = jax.random.uniform(kw, (cout, cin, KSIZE), jnp.float32, -bound, bound)
        b = jax.random.uniform(kb, (cout,), jnp.float32, -bound, bound)
        params.append((w, b))
    return params


# ---------------------------- pure-JAX reference --------------------------- #

def reference_forward(img, params):
    def conv1d(x, w, b, stride, pad):
        y = jax.lax.conv_general_dilated(
            x, w, (stride,), [(pad, pad)],
            dimension_numbers=("NCH", "OIH", "NCH"),
            precision=jax.lax.Precision.HIGHEST)
        return y + b[None, :, None]

    def inorm(x):
        m = jnp.mean(x, axis=2, keepdims=True)
        v = jnp.mean(jnp.square(x - m), axis=2, keepdims=True)
        return (x - m) * jax.lax.rsqrt(v + 1e-5)

    def lrelu(x):
        return jnp.where(x >= 0.0, x, 0.2 * x)

    (w1, b1), (w2, b2), (w3, b3), (w4, b4), (w5, b5) = params
    x = lrelu(conv1d(img, w1, b1, 2, 1))
    x = lrelu(inorm(conv1d(x, w2, b2, 2, 1)))     # biases applied here on purpose:
    x = lrelu(inorm(conv1d(x, w3, b3, 2, 1)))     # proves the kernel's bias-skip
    x = lrelu(inorm(conv1d(x, w4, b4, 2, 1)))     # under InstanceNorm is exact.
    return conv1d(x, w5, b5, 1, 2)


# --------------------------------- main ------------------------------------ #

if __name__ == "__main__":
    key = jax.random.PRNGKey(0)
    k_img, k_par = jax.random.split(key)

    N, C, L = 2, 4, 64                      # input_shape = (batch, channels, length)
    img = jax.random.normal(k_img, (N, C, L), jnp.float32)
    params = init_params(k_par, C)

    fwd = jax.jit(discriminator_forward)
    out = jax.block_until_ready(fwd(img, params))

    ref = jax.block_until_ready(reference_forward(img, params))
    assert out.shape == ref.shape == (N, 1, 5), (out.shape, ref.shape)
    # The kernel uses default MXU precision (1-pass bf16 multiplies, f32
    # accumulation); the reference is full-f32, so the tolerance allows
    # bf16-level rounding accumulated across 5 layers.
    assert jnp.allclose(out, ref, atol=2e-2, rtol=2e-2), \
        float(jnp.max(jnp.abs(out - ref)))
    print("KERNEL_OK")
</pallas_src>

<mosaic_0001>
module attributes {stable_mosaic.version = 11 : i64} {
  func.func @kernel(%arg0: i32, %arg1: memref<1x64x4xf32, #tpu.memory_space<vmem>>, %arg2: memref<128x64xf32, #tpu.memory_space<vmem>>, %arg3: memref<4x4x64xf32, #tpu.memory_space<vmem>>, %arg4: memref<1x64xf32, #tpu.memory_space<vmem>>, %arg5: memref<64x32xf32, #tpu.memory_space<vmem>>, %arg6: memref<4x64x128xf32, #tpu.memory_space<vmem>>, %arg7: memref<32x16xf32, #tpu.memory_space<vmem>>, %arg8: memref<4x128x256xf32, #tpu.memory_space<vmem>>, %arg9: memref<32x8xf32, #tpu.memory_space<vmem>>, %arg10: memref<4x256x512xf32, #tpu.memory_space<vmem>>, %arg11: memref<32x4xf32, #tpu.memory_space<vmem>>, %arg12: memref<4x512x1xf32, #tpu.memory_space<vmem>>, %arg13: memref<1x1xf32, #tpu.memory_space<vmem>>, %arg14: memref<1x5x1xf32, #tpu.memory_space<vmem>>) attributes {dimension_semantics = [#tpu.dimension_semantics<parallel>], iteration_bounds = array<i64: 2>, scalar_prefetch = 0 : i64, scratch_operands = 0 : i64, tpu.core_type = #tpu.core_type<tc>, window_params = [{transform_indices = @transform_0, window_bounds = array<i64: 1, 64, 4>}, {pipeline_mode = #tpu.pipeline_mode<synchronous>, transform_indices = @transform_1, window_bounds = array<i64: 128, 64>}, {pipeline_mode = #tpu.pipeline_mode<synchronous>, transform_indices = @transform_2, window_bounds = array<i64: 4, 4, 64>}, {pipeline_mode = #tpu.pipeline_mode<synchronous>, transform_indices = @transform_3, window_bounds = array<i64: 1, 64>}, {pipeline_mode = #tpu.pipeline_mode<synchronous>, transform_indices = @transform_4, window_bounds = array<i64: 64, 32>}, {pipeline_mode = #tpu.pipeline_mode<synchronous>, transform_indices = @transform_5, window_bounds = array<i64: 4, 64, 128>}, {pipeline_mode = #tpu.pipeline_mode<synchronous>, transform_indices = @transform_6, window_bounds = array<i64: 32, 16>}, {pipeline_mode = #tpu.pipeline_mode<synchronous>, transform_indices = @transform_7, window_bounds = array<i64: 4, 128, 256>}, {pipeline_mode = #tpu.pipeline_mode<synchronous>, transform_indices = @transform_8, window_bounds = array<i64: 32, 8>}, {pipeline_mode = #tpu.pipeline_mode<synchronous>, transform_indices = @transform_9, window_bounds = array<i64: 4, 256, 512>}, {pipeline_mode = #tpu.pipeline_mode<synchronous>, transform_indices = @transform_10, window_bounds = array<i64: 32, 4>}, {pipeline_mode = #tpu.pipeline_mode<synchronous>, transform_indices = @transform_11, window_bounds = array<i64: 4, 512, 1>}, {pipeline_mode = #tpu.pipeline_mode<synchronous>, transform_indices = @transform_12, window_bounds = array<i64: 1, 1>}, {transform_indices = @transform_13, window_bounds = array<i64: 1, 5, 1>}]} {
    %c0 = arith.constant 0 : index
    %c0_0 = arith.constant 0 : index
    %c0_1 = arith.constant 0 : index
    %0 = vector.load %arg1[%c0, %c0_0, %c0_1] : memref<1x64x4xf32, #tpu.memory_space<vmem>>, vector<1x64x4xf32>
    %1 = vector.shape_cast %0 : vector<1x64x4xf32> to vector<64x4xf32>
    %c0_2 = arith.constant 0 : index
    %c0_3 = arith.constant 0 : index
    %2 = vector.load %arg2[%c0_2, %c0_3] : memref<128x64xf32, #tpu.memory_space<vmem>>, vector<128x64xf32>
    %cst = arith.constant dense<0.000000e+00> : vector<128x4xf32>
    %3 = tpu.matmul %2, %1, %cst {dimension_numbers = #tpu.dot_dimension_numbers<[1], [0], [0], [1], [0, 0, 1, 1], [], []>} : vector<128x64xf32>, vector<64x4xf32>, vector<128x4xf32> -> vector<128x4xf32>
    %4 = vector.extract_strided_slice %3 {offsets = [0, 0], sizes = [32, 4], strides = [1, 1]} : vector<128x4xf32> to vector<32x4xf32>
    %c0_4 = arith.constant 0 : index
    %c0_5 = arith.constant 0 : index
    %c0_6 = arith.constant 0 : index
    %5 = vector.load %arg3[%c0_4, %c0_5, %c0_6] : memref<4x4x64xf32, #tpu.memory_space<vmem>>, vector<1x4x64xf32>
    %6 = vector.shape_cast %5 : vector<1x4x64xf32> to vector<4x64xf32>
    %cst_7 = arith.constant dense<0.000000e+00> : vector<32x64xf32>
    %7 = tpu.matmul %4, %6, %cst_7 {dimension_numbers = #tpu.dot_dimension_numbers<[1], [0], [0], [1], [0, 0, 1, 1], [], []>} : vector<32x4xf32>, vector<4x64xf32>, vector<32x64xf32> -> vector<32x64xf32>
    %8 = vector.extract_strided_slice %3 {offsets = [32, 0], sizes = [32, 4], strides = [1, 1]} : vector<128x4xf32> to vector<32x4xf32>
    %c1 = arith.constant 1 : index
    %c0_8 = arith.constant 0 : index
    %c0_9 = arith.constant 0 : index
    %9 = vector.load %arg3[%c1, %c0_8, %c0_9] : memref<4x4x64xf32, #tpu.memory_space<vmem>>, vector<1x4x64xf32>
    %10 = vector.shape_cast %9 : vector<1x4x64xf32> to vector<4x64xf32>
    %cst_10 = arith.constant dense<0.000000e+00> : vector<32x64xf32>
    %11 = tpu.matmul %8, %10, %cst_10 {dimension_numbers = #tpu.dot_dimension_numbers<[1], [0], [0], [1], [0, 0, 1, 1], [], []>} : vector<32x4xf32>, vector<4x64xf32>, vector<32x64xf32> -> vector<32x64xf32>
    %12 = arith.addf %7, %11 : vector<32x64xf32>
    %13 = vector.extract_strided_slice %3 {offsets = [64, 0], sizes = [32, 4], strides = [1, 1]} : vector<128x4xf32> to vector<32x4xf32>
    %c2 = arith.constant 2 : index
    %c0_11 = arith.constant 0 : index
    %c0_12 = arith.constant 0 : index
    %14 = vector.load %arg3[%c2, %c0_11, %c0_12] : memref<4x4x64xf32, #tpu.memory_space<vmem>>, vector<1x4x64xf32>
    %15 = vector.shape_cast %14 : vector<1x4x64xf32> to vector<4x64xf32>
    %cst_13 = arith.constant dense<0.000000e+00> : vector<32x64xf32>
    %16 = tpu.matmul %13, %15, %cst_13 {dimension_numbers = #tpu.dot_dimension_numbers<[1], [0], [0], [1], [0, 0, 1, 1], [], []>} : vector<32x4xf32>, vector<4x64xf32>, vector<32x64xf32> -> vector<32x64xf32>
    %17 = arith.addf %12, %16 : vector<32x64xf32>
    %18 = vector.extract_strided_slice %3 {offsets = [96, 0], sizes = [32, 4], strides = [1, 1]} : vector<128x4xf32> to vector<32x4xf32>
    %c3 = arith.constant 3 : index
    %c0_14 = arith.constant 0 : index
    %c0_15 = arith.constant 0 : index
    %19 = vector.load %arg3[%c3, %c0_14, %c0_15] : memref<4x4x64xf32, #tpu.memory_space<vmem>>, vector<1x4x64xf32>
    %20 = vector.shape_cast %19 : vector<1x4x64xf32> to vector<4x64xf32>
    %cst_16 = arith.constant dense<0.000000e+00> : vector<32x64xf32>
    %21 = tpu.matmul %18, %20, %cst_16 {dimension_numbers = #tpu.dot_dimension_numbers<[1], [0], [0], [1], [0, 0, 1, 1], [], []>} : vector<32x4xf32>, vector<4x64xf32>, vector<32x64xf32> -> vector<32x64xf32>
    %22 = arith.addf %17, %21 : vector<32x64xf32>
    %c0_17 = arith.constant 0 : index
    %c0_18 = arith.constant 0 : index
    %23 = vector.load %arg4[%c0_17, %c0_18] : memref<1x64xf32, #tpu.memory_space<vmem>>, vector<1x64xf32>
    %24 = vector.broadcast %23 : vector<1x64xf32> to vector<32x64xf32>
    %25 = arith.addf %22, %24 : vector<32x64xf32>
    %cst_19 = arith.constant 2.000000e-01 : f32
    %26 = vector.broadcast %cst_19 : f32 to vector<32x64xf32>
    %27 = arith.mulf %26, %25 : vector<32x64xf32>
    %28 = arith.maximumf %25, %27 : vector<32x64xf32>
    %c0_20 = arith.constant 0 : index
    %c0_21 = arith.constant 0 : index
    %29 = vector.load %arg5[%c0_20, %c0_21] : memref<64x32xf32, #tpu.memory_space<vmem>>, vector<64x32xf32>
    %cst_22 = arith.constant dense<0.000000e+00> : vector<64x64xf32>
    %30 = tpu.matmul %29, %28, %cst_22 {dimension_numbers = #tpu.dot_dimension_numbers<[1], [0], [0], [1], [0, 0, 1, 1], [], []>} : vector<64x32xf32>, vector<32x64xf32>, vector<64x64xf32> -> vector<64x64xf32>
    %31 = vector.extract_strided_slice %30 {offsets = [0, 0], sizes = [16, 64], strides = [1, 1]} : vector<64x64xf32> to vector<16x64xf32>
    %c0_23 = arith.constant 0 : index
    %c0_24 = arith.constant 0 : index
    %c0_25 = arith.constant 0 : index
    %32 = vector.load %arg6[%c0_23, %c0_24, %c0_25] : memref<4x64x128xf32, #tpu.memory_space<vmem>>, vector<1x64x128xf32>
    %33 = vector.shape_cast %32 : vector<1x64x128xf32> to vector<64x128xf32>
    %cst_26 = arith.constant dense<0.000000e+00> : vector<16x128xf32>
    %34 = tpu.matmul %31, %33, %cst_26 {dimension_numbers = #tpu.dot_dimension_numbers<[1], [0], [0], [1], [0, 0, 1, 1], [], []>} : vector<16x64xf32>, vector<64x128xf32>, vector<16x128xf32> -> vector<16x128xf32>
    %35 = vector.extract_strided_slice %30 {offsets = [16, 0], sizes = [16, 64], strides = [1, 1]} : vector<64x64xf32> to vector<16x64xf32>
    %c1_27 = arith.constant 1 : index
    %c0_28 = arith.constant 0 : index
    %c0_29 = arith.constant 0 : index
    %36 = vector.load %arg6[%c1_27, %c0_28, %c0_29] : memref<4x64x128xf32, #tpu.memory_space<vmem>>, vector<1x64x128xf32>
    %37 = vector.shape_cast %36 : vector<1x64x128xf32> to vector<64x128xf32>
    %cst_30 = arith.constant dense<0.000000e+00> : vector<16x128xf32>
    %38 = tpu.matmul %35, %37, %cst_30 {dimension_numbers = #tpu.dot_dimension_numbers<[1], [0], [0], [1], [0, 0, 1, 1], [], []>} : vector<16x64xf32>, vector<64x128xf32>, vector<16x128xf32> -> vector<16x128xf32>
    %39 = arith.addf %34, %38 : vector<16x128xf32>
    %40 = vector.extract_strided_slice %30 {offsets = [32, 0], sizes = [16, 64], strides = [1, 1]} : vector<64x64xf32> to vector<16x64xf32>
    %c2_31 = arith.constant 2 : index
    %c0_32 = arith.constant 0 : index
    %c0_33 = arith.constant 0 : index
    %41 = vector.load %arg6[%c2_31, %c0_32, %c0_33] : memref<4x64x128xf32, #tpu.memory_space<vmem>>, vector<1x64x128xf32>
    %42 = vector.shape_cast %41 : vector<1x64x128xf32> to vector<64x128xf32>
    %cst_34 = arith.constant dense<0.000000e+00> : vector<16x128xf32>
    %43 = tpu.matmul %40, %42, %cst_34 {dimension_numbers = #tpu.dot_dimension_numbers<[1], [0], [0], [1], [0, 0, 1, 1], [], []>} : vector<16x64xf32>, vector<64x128xf32>, vector<16x128xf32> -> vector<16x128xf32>
    %44 = arith.addf %39, %43 : vector<16x128xf32>
    %45 = vector.extract_strided_slice %30 {offsets = [48, 0], sizes = [16, 64], strides = [1, 1]} : vector<64x64xf32> to vector<16x64xf32>
    %c3_35 = arith.constant 3 : index
    %c0_36 = arith.constant 0 : index
    %c0_37 = arith.constant 0 : index
    %46 = vector.load %arg6[%c3_35, %c0_36, %c0_37] : memref<4x64x128xf32, #tpu.memory_space<vmem>>, vector<1x64x128xf32>
    %47 = vector.shape_cast %46 : vector<1x64x128xf32> to vector<64x128xf32>
    %cst_38 = arith.constant dense<0.000000e+00> : vector<16x128xf32>
    %48 = tpu.matmul %45, %47, %cst_38 {dimension_numbers = #tpu.dot_dimension_numbers<[1], [0], [0], [1], [0, 0, 1, 1], [], []>} : vector<16x64xf32>, vector<64x128xf32>, vector<16x128xf32> -> vector<16x128xf32>
    %49 = arith.addf %44, %48 : vector<16x128xf32>
    %cst_39 = arith.constant dense<0.000000e+00> : vector<128xf32>
    %50 = vector.multi_reduction <add>, %49, %cst_39 [0] : vector<16x128xf32> to vector<128xf32>
    %51 = vector.shape_cast %50 : vector<128xf32> to vector<1x128xf32>
    %cst_40 = arith.constant 1.600000e+01 : f32
    %52 = vector.broadcast %cst_40 : f32 to vector<1x128xf32>
    %53 = arith.divf %51, %52 : vector<1x128xf32>
    %54 = vector.broadcast %53 : vector<1x128xf32> to vector<16x128xf32>
    %55 = arith.subf %49, %54 : vector<16x128xf32>
    %56 = arith.mulf %55, %55 : vector<16x128xf32>
    %cst_41 = arith.constant dense<0.000000e+00> : vector<128xf32>
    %57 = vector.multi_reduction <add>, %56, %cst_41 [0] : vector<16x128xf32> to vector<128xf32>
    %58 = vector.shape_cast %57 : vector<128xf32> to vector<1x128xf32>
    %cst_42 = arith.constant 1.600000e+01 : f32
    %59 = vector.broadcast %cst_42 : f32 to vector<1x128xf32>
    %60 = arith.divf %58, %59 : vector<1x128xf32>
    %cst_43 = arith.constant 9.99999974E-6 : f32
    %61 = vector.broadcast %cst_43 : f32 to vector<1x128xf32>
    %62 = arith.addf %60, %61 : vector<1x128xf32>
    %63 = math.rsqrt %62 : vector<1x128xf32>
    %64 = vector.broadcast %63 : vector<1x128xf32> to vector<16x128xf32>
    %65 = arith.mulf %55, %64 : vector<16x128xf32>
    %cst_44 = arith.constant 2.000000e-01 : f32
    %66 = vector.broadcast %cst_44 : f32 to vector<16x128xf32>
    %67 = arith.mulf %66, %65 : vector<16x128xf32>
    %68 = arith.maximumf %65, %67 : vector<16x128xf32>
    %c0_45 = arith.constant 0 : index
    %c0_46 = arith.constant 0 : index
    %69 = vector.load %arg7[%c0_45, %c0_46] : memref<32x16xf32, #tpu.memory_space<vmem>>, vector<32x16xf32>
    %cst_47 = arith.constant dense<0.000000e+00> : vector<32x128xf32>
    %70 = tpu.matmul %69, %68, %cst_47 {dimension_numbers = #tpu.dot_dimension_numbers<[1], [0], [0], [1], [0, 0, 1, 1], [], []>} : vector<32x16xf32>, vector<16x128xf32>, vector<32x128xf32> -> vector<32x128xf32>
    %71 = vector.extract_strided_slice %70 {offsets = [0, 0], sizes = [8, 128], strides = [1, 1]} : vector<32x128xf32> to vector<8x128xf32>
    %c0_48 = arith.constant 0 : index
    %c0_49 = arith.constant 0 : index
    %c0_50 = arith.constant 0 : index
    %72 = vector.load %arg8[%c0_48, %c0_49, %c0_50] : memref<4x128x256xf32, #tpu.memory_space<vmem>>, vector<1x128x256xf32>
    %73 = vector.shape_cast %72 : vector<1x128x256xf32> to vector<128x256xf32>
    %cst_51 = arith.constant dense<0.000000e+00> : vector<8x256xf32>
    %74 = tpu.matmul %71, %73, %cst_51 {dimension_numbers = #tpu.dot_dimension_numbers<[1], [0], [0], [1], [0, 0, 1, 1], [], []>} : vector<8x128xf32>, vector<128x256xf32>, vector<8x256xf32> -> vector<8x256xf32>
    %75 = vector.extract_strided_slice %70 {offsets = [8, 0], sizes = [8, 128], strides = [1, 1]} : vector<32x128xf32> to vector<8x128xf32>
    %c1_52 = arith.constant 1 : index
    %c0_53 = arith.constant 0 : index
    %c0_54 = arith.constant 0 : index
    %76 = vector.load %arg8[%c1_52, %c0_53, %c0_54] : memref<4x128x256xf32, #tpu.memory_space<vmem>>, vector<1x128x256xf32>
    %77 = vector.shape_cast %76 : vector<1x128x256xf32> to vector<128x256xf32>
    %cst_55 = arith.constant dense<0.000000e+00> : vector<8x256xf32>
    %78 = tpu.matmul %75, %77, %cst_55 {dimension_numbers = #tpu.dot_dimension_numbers<[1], [0], [0], [1], [0, 0, 1, 1], [], []>} : vector<8x128xf32>, vector<128x256xf32>, vector<8x256xf32> -> vector<8x256xf32>
    %79 = arith.addf %74, %78 : vector<8x256xf32>
    %80 = vector.extract_strided_slice %70 {offsets = [16, 0], sizes = [8, 128], strides = [1, 1]} : vector<32x128xf32> to vector<8x128xf32>
    %c2_56 = arith.constant 2 : index
    %c0_57 = arith.constant 0 : index
    %c0_58 = arith.constant 0 : index
    %81 = vector.load %arg8[%c2_56, %c0_57, %c0_58] : memref<4x128x256xf32, #tpu.memory_space<vmem>>, vector<1x128x256xf32>
    %82 = vector.shape_cast %81 : vector<1x128x256xf32> to vector<128x256xf32>
    %cst_59 = arith.constant dense<0.000000e+00> : vector<8x256xf32>
    %83 = tpu.matmul %80, %82, %cst_59 {dimension_numbers = #tpu.dot_dimension_numbers<[1], [0], [0], [1], [0, 0, 1, 1], [], []>} : vector<8x128xf32>, vector<128x256xf32>, vector<8x256xf32> -> vector<8x256xf32>
    %84 = arith.addf %79, %83 : vector<8x256xf32>
    %85 = vector.extract_strided_slice %70 {offsets = [24, 0], sizes = [8, 128], strides = [1, 1]} : vector<32x128xf32> to vector<8x128xf32>
    %c3_60 = arith.constant 3 : index
    %c0_61 = arith.constant 0 : index
    %c0_62 = arith.constant 0 : index
    %86 = vector.load %arg8[%c3_60, %c0_61, %c0_62] : memref<4x128x256xf32, #tpu.memory_space<vmem>>, vector<1x128x256xf32>
    %87 = vector.shape_cast %86 : vector<1x128x256xf32> to vector<128x256xf32>
    %cst_63 = arith.constant dense<0.000000e+00> : vector<8x256xf32>
    %88 = tpu.matmul %85, %87, %cst_63 {dimension_numbers = #tpu.dot_dimension_numbers<[1], [0], [0], [1], [0, 0, 1, 1], [], []>} : vector<8x128xf32>, vector<128x256xf32>, vector<8x256xf32> -> vector<8x256xf32>
    %89 = arith.addf %84, %88 : vector<8x256xf32>
    %cst_64 = arith.constant dense<0.000000e+00> : vector<256xf32>
    %90 = vector.multi_reduction <add>, %89, %cst_64 [0] : vector<8x256xf32> to vector<256xf32>
    %91 = vector.shape_cast %90 : vector<256xf32> to vector<1x256xf32>
    %cst_65 = arith.constant 8.000000e+00 : f32
    %92 = vector.broadcast %cst_65 : f32 to vector<1x256xf32>
    %93 = arith.divf %91, %92 : vector<1x256xf32>
    %94 = vector.broadcast %93 : vector<1x256xf32> to vector<8x256xf32>
    %95 = arith.subf %89, %94 : vector<8x256xf32>
    %96 = arith.mulf %95, %95 : vector<8x256xf32>
    %cst_66 = arith.constant dense<0.000000e+00> : vector<256xf32>
    %97 = vector.multi_reduction <add>, %96, %cst_66 [0] : vector<8x256xf32> to vector<256xf32>
    %98 = vector.shape_cast %97 : vector<256xf32> to vector<1x256xf32>
    %cst_67 = arith.constant 8.000000e+00 : f32
    %99 = vector.broadcast %cst_67 : f32 to vector<1x256xf32>
    %100 = arith.divf %98, %99 : vector<1x256xf32>
    %cst_68 = arith.constant 9.99999974E-6 : f32
    %101 = vector.broadcast %cst_68 : f32 to vector<1x256xf32>
    %102 = arith.addf %100, %101 : vector<1x256xf32>
    %103 = math.rsqrt %102 : vector<1x256xf32>
    %104 = vector.broadcast %103 : vector<1x256xf32> to vector<8x256xf32>
    %105 = arith.mulf %95, %104 : vector<8x256xf32>
    %cst_69 = arith.constant 2.000000e-01 : f32
    %106 = vector.broadcast %cst_69 : f32 to vector<8x256xf32>
    %107 = arith.mulf %106, %105 : vector<8x256xf32>
    %108 = arith.maximumf %105, %107 : vector<8x256xf32>
    %c0_70 = arith.constant 0 : index
    %c0_71 = arith.constant 0 : index
    %109 = vector.load %arg9[%c0_70, %c0_71] : memref<32x8xf32, #tpu.memory_space<vmem>>, vector<32x8xf32>
    %cst_72 = arith.constant dense<0.000000e+00> : vector<32x256xf32>
    %110 = tpu.matmul %109, %108, %cst_72 {dimension_numbers = #tpu.dot_dimension_numbers<[1], [0], [0], [1], [0, 0, 1, 1], [], []>} : vector<32x8xf32>, vector<8x256xf32>, vector<32x256xf32> -> vector<32x256xf32>
    %111 = vector.extract_strided_slice %110 {offsets = [0, 0], sizes = [4, 256], strides = [1, 1]} : vector<32x256xf32> to vector<4x256xf32>
    %c0_73 = arith.constant 0 : index
    %c0_74 = arith.constant 0 : index
    %c0_75 = arith.constant 0 : index
    %112 = vector.load %arg10[%c0_73, %c0_74, %c0_75] : memref<4x256x512xf32, #tpu.memory_space<vmem>>, vector<1x256x512xf32>
    %113 = vector.shape_cast %112 : vector<1x256x512xf32> to vector<256x512xf32>
    %cst_76 = arith.constant dense<0.000000e+00> : vector<4x512xf32>
    %114 = tpu.matmul %111, %113, %cst_76 {dimension_numbers = #tpu.dot_dimension_numbers<[1], [0], [0], [1], [0, 0, 1, 1], [], []>} : vector<4x256xf32>, vector<256x512xf32>, vector<4x512xf32> -> vector<4x512xf32>
    %115 = vector.extract_strided_slice %110 {offsets = [8, 0], sizes = [4, 256], strides = [1, 1]} : vector<32x256xf32> to vector<4x256xf32>
    %c1_77 = arith.constant 1 : index
    %c0_78 = arith.constant 0 : index
    %c0_79 = arith.constant 0 : index
    %116 = vector.load %arg10[%c1_77, %c0_78, %c0_79] : memref<4x256x512xf32, #tpu.memory_space<vmem>>, vector<1x256x512xf32>
    %117 = vector.shape_cast %116 : vector<1x256x512xf32> to vector<256x512xf32>
    %cst_80 = arith.constant dense<0.000000e+00> : vector<4x512xf32>
    %118 = tpu.matmul %115, %117, %cst_80 {dimension_numbers = #tpu.dot_dimension_numbers<[1], [0], [0], [1], [0, 0, 1, 1], [], []>} : vector<4x256xf32>, vector<256x512xf32>, vector<4x512xf32> -> vector<4x512xf32>
    %119 = arith.addf %114, %118 : vector<4x512xf32>
    %120 = vector.extract_strided_slice %110 {offsets = [16, 0], sizes = [4, 256], strides = [1, 1]} : vector<32x256xf32> to vector<4x256xf32>
    %c2_81 = arith.constant 2 : index
    %c0_82 = arith.constant 0 : index
    %c0_83 = arith.constant 0 : index
    %121 = vector.load %arg10[%c2_81, %c0_82, %c0_83] : memref<4x256x512xf32, #tpu.memory_space<vmem>>, vector<1x256x512xf32>
    %122 = vector.shape_cast %121 : vector<1x256x512xf32> to vector<256x512xf32>
    %cst_84 = arith.constant dense<0.000000e+00> : vector<4x512xf32>
    %123 = tpu.matmul %120, %122, %cst_84 {dimension_numbers = #tpu.dot_dimension_numbers<[1], [0], [0], [1], [0, 0, 1, 1], [], []>} : vector<4x256xf32>, vector<256x512xf32>, vector<4x512xf32> -> vector<4x512xf32>
    %124 = arith.addf %119, %123 : vector<4x512xf32>
    %125 = vector.extract_strided_slice %110 {offsets = [24, 0], sizes = [4, 256], strides = [1, 1]} : vector<32x256xf32> to vector<4x256xf32>
    %c3_85 = arith.constant 3 : index
    %c0_86 = arith.constant 0 : index
    %c0_87 = arith.constant 0 : index
    %126 = vector.load %arg10[%c3_85, %c0_86, %c0_87] : memref<4x256x512xf32, #tpu.memory_space<vmem>>, vector<1x256x512xf32>
    %127 = vector.shape_cast %126 : vector<1x256x512xf32> to vector<256x512xf32>
    %cst_88 = arith.constant dense<0.000000e+00> : vector<4x512xf32>
    %128 = tpu.matmul %125, %127, %cst_88 {dimension_numbers = #tpu.dot_dimension_numbers<[1], [0], [0], [1], [0, 0, 1, 1], [], []>} : vector<4x256xf32>, vector<256x512xf32>, vector<4x512xf32> -> vector<4x512xf32>
    %129 = arith.addf %124, %128 : vector<4x512xf32>
    %cst_89 = arith.constant dense<0.000000e+00> : vector<512xf32>
    %130 = vector.multi_reduction <add>, %129, %cst_89 [0] : vector<4x512xf32> to vector<512xf32>
    %131 = vector.shape_cast %130 : vector<512xf32> to vector<1x512xf32>
    %cst_90 = arith.constant 4.000000e+00 : f32
    %132 = vector.broadcast %cst_90 : f32 to vector<1x512xf32>
    %133 = arith.divf %131, %132 : vector<1x512xf32>
    %134 = vector.broadcast %133 : vector<1x512xf32> to vector<4x512xf32>
    %135 = arith.subf %129, %134 : vector<4x512xf32>
    %136 = arith.mulf %135, %135 : vector<4x512xf32>
    %cst_91 = arith.constant dense<0.000000e+00> : vector<512xf32>
    %137 = vector.multi_reduction <add>, %136, %cst_91 [0] : vector<4x512xf32> to vector<512xf32>
    %138 = vector.shape_cast %137 : vector<512xf32> to vector<1x512xf32>
    %cst_92 = arith.constant 4.000000e+00 : f32
    %139 = vector.broadcast %cst_92 : f32 to vector<1x512xf32>
    %140 = arith.divf %138, %139 : vector<1x512xf32>
    %cst_93 = arith.constant 9.99999974E-6 : f32
    %141 = vector.broadcast %cst_93 : f32 to vector<1x512xf32>
    %142 = arith.addf %140, %141 : vector<1x512xf32>
    %143 = math.rsqrt %142 : vector<1x512xf32>
    %144 = vector.broadcast %143 : vector<1x512xf32> to vector<4x512xf32>
    %145 = arith.mulf %135, %144 : vector<4x512xf32>
    %cst_94 = arith.constant 2.000000e-01 : f32
    %146 = vector.broadcast %cst_94 : f32 to vector<4x512xf32>
    %147 = arith.mulf %146, %145 : vector<4x512xf32>
    %148 = arith.maximumf %145, %147 : vector<4x512xf32>
    %c0_95 = arith.constant 0 : index
    %c0_96 = arith.constant 0 : index
    %149 = vector.load %arg11[%c0_95, %c0_96] : memref<32x4xf32, #tpu.memory_space<vmem>>, vector<32x4xf32>
    %cst_97 = arith.constant dense<0.000000e+00> : vector<32x512xf32>
    %150 = tpu.matmul %149, %148, %cst_97 {dimension_numbers = #tpu.dot_dimension_numbers<[1], [0], [0], [1], [0, 0, 1, 1], [], []>} : vector<32x4xf32>, vector<4x512xf32>, vector<32x512xf32> -> vector<32x512xf32>
    %151 = vector.extract_strided_slice %150 {offsets = [0, 0], sizes = [5, 512], strides = [1, 1]} : vector<32x512xf32> to vector<5x512xf32>
    %c0_98 = arith.constant 0 : index
    %c0_99 = arith.constant 0 : index
    %c0_100 = arith.constant 0 : index
    %152 = vector.load %arg12[%c0_98, %c0_99, %c0_100] : memref<4x512x1xf32, #tpu.memory_space<vmem>>, vector<1x512x1xf32>
    %153 = vector.shape_cast %152 : vector<1x512x1xf32> to vector<512x1xf32>
    %cst_101 = arith.constant dense<0.000000e+00> : vector<5x1xf32>
    %154 = tpu.matmul %151, %153, %cst_101 {dimension_numbers = #tpu.dot_dimension_numbers<[1], [0], [0], [1], [0, 0, 1, 1], [], []>} : vector<5x512xf32>, vector<512x1xf32>, vector<5x1xf32> -> vector<5x1xf32>
    %155 = vector.extract_strided_slice %150 {offsets = [8, 0], sizes = [5, 512], strides = [1, 1]} : vector<32x512xf32> to vector<5x512xf32>
    %c1_102 = arith.constant 1 : index
    %c0_103 = arith.constant 0 : index
    %c0_104 = arith.constant 0 : index
    %156 = vector.load %arg12[%c1_102, %c0_103, %c0_104] : memref<4x512x1xf32, #tpu.memory_space<vmem>>, vector<1x512x1xf32>
    %157 = vector.shape_cast %156 : vector<1x512x1xf32> to vector<512x1xf32>
    %cst_105 = arith.constant dense<0.000000e+00> : vector<5x1xf32>
    %158 = tpu.matmul %155, %157, %cst_105 {dimension_numbers = #tpu.dot_dimension_numbers<[1], [0], [0], [1], [0, 0, 1, 1], [], []>} : vector<5x512xf32>, vector<512x1xf32>, vector<5x1xf32> -> vector<5x1xf32>
    %159 = arith.addf %154, %158 : vector<5x1xf32>
    %160 = vector.extract_strided_slice %150 {offsets = [16, 0], sizes = [5, 512], strides = [1, 1]} : vector<32x512xf32> to vector<5x512xf32>
    %c2_106 = arith.constant 2 : index
    %c0_107 = arith.constant 0 : index
    %c0_108 = arith.constant 0 : index
    %161 = vector.load %arg12[%c2_106, %c0_107, %c0_108] : memref<4x512x1xf32, #tpu.memory_space<vmem>>, vector<1x512x1xf32>
    %162 = vector.shape_cast %161 : vector<1x512x1xf32> to vector<512x1xf32>
    %cst_109 = arith.constant dense<0.000000e+00> : vector<5x1xf32>
    %163 = tpu.matmul %160, %162, %cst_109 {dimension_numbers = #tpu.dot_dimension_numbers<[1], [0], [0], [1], [0, 0, 1, 1], [], []>} : vector<5x512xf32>, vector<512x1xf32>, vector<5x1xf32> -> vector<5x1xf32>
    %164 = arith.addf %159, %163 : vector<5x1xf32>
    %165 = vector.extract_strided_slice %150 {offsets = [24, 0], sizes = [5, 512], strides = [1, 1]} : vector<32x512xf32> to vector<5x512xf32>
    %c3_110 = arith.constant 3 : index
    %c0_111 = arith.constant 0 : index
    %c0_112 = arith.constant 0 : index
    %166 = vector.load %arg12[%c3_110, %c0_111, %c0_112] : memref<4x512x1xf32, #tpu.memory_space<vmem>>, vector<1x512x1xf32>
    %167 = vector.shape_cast %166 : vector<1x512x1xf32> to vector<512x1xf32>
    %cst_113 = arith.constant dense<0.000000e+00> : vector<5x1xf32>
    %168 = tpu.matmul %165, %167, %cst_113 {dimension_numbers = #tpu.dot_dimension_numbers<[1], [0], [0], [1], [0, 0, 1, 1], [], []>} : vector<5x512xf32>, vector<512x1xf32>, vector<5x1xf32> -> vector<5x1xf32>
    %169 = arith.addf %164, %168 : vector<5x1xf32>
    %c0_114 = arith.constant 0 : index
    %c0_115 = arith.constant 0 : index
    %170 = vector.load %arg13[%c0_114, %c0_115] : memref<1x1xf32, #tpu.memory_space<vmem>>, vector<1x1xf32>
    %171 = vector.broadcast %170 : vector<1x1xf32> to vector<5x1xf32>
    %172 = arith.addf %169, %171 : vector<5x1xf32>
    %c0_116 = arith.constant 0 : index
    %c0_117 = arith.constant 0 : index
    %c0_118 = arith.constant 0 : index
    %173 = vector.load %arg14[%c0_116, %c0_117, %c0_118] : memref<1x5x1xf32, #tpu.memory_space<vmem>>, vector<1x5x1xf32>
    %174 = vector.shape_cast %173 : vector<1x5x1xf32> to vector<5x1xf32>
    %175 = vector.shape_cast %172 : vector<5x1xf32> to vector<1x5x1xf32>
    tpu.vector_store %arg14[%c0_116, %c0_117, %c0_118], %175 {strides = array<i32>} : memref<1x5x1xf32, #tpu.memory_space<vmem>>, vector<1x5x1xf32>,
    return
  }
  func.func @transform_0(%arg0: i32) -> (i32, i32, i32) {
    %c0_i32 = arith.constant 0 : i32
    %c0_i32_0 = arith.constant 0 : i32
    %c0_i32_1 = arith.constant 0 : i32
    return %arg0, %c0_i32, %c0_i32_0 : i32, i32, i32
  }
  func.func @transform_1(%arg0: i32) -> (i32, i32) {
    %c0_i32 = arith.constant 0 : i32
    %c0_i32_0 = arith.constant 0 : i32
    %c0_i32_1 = arith.constant 0 : i32
    return %c0_i32, %c0_i32_0 : i32, i32
  }
  func.func @transform_2(%arg0: i32) -> (i32, i32, i32) {
    %c0_i32 = arith.constant 0 : i32
    %c0_i32_0 = arith.constant 0 : i32
    %c0_i32_1 = arith.constant 0 : i32
    %c0_i32_2 = arith.constant 0 : i32
    return %c0_i32, %c0_i32_0, %c0_i32_1 : i32, i32, i32
  }
  func.func @transform_3(%arg0: i32) -> (i32, i32) {
    %c0_i32 = arith.constant 0 : i32
    %c0_i32_0 = arith.constant 0 : i32
    %c0_i32_1 = arith.constant 0 : i32
    return %c0_i32, %c0_i32_0 : i32, i32
  }
  func.func @transform_4(%arg0: i32) -> (i32, i32) {
    %c0_i32 = arith.constant 0 : i32
    %c0_i32_0 = arith.constant 0 : i32
    %c0_i32_1 = arith.constant 0 : i32
    return %c0_i32, %c0_i32_0 : i32, i32
  }
  func.func @transform_5(%arg0: i32) -> (i32, i32, i32) {
    %c0_i32 = arith.constant 0 : i32
    %c0_i32_0 = arith.constant 0 : i32
    %c0_i32_1 = arith.constant 0 : i32
    %c0_i32_2 = arith.constant 0 : i32
    return %c0_i32, %c0_i32_0, %c0_i32_1 : i32, i32, i32
  }
  func.func @transform_6(%arg0: i32) -> (i32, i32) {
    %c0_i32 = arith.constant 0 : i32
    %c0_i32_0 = arith.constant 0 : i32
    %c0_i32_1 = arith.constant 0 : i32
    return %c0_i32, %c0_i32_0 : i32, i32
  }
  func.func @transform_7(%arg0: i32) -> (i32, i32, i32) {
    %c0_i32 = arith.constant 0 : i32
    %c0_i32_0 = arith.constant 0 : i32
    %c0_i32_1 = arith.constant 0 : i32
    %c0_i32_2 = arith.constant 0 : i32
    return %c0_i32, %c0_i32_0, %c0_i32_1 : i32, i32, i32
  }
  func.func @transform_8(%arg0: i32) -> (i32, i32) {
    %c0_i32 = arith.constant 0 : i32
    %c0_i32_0 = arith.constant 0 : i32
    %c0_i32_1 = arith.constant 0 : i32
    return %c0_i32, %c0_i32_0 : i32, i32
  }
  func.func @transform_9(%arg0: i32) -> (i32, i32, i32) {
    %c0_i32 = arith.constant 0 : i32
    %c0_i32_0 = arith.constant 0 : i32
    %c0_i32_1 = arith.constant 0 : i32
    %c0_i32_2 = arith.constant 0 : i32
    return %c0_i32, %c0_i32_0, %c0_i32_1 : i32, i32, i32
  }
  func.func @transform_10(%arg0: i32) -> (i32, i32) {
    %c0_i32 = arith.constant 0 : i32
    %c0_i32_0 = arith.constant 0 : i32
    %c0_i32_1 = arith.constant 0 : i32
    return %c0_i32, %c0_i32_0 : i32, i32
  }
  func.func @transform_11(%arg0: i32) -> (i32, i32, i32) {
    %c0_i32 = arith.constant 0 : i32
    %c0_i32_0 = arith.constant 0 : i32
    %c0_i32_1 = arith.constant 0 : i32
    %c0_i32_2 = arith.constant 0 : i32
    return %c0_i32, %c0_i32_0, %c0_i32_1 : i32, i32, i32
  }
  func.func @transform_12(%arg0: i32) -> (i32, i32) {
    %c0_i32 = arith.constant 0 : i32
    %c0_i32_0 = arith.constant 0 : i32
    %c0_i32_1 = arith.constant 0 : i32
    return %c0_i32, %c0_i32_0 : i32, i32
  }
  func.func @transform_13(%arg0: i32) -> (i32, i32, i32) {
    %c0_i32 = arith.constant 0 : i32
    %c0_i32_0 = arith.constant 0 : i32
    %c0_i32_1 = arith.constant 0 : i32
    return %arg0, %c0_i32, %c0_i32_0 : i32, i32, i32
  }
}

</mosaic_0001>

<llo_original>
// kernel: discriminator_forward.1
$region0: #{discriminator_forward.1}
  #allocation0 [shape = 'u32[]', space=smem, size = 0x4, offset = 0x4, fixed_abs, tag = 'smem constant byte address 0x4 - core index']
  #allocation1 [shape = 'u32[144,128]{1,0:T(1,128)}', space=vmem, size = 0x12000, scoped, tag = 'internal scratch']
  #allocation2 [shape = 'f32[1,1]{1,0:T(1,128)S(1)}', space=vmem, size = 0x200, scoped, tag = 'scoped memory for discriminator_forward.1']
  %s0 = inlined_call_operand.vmem [shape: f32[2,64,4], index: 0, kind: input, shape index: {}]
  %s1 = inlined_call_operand.vmem [shape: f32[128,64], index: 1, kind: input, shape index: {}]
  %s2 = inlined_call_operand.vmem [shape: f32[4,4,64], index: 2, kind: input, shape index: {}]
  %s3 = inlined_call_operand.vmem [shape: f32[1,64], index: 3, kind: input, shape index: {}]
  %s4 = inlined_call_operand.vmem [shape: f32[64,32], index: 4, kind: input, shape index: {}]
  %s5 = inlined_call_operand.vmem [shape: f32[4,64,128], index: 5, kind: input, shape index: {}]
  %s6 = inlined_call_operand.vmem [shape: f32[32,16], index: 6, kind: input, shape index: {}]
  %s7 = inlined_call_operand.vmem [shape: f32[4,128,256], index: 7, kind: input, shape index: {}]
  %s8 = inlined_call_operand.vmem [shape: f32[32,8], index: 8, kind: input, shape index: {}]
  %s9 = inlined_call_operand.vmem [shape: f32[4,256,512], index: 9, kind: input, shape index: {}]
  %s10 = inlined_call_operand.vmem [shape: f32[32,4], index: 10, kind: input, shape index: {}]
  %s11 = inlined_call_operand.vmem [shape: f32[4,512,1], index: 11, kind: input, shape index: {}]
  %s12 = inlined_call_operand.<no memory space> [shape: f32[1,1], index: 12, kind: input, shape index: {}]
  %s13 = inlined_call_operand.vmem [shape: f32[2,5,1], index: 13, kind: output, shape index: {}]
  %s14 = sld [smem:[#allocation0]]
  $region85: #{discriminator_forward.1} parent=0
    _
  %s16 = ssub.s32 1, %s14
  %s17 = scalar_select 0, %s16, %s14
  %v18 = vstv %s12
  %19 = vst [vmem:[#allocation2] sm:$0x1] %v18
  loop: start=0, step=1, limit=4
  $region2: #{discriminator_forward.1} parent=0 // loop_pre_header
    _
  $region3: #{discriminator_forward.1} parent=0 // loop_header
    %s21 = sphi 0, %s25
    %p22 = scmp.ge.s32.totalorder %s21, 4
    %s31 = sphi 0, %s33
    %s34 = sphi 0, %s31
    %s35 = sphi 0, %s34
    %s51 = sphi 0, %s35
    %s55 = sphi 0, %s55
    %s57 = sphi 0, %s55
    %s58 = sphi 0, %s57
    %s72 = sphi 0, %s58
    %s76 = sphi 0, %s76
    %s78 = sphi 0, %s76
    %s79 = sphi 0, %s78
    %s93 = sphi 0, %s79
    %s97 = sphi 0, %s97
    %s99 = sphi 0, %s97
    %s100 = sphi 0, %s99
    %s114 = sphi 0, %s100
    %s118 = sphi 0, %s118
    %s120 = sphi 0, %s118
    %s121 = sphi 0, %s120
    %s135 = sphi 0, %s121
    %s139 = sphi 0, %s139
    %s141 = sphi 0, %s139
    %s142 = sphi 0, %s141
    %s156 = sphi 0, %s142
    %s160 = sphi 0, %s160
    %s162 = sphi 0, %s160
    %s163 = sphi 0, %s162
    %s177 = sphi 0, %s163
    %s181 = sphi 0, %s181
    %s183 = sphi 0, %s181
    %s184 = sphi 0, %s183
    %s198 = sphi 0, %s184
    %s202 = sphi 0, %s202
    %s204 = sphi 0, %s202
    %s205 = sphi 0, %s204
    %s219 = sphi 0, %s205
    %s223 = sphi 0, %s223
    %s225 = sphi 0, %s223
    %s226 = sphi 0, %s225
    %s240 = sphi 0, %s226
    %s244 = sphi 0, %s244
    %s246 = sphi 0, %s244
    %s247 = sphi 0, %s246
    %s261 = sphi 0, %s247
    %s265 = sphi 0, %s265
    %s267 = sphi 0, %s265
    %s268 = sphi 0, %s267
    %s282 = sphi 0, %s268
    %s286 = sphi 0, %s286
    %s288 = sphi 0, %s286
    %s289 = sphi 0, %s288
    %s303 = sphi 0, %s289
    %s309 = sphi 0, %s311
    %s312 = sphi 0, %s309
    %s313 = sphi 0, %s312
    %s329 = sphi 0, %s313
  $region4: #{discriminator_forward.1} parent=0 // loop_header_branch
    %24 = sbr.rel (%p22) target = $region8
  $region5: #{discriminator_forward.1} parent=0 // loop_body
    %s26 = ssub.s32 %s21, 1
    %s27 = ssub.s32 %s21, 2
    %s28 = sadd.s32 %s21, 1
    %s29 = ssub.s32 %s21, %s28
    %p30 = scmp.eq.s32.totalorder %s29, 0
    %s32 = sadd.s32 %s31, 1
    %s33 = scalar_select %p30, %s31, %s32
    %p36 = pneg %p30
    %p37 = scmp.eq.s32.totalorder %s21, 1
    %p38 = por %p36, %p37
    %p39 = scmp.ne.s32.totalorder %s31, %s34
    %p40 = scmp.eq.s32.totalorder %s21, 0
    %p41 = por %p39, %p40
    %p42 = scmp.ne.s32.totalorder %s31, %s34
    %p43 = scmp.eq.s32.totalorder %s26, 1
    %p44 = por %p42, %p43
    %p45 = scmp.ne.s32.totalorder %s34, %s35
    %p46 = scmp.eq.s32.totalorder %s26, 0
    %p47 = por %p45, %p46
    %p48 = scmp.ne.s32.totalorder %s34, %s35
    %p49 = scmp.eq.s32.totalorder %s27, 1
    %p50 = por %p48, %p49
    %p52 = scmp.ne.s32.totalorder %s35, %s51
    %p53 = scmp.eq.s32.totalorder %s27, 0
    %p54 = por %p52, %p53
    %s56 = sadd.s32 %s55, 1
    %p59 = scmp.eq.s32.totalorder %s21, 1
    %p60 = scmp.ne.s32.totalorder %s55, %s57
    %p61 = scmp.eq.s32.totalorder %s21, 0
    %p62 = por %p60, %p61
    %p63 = scmp.ne.s32.totalorder %s55, %s57
    %p64 = scmp.eq.s32.totalorder %s26, 1
    %p65 = por %p63, %p64
    %p66 = scmp.ne.s32.totalorder %s57, %s58
    %p67 = scmp.eq.s32.totalorder %s26, 0
    %p68 = por %p66, %p67
    %p69 = scmp.ne.s32.totalorder %s57, %s58
    %p70 = scmp.eq.s32.totalorder %s27, 1
    %p71 = por %p69, %p70
    %p73 = scmp.ne.s32.totalorder %s58, %s72
    %p74 = scmp.eq.s32.totalorder %s27, 0
    %p75 = por %p73, %p74
    %s77 = sadd.s32 %s76, 1
    %p80 = scmp.eq.s32.totalorder %s21, 1
    %p81 = scmp.ne.s32.totalorder %s76, %s78
    %p82 = scmp.eq.s32.totalorder %s21, 0
    %p83 = por %p81, %p82
    %p84 = scmp.ne.s32.totalorder %s76, %s78
    %p85 = scmp.eq.s32.totalorder %s26, 1
    %p86 = por %p84, %p85
    %p87 = scmp.ne.s32.totalorder %s78, %s79
    %p88 = scmp.eq.s32.totalorder %s26, 0
    %p89 = por %p87, %p88
    %p90 = scmp.ne.s32.totalorder %s78, %s79
    %p91 = scmp.eq.s32.totalorder %s27, 1
    %p92 = por %p90, %p91
    %p94 = scmp.ne.s32.totalorder %s79, %s93
    %p95 = scmp.eq.s32.totalorder %s27, 0
    %p96 = por %p94, %p95
    %s98 = sadd.s32 %s97, 1
    %p101 = scmp.eq.s32.totalorder %s21, 1
    %p102 = scmp.ne.s32.totalorder %s97, %s99
    %p103 = scmp.eq.s32.totalorder %s21, 0
    %p104 = por %p102, %p103
    %p105 = scmp.ne.s32.totalorder %s97, %s99
    %p106 = scmp.eq.s32.totalorder %s26, 1
    %p107 = por %p105, %p106
    %p108 = scmp.ne.s32.totalorder %s99, %s100
    %p109 = scmp.eq.s32.totalorder %s26, 0
    %p110 = por %p108, %p109
    %p111 = scmp.ne.s32.totalorder %s99, %s100
    %p112 = scmp.eq.s32.totalorder %s27, 1
    %p113 = por %p111, %p112
    %p115 = scmp.ne.s32.totalorder %s100, %s114
    %p116 = scmp.eq.s32.totalorder %s27, 0
    %p117 = por %p115, %p116
    %s119 = sadd.s32 %s118, 1
    %p122 = scmp.eq.s32.totalorder %s21, 1
    %p123 = scmp.ne.s32.totalorder %s118, %s120
    %p124 = scmp.eq.s32.totalorder %s21, 0
    %p125 = por %p123, %p124
    %p126 = scmp.ne.s32.totalorder %s118, %s120
    %p127 = scmp.eq.s32.totalorder %s26, 1
    %p128 = por %p126, %p127
    %p129 = scmp.ne.s32.totalorder %s120, %s121
    %p130 = scmp.eq.s32.totalorder %s26, 0
    %p131 = por %p129, %p130
    %p132 = scmp.ne.s32.totalorder %s120, %s121
    %p133 = scmp.eq.s32.totalorder %s27, 1
    %p134 = por %p132, %p133
    %p136 = scmp.ne.s32.totalorder %s121, %s135
    %p137 = scmp.eq.s32.totalorder %s27, 0
    %p138 = por %p136, %p137
    %s140 = sadd.s32 %s139, 1
    %p143 = scmp.eq.s32.totalorder %s21, 1
    %p144 = scmp.ne.s32.totalorder %s139, %s141
    %p145 = scmp.eq.s32.totalorder %s21, 0
    %p146 = por %p144, %p145
    %p147 = scmp.ne.s32.totalorder %s139, %s141
    %p148 = scmp.eq.s32.totalorder %s26, 1
    %p149 = por %p147, %p148
    %p150 = scmp.ne.s32.totalorder %s141, %s142
    %p151 = scmp.eq.s32.totalorder %s26, 0
    %p152 = por %p150, %p151
    %p153 = scmp.ne.s32.totalorder %s141, %s142
    %p154 = scmp.eq.s32.totalorder %s27, 1
    %p155 = por %p153, %p154
    %p157 = scmp.ne.s32.totalorder %s142, %s156
    %p158 = scmp.eq.s32.totalorder %s27, 0
    %p159 = por %p157, %p158
    %s161 = sadd.s32 %s160, 1
    %p164 = scmp.eq.s32.totalorder %s21, 1
    %p165 = scmp.ne.s32.totalorder %s160, %s162
    %p166 = scmp.eq.s32.totalorder %s21, 0
    %p167 = por %p165, %p166
    %p168 = scmp.ne.s32.totalorder %s160, %s162
    %p169 = scmp.eq.s32.totalorder %s26, 1
    %p170 = por %p168, %p169
    %p171 = scmp.ne.s32.totalorder %s162, %s163
    %p172 = scmp.eq.s32.totalorder %s26, 0
    %p173 = por %p171, %p172
    %p174 = scmp.ne.s32.totalorder %s162, %s163
    %p175 = scmp.eq.s32.totalorder %s27, 1
    %p176 = por %p174, %p175
    %p178 = scmp.ne.s32.totalorder %s163, %s177
    %p179 = scmp.eq.s32.totalorder %s27, 0
    %p180 = por %p178, %p179
    %s182 = sadd.s32 %s181, 1
    %p185 = scmp.eq.s32.totalorder %s21, 1
    %p186 = scmp.ne.s32.totalorder %s181, %s183
    %p187 = scmp.eq.s32.totalorder %s21, 0
    %p188 = por %p186, %p187
    %p189 = scmp.ne.s32.totalorder %s181, %s183
    %p190 = scmp.eq.s32.totalorder %s26, 1
    %p191 = por %p189, %p190
    %p192 = scmp.ne.s32.totalorder %s183, %s184
    %p193 = scmp.eq.s32.totalorder %s26, 0
    %p194 = por %p192, %p193
    %p195 = scmp.ne.s32.totalorder %s183, %s184
    %p196 = scmp.eq.s32.totalorder %s27, 1
    %p197 = por %p195, %p196
    %p199 = scmp.ne.s32.totalorder %s184, %s198
    %p200 = scmp.eq.s32.totalorder %s27, 0
    %p201 = por %p199, %p200
    %s203 = sadd.s32 %s202, 1
    %p206 = scmp.eq.s32.totalorder %s21, 1
    %p207 = scmp.ne.s32.totalorder %s202, %s204
    %p208 = scmp.eq.s32.totalorder %s21, 0
    %p209 = por %p207, %p208
    %p210 = scmp.ne.s32.totalorder %s202, %s204
    %p211 = scmp.eq.s32.totalorder %s26, 1
    %p212 = por %p210, %p211
    %p213 = scmp.ne.s32.totalorder %s204, %s205
    %p214 = scmp.eq.s32.totalorder %s26, 0
    %p215 = por %p213, %p214
    %p216 = scmp.ne.s32.totalorder %s204, %s205
    %p217 = scmp.eq.s32.totalorder %s27, 1
    %p218 = por %p216, %p217
    %p220 = scmp.ne.s32.totalorder %s205, %s219
    %p221 = scmp.eq.s32.totalorder %s27, 0
    %p222 = por %p220, %p221
    %s224 = sadd.s32 %s223, 1
    %p227 = scmp.eq.s32.totalorder %s21, 1
    %p228 = scmp.ne.s32.totalorder %s223, %s225
    %p229 = scmp.eq.s32.totalorder %s21, 0
    %p230 = por %p228, %p229
    %p231 = scmp.ne.s32.totalorder %s223, %s225
    %p232 = scmp.eq.s32.totalorder %s26, 1
    %p233 = por %p231, %p232
    %p234 = scmp.ne.s32.totalorder %s225, %s226
    %p235 = scmp.eq.s32.totalorder %s26, 0
    %p236 = por %p234, %p235
    %p237 = scmp.ne.s32.totalorder %s225, %s226
    %p238 = scmp.eq.s32.totalorder %s27, 1
    %p239 = por %p237, %p238
    %p241 = scmp.ne.s32.totalorder %s226, %s240
    %p242 = scmp.eq.s32.totalorder %s27, 0
    %p243 = por %p241, %p242
    %s245 = sadd.s32 %s244, 1
    %p248 = scmp.eq.s32.totalorder %s21, 1
    %p249 = scmp.ne.s32.totalorder %s244, %s246
    %p250 = scmp.eq.s32.totalorder %s21, 0
    %p251 = por %p249, %p250
    %p252 = scmp.ne.s32.totalorder %s244, %s246
    %p253 = scmp.eq.s32.totalorder %s26, 1
    %p254 = por %p252, %p253
    %p255 = scmp.ne.s32.totalorder %s246, %s247
    %p256 = scmp.eq.s32.totalorder %s26, 0
    %p257 = por %p255, %p256
    %p258 = scmp.ne.s32.totalorder %s246, %s247
    %p259 = scmp.eq.s32.totalorder %s27, 1
    %p260 = por %p258, %p259
    %p262 = scmp.ne.s32.totalorder %s247, %s261
    %p263 = scmp.eq.s32.totalorder %s27, 0
    %p264 = por %p262, %p263
    %s266 = sadd.s32 %s265, 1
    %p269 = scmp.eq.s32.totalorder %s21, 1
    %p270 = scmp.ne.s32.totalorder %s265, %s267
    %p271 = scmp.eq.s32.totalorder %s21, 0
    %p272 = por %p270, %p271
    %p273 = scmp.ne.s32.totalorder %s265, %s267
    %p274 = scmp.eq.s32.totalorder %s26, 1
    %p275 = por %p273, %p274
    %p276 = scmp.ne.s32.totalorder %s267, %s268
    %p277 = scmp.eq.s32.totalorder %s26, 0
    %p278 = por %p276, %p277
    %p279 = scmp.ne.s32.totalorder %s267, %s268
    %p280 = scmp.eq.s32.totalorder %s27, 1
    %p281 = por %p279, %p280
    %p283 = scmp.ne.s32.totalorder %s268, %s282
    %p284 = scmp.eq.s32.totalorder %s27, 0
    %p285 = por %p283, %p284
    %s287 = sadd.s32 %s286, 1
    %p290 = scmp.eq.s32.totalorder %s21, 1
    %p291 = scmp.ne.s32.totalorder %s286, %s288
    %p292 = scmp.eq.s32.totalorder %s21, 0
    %p293 = por %p291, %p292
    %p294 = scmp.ne.s32.totalorder %s286, %s288
    %p295 = scmp.eq.s32.totalorder %s26, 1
    %p296 = por %p294, %p295
    %p297 = scmp.ne.s32.totalorder %s288, %s289
    %p298 = scmp.eq.s32.totalorder %s26, 0
    %p299 = por %p297, %p298
    %p300 = scmp.ne.s32.totalorder %s288, %s289
    %p301 = scmp.eq.s32.totalorder %s27, 1
    %p302 = por %p300, %p301
    %p304 = scmp.ne.s32.totalorder %s289, %s303
    %p305 = scmp.eq.s32.totalorder %s27, 0
    %p306 = por %p304, %p305
    %s307 = ssub.s32 %s21, %s28
    %p308 = scmp.eq.s32.totalorder %s307, 0
    %s310 = sadd.s32 %s309, 1
    %s311 = scalar_select %p308, %s309, %s310
    %p314 = pneg %p308
    %p315 = scmp.eq.s32.totalorder %s21, 1
    %p316 = por %p314, %p315
    %p317 = scmp.ne.s32.totalorder %s309, %s312
    %p318 = scmp.eq.s32.totalorder %s21, 0
    %p319 = por %p317, %p318
    %p320 = scmp.ne.s32.totalorder %s309, %s312
    %p321 = scmp.eq.s32.totalorder %s26, 1
    %p322 = por %p320, %p321
    %p323 = scmp.ne.s32.totalorder %s312, %s313
    %p324 = scmp.eq.s32.totalorder %s26, 0
    %p325 = por %p323, %p324
    %p326 = scmp.ne.s32.totalorder %s312, %s313
    %p327 = scmp.eq.s32.totalorder %s27, 1
    %p328 = por %p326, %p327
    %p330 = scmp.ne.s32.totalorder %s313, %s329
    %p331 = scmp.eq.s32.totalorder %s27, 0
    %p332 = por %p330, %p331
    %p333 = scmp.le.s32.totalorder 1, %s21
    %p334 = scmp.lt.s32.totalorder %s21, 3
    %p335 = pnand %p333, %p334
    %p336 = pneg %p335
    // Predicated region
    $region9: #{discriminator_forward.1} parent=5 // pred_check
      _
    $region10: #{discriminator_forward.1} parent=5 // pred_check_branch
      %338 = sbr.rel (%p335) target = $region12
    $region11: #{discriminator_forward.1} parent=5 // pred_region
      %s339 = ssub.s32 %s21, 1
      // Predicated region
      $region13: #{discriminator_forward.1} parent=11 // pred_check
        %p340 = pneg %p68
      $region14: #{discriminator_forward.1} parent=11 // pred_check_branch
        %342 = sbr.rel (%p340) target = $region16
      $region15: #{discriminator_forward.1} parent=11 // pred_region
        _
      $region16: #{discriminator_forward.1} parent=11 // pred_fallthru
        _
      // Predicated region
      $region17: #{discriminator_forward.1} parent=11 // pred_check
        %p343 = pneg %p89
      $region18: #{discriminator_forward.1} parent=11 // pred_check_branch
        %345 = sbr.rel (%p343) target = $region20
      $region19: #{discriminator_forward.1} parent=11 // pred_region
        _
      $region20: #{discriminator_forward.1} parent=11 // pred_fallthru
        _
      // Predicated region
      $region21: #{discriminator_forward.1} parent=11 // pred_check
        %p346 = pneg %p110
      $region22: #{discriminator_forward.1} parent=11 // pred_check_branch
        %348 = sbr.rel (%p346) target = $region24
      $region23: #{discriminator_forward.1} parent=11 // pred_region
        _
      $region24: #{discriminator_forward.1} parent=11 // pred_fallthru
        _
      // Predicated region
      $region25: #{discriminator_forward.1} parent=11 // pred_check
        %p349 = pneg %p131
      $region26: #{discriminator_forward.1} parent=11 // pred_check_branch
        %351 = sbr.rel (%p349) target = $region28
      $region27: #{discriminator_forward.1} parent=11 // pred_region
        _
      $region28: #{discriminator_forward.1} parent=11 // pred_fallthru
        _
      // Predicated region
      $region29: #{discriminator_forward.1} parent=11 // pred_check
        %p352 = pneg %p152
      $region30: #{discriminator_forward.1} parent=11 // pred_check_branch
        %354 = sbr.rel (%p352) target = $region32
      $region31: #{discriminator_forward.1} parent=11 // pred_region
        _
      $region32: #{discriminator_forward.1} parent=11 // pred_fallthru
        _
      // Predicated region
      $region33: #{discriminator_forward.1} parent=11 // pred_check
        %p355 = pneg %p173
      $region34: #{discriminator_forward.1} parent=11 // pred_check_branch
        %357 = sbr.rel (%p355) target = $region36
      $region35: #{discriminator_forward.1} parent=11 // pred_region
        _
      $region36: #{discriminator_forward.1} parent=11 // pred_fallthru
        _
      // Predicated region
      $region37: #{discriminator_forward.1} parent=11 // pred_check
        %p358 = pneg %p194
      $region38: #{discriminator_forward.1} parent=11 // pred_check_branch
        %360 = sbr.rel (%p358) target = $region40
      $region39: #{discriminator_forward.1} parent=11 // pred_region
        _
      $region40: #{discriminator_forward.1} parent=11 // pred_fallthru
        _
      // Predicated region
      $region41: #{discriminator_forward.1} parent=11 // pred_check
        %p361 = pneg %p215
      $region42: #{discriminator_forward.1} parent=11 // pred_check_branch
        %363 = sbr.rel (%p361) target = $region44
      $region43: #{discriminator_forward.1} parent=11 // pred_region
        _
      $region44: #{discriminator_forward.1} parent=11 // pred_fallthru
        _
      // Predicated region
      $region45: #{discriminator_forward.1} parent=11 // pred_check
        %p364 = pneg %p236
      $region46: #{discriminator_forward.1} parent=11 // pred_check_branch
        %366 = sbr.rel (%p364) target = $region48
      $region47: #{discriminator_forward.1} parent=11 // pred_region
        _
      $region48: #{discriminator_forward.1} parent=11 // pred_fallthru
        _
      // Predicated region
      $region49: #{discriminator_forward.1} parent=11 // pred_check
        %p367 = pneg %p257
      $region50: #{discriminator_forward.1} parent=11 // pred_check_branch
        %369 = sbr.rel (%p367) target = $region52
      $region51: #{discriminator_forward.1} parent=11 // pred_region
        _
      $region52: #{discriminator_forward.1} parent=11 // pred_fallthru
        _
      // Predicated region
      $region53: #{discriminator_forward.1} parent=11 // pred_check
        %p370 = pneg %p278
      $region54: #{discriminator_forward.1} parent=11 // pred_check_branch
        %372 = sbr.rel (%p370) target = $region56
      $region55: #{discriminator_forward.1} parent=11 // pred_region
        _
      $region56: #{discriminator_forward.1} parent=11 // pred_fallthru
        _
      // Predicated region
      $region57: #{discriminator_forward.1} parent=11 // pred_check
        %p373 = pneg %p299
      $region58: #{discriminator_forward.1} parent=11 // pred_check_branch
        %375 = sbr.rel (%p373) target = $region60
      $region59: #{discriminator_forward.1} parent=11 // pred_region
        _
      $region60: #{discriminator_forward.1} parent=11 // pred_fallthru
        _
    $region12: #{discriminator_forward.1} parent=5 // pred_fallthru
      _
    %p376 = scmp.lt.s32.totalorder %s21, 2
    // Predicated region
    $region61: #{discriminator_forward.1} parent=5 // pred_check
      %p377 = pneg %p376
    $region62: #{discriminator_forward.1} parent=5 // pred_check_branch
      %379 = sbr.rel (%p377) target = $region64
    $region63: #{discriminator_forward.1} parent=5 // pred_region
      // Predicated region
      $region65: #{discriminator_forward.1} parent=63 // pred_check
        %p380 = pneg %p41
      $region66: #{discriminator_forward.1} parent=63 // pred_check_branch
        %382 = sbr.rel (%p380) target = $region68
      $region67: #{discriminator_forward.1} parent=63 // pred_region
        %p383 = scmp.lt.s32.totalorder %s21, 1
        %s384 = scalar_select %p383, %s21, 1
        %s385 = smul.addr %s384, 8
        %s386 = smul.addr %s385, 8
        %s387 = scalar_lea.vmem %s0, %s386
      $region68: #{discriminator_forward.1} parent=63 // pred_fallthru
        _
    $region64: #{discriminator_forward.1} parent=5 // pred_fallthru
      _
    %p388 = scmp.le.s32.totalorder 1, %s21
    %p389 = scmp.lt.s32.totalorder %s21, 3
    %p390 = pnand %p388, %p389
    %p391 = pneg %p390
    // Predicated region
    $region69: #{discriminator_forward.1} parent=5 // pred_check
      _
    $region70: #{discriminator_forward.1} parent=5 // pred_check_branch
      %393 = sbr.rel (%p390) target = $region72
    $region71: #{discriminator_forward.1} parent=5 // pred_region
      %s394 = ssub.s32 %s21, 1
      %p395 = scmp.lt.s32.totalorder %s26, 1
      %s396 = scalar_select %p395, %s26, 1
      %s397 = smul.addr %s396, 8
      %s398 = smul.addr %s397, 8
      %s399 = scalar_lea.vmem %s0, %s398
      %p400 = pneg %p47
      %p401 = pneg %p44
      %p402 = pneg %p68
      %p403 = pneg %p65
      %p404 = pneg %p89
      %p405 = pneg %p86
      %p406 = pneg %p110
      %p407 = pneg %p107
      %p408 = pneg %p131
      %p409 = pneg %p128
      %p410 = pneg %p152
      %p411 = pneg %p149
      %p412 = pneg %p173
      %p413 = pneg %p170
      %p414 = pneg %p194
      %p415 = pneg %p191
      %p416 = pneg %p215
      %p417 = pneg %p212
      %p418 = pneg %p236
      %p419 = pneg %p233
      %p420 = pneg %p257
      %p421 = pneg %p254
      %p422 = pneg %p278
      %p423 = pneg %p275
      %p424 = pneg %p299
      %p425 = pneg %p296
      %p426 = pneg %p325
      %p427 = pneg %p322
      %p428 = scmp.lt.s32.totalorder %s26, 1
      %s429 = scalar_select %p428, %s26, 1
      %s430 = smul.addr %s429, 8
      %s431 = scalar_lea.vmem %s13, %s430
      %p432 = scmp.lt.s32.totalorder %s26, 1
      %s433 = scalar_select %p432, %s26, 1
      %s434 = smul.addr %s433, 8
      %s435 = smul.addr %s434, 8
      %s436 = scalar_lea.vmem %s0, %s435
      %p437 = scmp.lt.s32.totalorder %s26, 1
      %s438 = scalar_select %p437, %s26, 1
      %s439 = smul.addr %s438, 8
      %s440 = scalar_lea.vmem %s13, %s439
      %v441 = vld [vmem:[%s436] sm:$0xff]
      %v442 = vld [vmem:[%s436 + $0x8] sm:$0xff]
      %v443 = vld [vmem:[%s436 + $0x10] sm:$0xff]
      %v444 = vld [vmem:[%s436 + $0x18] sm:$0xff]
      %v445 = vld [vmem:[%s436 + $0x20] sm:$0xff]
      %v446 = vld [vmem:[%s436 + $0x28] sm:$0xff]
      %v447 = vld [vmem:[%s436 + $0x30] sm:$0xff]
      %v448 = vld [vmem:[%s436 + $0x38] sm:$0xff]
      %v449 = vld [vmem:[%s1] sm:$0xff]
      %v450 = vld [vmem:[%s1 + $0x8] sm:$0xff]
      %v451 = vld [vmem:[%s1 + $0x10] sm:$0xff]
      %v452 = vld [vmem:[%s1 + $0x18] sm:$0xff]
      %v453 = vld [vmem:[%s1 + $0x20] sm:$0xff]
      %v454 = vld [vmem:[%s1 + $0x28] sm:$0xff]
      %v455 = vld [vmem:[%s1 + $0x30] sm:$0xff]
      %v456 = vld [vmem:[%s1 + $0x38] sm:$0xff]
      %v457 = vld [vmem:[%s1 + $0x40] sm:$0xff]
      %v458 = vld [vmem:[%s1 + $0x48] sm:$0xff]
      %v459 = vld [vmem:[%s1 + $0x50] sm:$0xff]
      %v460 = vld [vmem:[%s1 + $0x58] sm:$0xff]
      %v461 = vld [vmem:[%s1 + $0x60] sm:$0xff]
      %v462 = vld [vmem:[%s1 + $0x68] sm:$0xff]
      %v463 = vld [vmem:[%s1 + $0x70] sm:$0xff]
      %v464 = vld [vmem:[%s1 + $0x78] sm:$0xff]
      %vm465 = vcmask 523264
      %v467 = vsel %vm465, %v449, 0
      %v470 = vsel %vm465, %v450, 0
      %v473 = vsel %vm465, %v451, 0
      %v476 = vsel %vm465, %v452, 0
      %v479 = vsel %vm465, %v453, 0
      %v482 = vsel %vm465, %v454, 0
      %v485 = vsel %vm465, %v455, 0
      %v488 = vsel %vm465, %v456, 0
      %v491 = vsel %vm465, %v457, 0
      %v494 = vsel %vm465, %v458, 0
      %v497 = vsel %vm465, %v459, 0
      %v500 = vsel %vm465, %v460, 0
      %v503 = vsel %vm465, %v461, 0
      %v506 = vsel %vm465, %v462, 0
      %v509 = vsel %vm465, %v463, 0
      %v512 = vsel %vm465, %v464, 0
      %514 = vmatprep.subr.mxu0 0.0
      %515 = vmatpush1.msra.mxu0 %v441
      %516 = vmatprep.subr.mxu0 0.0
      %517 = vmatpush1.msra.mxu0 %v442
      %518 = vmatprep.subr.mxu0 0.0
      %519 = vmatpush1.msra.mxu0 %v443
      %520 = vmatprep.subr.mxu0 0.0
      %521 = vmatpush1.msra.mxu0 %v444
      %522 = vmatprep.subr.mxu0 0.0
      %523 = vmatpush1.msra.mxu0 %v445
      %524 = vmatprep.subr.mxu0 0.0
      %525 = vmatpush1.msra.mxu0 %v446
      %526 = vmatprep.subr.mxu0 0.0
      %527 = vmatpush1.msra.mxu0 %v447
      %528 = vmatprep.subr.mxu0 0.0
      %529 = vmatpush1.msra.mxu0 %v448
      %530 = vmatprep.subr.mxu0 0.0
      %531 = vmatpush1.msra.mxu0 0.0
      %532 = vmatprep.subr.mxu0 0.0
      %533 = vmatpush1.msra.mxu0 0.0
      %534 = vmatprep.subr.mxu0 0.0
      %535 = vmatpush1.msra.mxu0 0.0
      %536 = vmatprep.subr.mxu0 0.0
      %537 = vmatpush1.msra.mxu0 0.0
      %538 = vmatprep.subr.mxu0 0.0
      %539 = vmatpush1.msra.mxu0 0.0
      %540 = vmatprep.subr.mxu0 0.0
      %541 = vmatpush1.msra.mxu0 0.0
      %542 = vmatprep.subr.mxu0 0.0
      %543 = vmatpush1.msra.mxu0 0.0
      %544 = vmatprep.subr.mxu0 0.0
      %545 = vmatpush1.msra.mxu0 0.0
      %546 = vmatprep.subr.mxu0 0.0
      %547 = vmatpush1.msra.mxu0 0.0
      %548 = vmatprep.subr.mxu0 0.0
      %549 = vmatpush1.msra.mxu0 0.0
      %550 = vmatprep.subr.mxu0 0.0
      %551 = vmatpush1.msra.mxu0 0.0
      %552 = vmatprep.subr.mxu0 0.0
      %553 = vmatpush1.msra.mxu0 0.0
      %554 = vmatprep.subr.mxu0 0.0
      %555 = vmatpush1.msra.mxu0 0.0
      %556 = vmatprep.subr.mxu0 0.0
      %557 = vmatpush1.msra.mxu0 0.0
      %558 = vmatprep.subr.mxu0 0.0
      %559 = vmatpush1.msra.mxu0 0.0
      %560 = vmatprep.subr.mxu0 0.0
      %561 = vmatpush1.msra.mxu0 0.0
      %562 = vmatprep.subr.mxu0 0.0
      %563 = vmatpush1.msra.mxu0 0.0
      %564 = vmatprep.subr.mxu0 0.0
      %565 = vmatpush1.msra.mxu0 0.0
      %566 = vmatprep.subr.mxu0 0.0
      %567 = vmatpush1.msra.mxu0 0.0
      %568 = vmatprep.subr.mxu0 0.0
      %569 = vmatpush1.msra.mxu0 0.0
      %570 = vmatprep.subr.mxu0 0.0
      %571 = vmatpush1.msra.mxu0 0.0
      %572 = vmatprep.subr.mxu0 0.0
      %573 = vmatpush1.msra.mxu0 0.0
      %574 = vmatprep.subr.mxu0 0.0
      %575 = vmatpush1.msra.mxu0 0.0
      %576 = vmatprep.subr.mxu0 0.0
      %577 = vmatpush1.msra.mxu0 0.0
      %578 = vmatprep.mubr.f32.mxu0 0.0
      %579 = vmatmul.mubr.f32.gmra.mrb[0].mxu0 %v467
      %v580 = vpop.f32.mrb[0].mxu0
      %v581 = vadd.f32 0.0, %v580
      %v582 = vpop.f32.mrb[0].mxu0
      %583 = vmatprep.mubr.f32.mxu0 0.0
      %584 = vmatmul.mubr.f32.gmra.mrb[0].mxu0 %v470
      %v585 = vpop.f32.mrb[0].mxu0
      %v586 = vadd.f32 0.0, %v585
      %v587 = vpop.f32.mrb[0].mxu0
      %588 = vmatprep.mubr.f32.mxu0 0.0
      %589 = vmatmul.mubr.f32.gmra.mrb[0].mxu0 %v473
      %v590 = vpop.f32.mrb[0].mxu0
      %v591 = vadd.f32 0.0, %v590
      %v592 = vpop.f32.mrb[0].mxu0
      %593 = vmatprep.mubr.f32.mxu0 0.0
      %594 = vmatmul.mubr.f32.gmra.mrb[0].mxu0 %v476
      %v595 = vpop.f32.mrb[0].mxu0
      %v596 = vadd.f32 0.0, %v595
      %v597 = vpop.f32.mrb[0].mxu0
      %598 = vmatprep.mubr.f32.mxu0 0.0
      %599 = vmatmul.mubr.f32.gmra.mrb[0].mxu0 %v479
      %v600 = vpop.f32.mrb[0].mxu0
      %v601 = vadd.f32 0.0, %v600
      %v602 = vpop.f32.mrb[0].mxu0
      %603 = vmatprep.mubr.f32.mxu0 0.0
      %604 = vmatmul.mubr.f32.gmra.mrb[0].mxu0 %v482
      %v605 = vpop.f32.mrb[0].mxu0
      %v606 = vadd.f32 0.0, %v605
      %v607 = vpop.f32.mrb[0].mxu0
      %608 = vmatprep.mubr.f32.mxu0 0.0
      %609 = vmatmul.mubr.f32.gmra.mrb[0].mxu0 %v485
      %v610 = vpop.f32.mrb[0].mxu0
      %v611 = vadd.f32 0.0, %v610
      %v612 = vpop.f32.mrb[0].mxu0
      %613 = vmatprep.mubr.f32.mxu0 0.0
      %614 = vmatmul.mubr.f32.gmra.mrb[0].mxu0 %v488
      %v615 = vpop.f32.mrb[0].mxu0
      %v616 = vadd.f32 0.0, %v615
      %v617 = vpop.f32.mrb[0].mxu0
      %618 = vmatprep.mubr.f32.mxu0 0.0
      %619 = vmatmul.mubr.f32.gmra.mrb[0].mxu0 %v491
      %v620 = vpop.f32.mrb[0].mxu0
      %v621 = vadd.f32 0.0, %v620
      %v622 = vpop.f32.mrb[0].mxu0
      %623 = vmatprep.mubr.f32.mxu0 0.0
      %624 = vmatmul.mubr.f32.gmra.mrb[0].mxu0 %v494
      %v625 = vpop.f32.mrb[0].mxu0
      %v626 = vadd.f32 0.0, %v625
      %v627 = vpop.f32.mrb[0].mxu0
      %628 = vmatprep.mubr.f32.mxu0 0.0
      %629 = vmatmul.mubr.f32.gmra.mrb[0].mxu0 %v497
      %v630 = vpop.f32.mrb[0].mxu0
      %v631 = vadd.f32 0.0, %v630
      %v632 = vpop.f32.mrb[0].mxu0
      %633 = vmatprep.mubr.f32.mxu0 0.0
      %634 = vmatmul.mubr.f32.gmra.mrb[0].mxu0 %v500
      %v635 = vpop.f32.mrb[0].mxu0
      %v636 = vadd.f32 0.0, %v635
      %v637 = vpop.f32.mrb[0].mxu0
      %638 = vmatprep.mubr.f32.mxu0 0.0
      %639 = vmatmul.mubr.f32.gmra.mrb[0].mxu0 %v503
      %v640 = vpop.f32.mrb[0].mxu0
      %v641 = vadd.f32 0.0, %v640
      %v642 = vpop.f32.mrb[0].mxu0
      %643 = vmatprep.mubr.f32.mxu0 0.0
      %644 = vmatmul.mubr.f32.gmra.mrb[0].mxu0 %v506
      %v645 = vpop.f32.mrb[0].mxu0
      %v646 = vadd.f32 0.0, %v645
      %v647 = vpop.f32.mrb[0].mxu0
      %648 = vmatprep.mubr.f32.mxu0 0.0
      %649 = vmatmul.mubr.f32.gmra.mrb[0].mxu0 %v509
      %v650 = vpop.f32.mrb[0].mxu0
      %v651 = vadd.f32 0.0, %v650
      %v652 = vpop.f32.mrb[0].mxu0
      %653 = vmatprep.mubr.f32.mxu0 0.0
      %654 = vmatmul.mubr.f32.gmra.mrb[0].mxu0 %v512
      %v655 = vpop.f32.mrb[0].mxu0
      %v656 = vadd.f32 0.0, %v655
      %v657 = vpop.f32.mrb[0].mxu0
      %658 = vdwg.mxu0
      %v659 = vld [vmem:[%s2] sm:$0xf]
      %s660 = scalar_lea.vmem %s2, 4
      %v661 = vld [vmem:[%s660] sm:$0xf]
      %vm662 = vcmask 31744
      %v664 = vsel %vm662, %v601, 0
      %v667 = vsel %vm662, %v606, 0
      %v670 = vsel %vm662, %v611, 0
      %v673 = vsel %vm662, %v616, 0
      %vm675 = vcmask 1043456
      %v677 = vsel %vm675, %v661, 0
      %679 = vmatprep.subr.mxu0 0.0
      %680 = vmatpush1.msra.mxu0 %v677
      %681 = vmatprep.subr.mxu0 0.0
      %682 = vmatpush1.msra.mxu0 0.0
      %683 = vmatprep.subr.mxu0 0.0
      %684 = vmatpush1.msra.mxu0 0.0
      %685 = vmatprep.subr.mxu0 0.0
      %686 = vmatpush1.msra.mxu0 0.0
      %687 = vmatprep.subr.mxu0 0.0
      %688 = vmatpush1.msra.mxu0 0.0
      %689 = vmatprep.subr.mxu0 0.0
      %690 = vmatpush1.msra.mxu0 0.0
      %691 = vmatprep.subr.mxu0 0.0
      %692 = vmatpush1.msra.mxu0 0.0
      %693 = vmatprep.subr.mxu0 0.0
      %694 = vmatpush1.msra.mxu0 0.0
      %695 = vmatprep.subr.mxu0 0.0
      %696 = vmatpush1.msra.mxu0 0.0
      %697 = vmatprep.subr.mxu0 0.0
      %698 = vmatpush1.msra.mxu0 0.0
      %699 = vmatprep.subr.mxu0 0.0
      %700 = vmatpush1.msra.mxu0 0.0
      %701 = vmatprep.subr.mxu0 0.0
      %702 = vmatpush1.msra.mxu0 0.0
      %703 = vmatprep.subr.mxu0 0.0
      %704 = vmatpush1.msra.mxu0 0.0
      %705 = vmatprep.subr.mxu0 0.0
      %706 = vmatpush1.msra.mxu0 0.0
      %707 = vmatprep.subr.mxu0 0.0
      %708 = vmatpush1.msra.mxu0 0.0
      %709 = vmatprep.subr.mxu0 0.0
      %710 = vmatpush1.msra.mxu0 0.0
      %711 = vmatprep.subr.mxu0 0.0
      %712 = vmatpush1.msra.mxu0 0.0
      %713 = vmatprep.subr.mxu0 0.0
      %714 = vmatpush1.msra.mxu0 0.0
      %715 = vmatprep.subr.mxu0 0.0
      %716 = vmatpush1.msra.mxu0 0.0
      %717 = vmatprep.subr.mxu0 0.0
      %718 = vmatpush1.msra.mxu0 0.0
      %719 = vmatprep.subr.mxu0 0.0
      %720 = vmatpush1.msra.mxu0 0.0
      %721 = vmatprep.subr.mxu0 0.0
      %722 = vmatpush1.msra.mxu0 0.0
      %723 = vmatprep.subr.mxu0 0.0
      %724 = vmatpush1.msra.mxu0 0.0
      %725 = vmatprep.subr.mxu0 0.0
      %726 = vmatpush1.msra.mxu0 0.0
      %727 = vmatprep.subr.mxu0 0.0
      %728 = vmatpush1.msra.mxu0 0.0
      %729 = vmatprep.subr.mxu0 0.0
      %730 = vmatpush1.msra.mxu0 0.0
      %731 = vmatprep.subr.mxu0 0.0
      %732 = vmatpush1.msra.mxu0 0.0
      %733 = vmatprep.subr.mxu0 0.0
      %734 = vmatpush1.msra.mxu0 0.0
      %735 = vmatprep.subr.mxu0 0.0
      %736 = vmatpush1.msra.mxu0 0.0
      %737 = vmatprep.subr.mxu0 0.0
      %738 = vmatpush1.msra.mxu0 0.0
      %739 = vmatprep.subr.mxu0 0.0
      %740 = vmatpush1.msra.mxu0 0.0
      %741 = vmatprep.subr.mxu0 0.0
      %742 = vmatpush1.msra.mxu0 0.0
      %743 = vmatprep.mubr.f32.mxu0 0.0
      %744 = vmatmul.mubr.f32.gmra.mrb[0].mxu0 %v664
      %v745 = vpop.f32.mrb[0].mxu0
      %v746 = vadd.f32 0.0, %v745
      %v747 = vpop.f32.mrb[0].mxu0
      %748 = vmatprep.mubr.f32.mxu0 0.0
      %749 = vmatmul.mubr.f32.gmra.mrb[0].mxu0 %v667
      %v750 = vpop.f32.mrb[0].mxu0
      %v751 = vadd.f32 0.0, %v750
      %v752 = vpop.f32.mrb[0].mxu0
      %753 = vmatprep.mubr.f32.mxu0 0.0
      %754 = vmatmul.mubr.f32.gmra.mrb[0].mxu0 %v670
      %v755 = vpop.f32.mrb[0].mxu0
      %v756 = vadd.f32 0.0, %v755
      %v757 = vpop.f32.mrb[0].mxu0
      %758 = vmatprep.mubr.f32.mxu0 0.0
      %759 = vmatmul.mubr.f32.gmra.mrb[0].mxu0 %v673
      %v760 = vpop.f32.mrb[0].mxu0
      %v761 = vadd.f32 0.0, %v760
      %v762 = vpop.f32.mrb[0].mxu0
      %763 = vdwg.mxu0
      %v765 = vsel %vm662, %v581, 0
      %v768 = vsel %vm662, %v586, 0
      %v771 = vsel %vm662, %v591, 0
      %v774 = vsel %vm662, %v596, 0
      %v777 = vsel %vm675, %v659, 0
      %779 = vmatprep.subr.mxu0 0.0
      %780 = vmatpush1.msra.mxu0 %v777
      %781 = vmatprep.subr.mxu0 0.0
      %782 = vmatpush1.msra.mxu0 0.0
      %783 = vmatprep.subr.mxu0 0.0
      %784 = vmatpush1.msra.mxu0 0.0
      %785 = vmatprep.subr.mxu0 0.0
      %786 = vmatpush1.msra.mxu0 0.0
      %787 = vmatprep.subr.mxu0 0.0
      %788 = vmatpush1.msra.mxu0 0.0
      %789 = vmatprep.subr.mxu0 0.0
      %790 = vmatpush1.msra.mxu0 0.0
      %791 = vmatprep.subr.mxu0 0.0
      %792 = vmatpush1.msra.mxu0 0.0
      %793 = vmatprep.subr.mxu0 0.0
      %794 = vmatpush1.msra.mxu0 0.0
      %795 = vmatprep.subr.mxu0 0.0
      %796 = vmatpush1.msra.mxu0 0.0
      %797 = vmatprep.subr.mxu0 0.0
      %798 = vmatpush1.msra.mxu0 0.0
      %799 = vmatprep.subr.mxu0 0.0
      %800 = vmatpush1.msra.mxu0 0.0
      %801 = vmatprep.subr.mxu0 0.0
      %802 = vmatpush1.msra.mxu0 0.0
      %803 = vmatprep.subr.mxu0 0.0
      %804 = vmatpush1.msra.mxu0 0.0
      %805 = vmatprep.subr.mxu0 0.0
      %806 = vmatpush1.msra.mxu0 0.0
      %807 = vmatprep.subr.mxu0 0.0
      %808 = vmatpush1.msra.mxu0 0.0
      %809 = vmatprep.subr.mxu0 0.0
      %810 = vmatpush1.msra.mxu0 0.0
      %811 = vmatprep.subr.mxu0 0.0
      %812 = vmatpush1.msra.mxu0 0.0
      %813 = vmatprep.subr.mxu0 0.0
      %814 = vmatpush1.msra.mxu0 0.0
      %815 = vmatprep.subr.mxu0 0.0
      %816 = vmatpush1.msra.mxu0 0.0
      %817 = vmatprep.subr.mxu0 0.0
      %818 = vmatpush1.msra.mxu0 0.0
      %819 = vmatprep.subr.mxu0 0.0
      %820 = vmatpush1.msra.mxu0 0.0
      %821 = vmatprep.subr.mxu0 0.0
      %822 = vmatpush1.msra.mxu0 0.0
      %823 = vmatprep.subr.mxu0 0.0
      %824 = vmatpush1.msra.mxu0 0.0
      %825 = vmatprep.subr.mxu0 0.0
      %826 = vmatpush1.msra.mxu0 0.0
      %827 = vmatprep.subr.mxu0 0.0
      %828 = vmatpush1.msra.mxu0 0.0
      %829 = vmatprep.subr.mxu0 0.0
      %830 = vmatpush1.msra.mxu0 0.0
      %831 = vmatprep.subr.mxu0 0.0
      %832 = vmatpush1.msra.mxu0 0.0
      %833 = vmatprep.subr.mxu0 0.0
      %834 = vmatpush1.msra.mxu0 0.0
      %835 = vmatprep.subr.mxu0 0.0
      %836 = vmatpush1.msra.mxu0 0.0
      %837 = vmatprep.subr.mxu0 0.0
      %838 = vmatpush1.msra.mxu0 0.0
      %839 = vmatprep.subr.mxu0 0.0
      %840 = vmatpush1.msra.mxu0 0.0
      %841 = vmatprep.subr.mxu0 0.0
      %842 = vmatpush1.msra.mxu0 0.0
      %843 = vmatprep.mubr.f32.mxu0 0.0
      %844 = vmatmul.mubr.f32.gmra.mrb[0].mxu0 %v765
      %v845 = vpop.f32.mrb[0].mxu0
      %v846 = vadd.f32 %v746, %v845
      %v847 = vpop.f32.mrb[0].mxu0
      %848 = vmatprep.mubr.f32.mxu0 0.0
      %849 = vmatmul.mubr.f32.gmra.mrb[0].mxu0 %v768
      %v850 = vpop.f32.mrb[0].mxu0
      %v851 = vadd.f32 %v751, %v850
      %v852 = vpop.f32.mrb[0].mxu0
      %853 = vmatprep.mubr.f32.mxu0 0.0
      %854 = vmatmul.mubr.f32.gmra.mrb[0].mxu0 %v771
      %v855 = vpop.f32.mrb[0].mxu0
      %v856 = vadd.f32 %v756, %v855
      %v857 = vpop.f32.mrb[0].mxu0
      %858 = vmatprep.mubr.f32.mxu0 0.0
      %859 = vmatmul.mubr.f32.gmra.mrb[0].mxu0 %v774
      %v860 = vpop.f32.mrb[0].mxu0
      %v861 = vadd.f32 %v761, %v860
      %v862 = vpop.f32.mrb[0].mxu0
      %863 = vdwg.mxu0
      %s864 = scalar_lea.vmem %s2, 8
      %v865 = vld [vmem:[%s864] sm:$0xf]
      %v867 = vsel %vm662, %v621, 0
      %v870 = vsel %vm662, %v626, 0
      %v873 = vsel %vm662, %v631, 0
      %v876 = vsel %vm662, %v636, 0
      %v879 = vsel %vm675, %v865, 0
      %881 = vmatprep.subr.mxu0 0.0
      %882 = vmatpush1.msra.mxu0 %v879
      %883 = vmatprep.subr.mxu0 0.0
      %884 = vmatpush1.msra.mxu0 0.0
      %885 = vmatprep.subr.mxu0 0.0
      %886 = vmatpush1.msra.mxu0 0.0
      %887 = vmatprep.subr.mxu0 0.0
      %888 = vmatpush1.msra.mxu0 0.0
      %889 = vmatprep.subr.mxu0 0.0
      %890 = vmatpush1.msra.mxu0 0.0
      %891 = vmatprep.subr.mxu0 0.0
      %892 = vmatpush1.msra.mxu0 0.0
      %893 = vmatprep.subr.mxu0 0.0
      %894 = vmatpush1.msra.mxu0 0.0
      %895 = vmatprep.subr.mxu0 0.0
      %896 = vmatpush1.msra.mxu0 0.0
      %897 = vmatprep.subr.mxu0 0.0
      %898 = vmatpush1.msra.mxu0 0.0
      %899 = vmatprep.subr.mxu0 0.0
      %900 = vmatpush1.msra.mxu0 0.0
      %901 = vmatprep.subr.mxu0 0.0
      %902 = vmatpush1.msra.mxu0 0.0
      %903 = vmatprep.subr.mxu0 0.0
      %904 = vmatpush1.msra.mxu0 0.0
      %905 = vmatprep.subr.mxu0 0.0
      %906 = vmatpush1.msra.mxu0 0.0
      %907 = vmatprep.subr.mxu0 0.0
      %908 = vmatpush1.msra.mxu0 0.0
      %909 = vmatprep.subr.mxu0 0.0
      %910 = vmatpush1.msra.mxu0 0.0
      %911 = vmatprep.subr.mxu0 0.0
      %912 = vmatpush1.msra.mxu0 0.0
      %913 = vmatprep.subr.mxu0 0.0
      %914 = vmatpush1.msra.mxu0 0.0
      %915 = vmatprep.subr.mxu0 0.0
      %916 = vmatpush1.msra.mxu0 0.0
      %917 = vmatprep.subr.mxu0 0.0
      %918 = vmatpush1.msra.mxu0 0.0
      %919 = vmatprep.subr.mxu0 0.0
      %920 = vmatpush1.msra.mxu0 0.0
      %921 = vmatprep.subr.mxu0 0.0
      %922 = vmatpush1.msra.mxu0 0.0
      %923 = vmatprep.subr.mxu0 0.0
      %924 = vmatpush1.msra.mxu0 0.0
      %925 = vmatprep.subr.mxu0 0.0
      %926 = vmatpush1.msra.mxu0 0.0
      %927 = vmatprep.subr.mxu0 0.0
      %928 = vmatpush1.msra.mxu0 0.0
      %929 = vmatprep.subr.mxu0 0.0
      %930 = vmatpush1.msra.mxu0 0.0
      %931 = vmatprep.subr.mxu0 0.0
      %932 = vmatpush1.msra.mxu0 0.0
      %933 = vmatprep.subr.mxu0 0.0
      %934 = vmatpush1.msra.mxu0 0.0
      %935 = vmatprep.subr.mxu0 0.0
      %936 = vmatpush1.msra.mxu0 0.0
      %937 = vmatprep.subr.mxu0 0.0
      %938 = vmatpush1.msra.mxu0 0.0
      %939 = vmatprep.subr.mxu0 0.0
      %940 = vmatpush1.msra.mxu0 0.0
      %941 = vmatprep.subr.mxu0 0.0
      %942 = vmatpush1.msra.mxu0 0.0
      %943 = vmatprep.subr.mxu0 0.0
      %944 = vmatpush1.msra.mxu0 0.0
      %945 = vmatprep.mubr.f32.mxu0 0.0
      %946 = vmatmul.mubr.f32.gmra.mrb[0].mxu0 %v867
      %v947 = vpop.f32.mrb[0].mxu0
      %v948 = vadd.f32 0.0, %v947
      %v949 = vpop.f32.mrb[0].mxu0
      %950 = vmatprep.mubr.f32.mxu0 0.0
      %951 = vmatmul.mubr.f32.gmra.mrb[0].mxu0 %v870
      %v952 = vpop.f32.mrb[0].mxu0
      %v953 = vadd.f32 0.0, %v952
      %v954 = vpop.f32.mrb[0].mxu0
      %955 = vmatprep.mubr.f32.mxu0 0.0
      %956 = vmatmul.mubr.f32.gmra.mrb[0].mxu0 %v873
      %v957 = vpop.f32.mrb[0].mxu0
      %v958 = vadd.f32 0.0, %v957
      %v959 = vpop.f32.mrb[0].mxu0
      %960 = vmatprep.mubr.f32.mxu0 0.0
      %961 = vmatmul.mubr.f32.gmra.mrb[0].mxu0 %v876
      %v962 = vpop.f32.mrb[0].mxu0
      %v963 = vadd.f32 0.0, %v962
      %v964 = vpop.f32.mrb[0].mxu0
      %965 = vdwg.mxu0
      %v966 = vadd.f32 %v846, %v948
      %v967 = vadd.f32 %v851, %v953
      %v968 = vadd.f32 %v856, %v958
      %v969 = vadd.f32 %v861, %v963
      %s970 = scalar_lea.vmem %s2, 12
      %v971 = vld [vmem:[%s970] sm:$0xf]
      %v973 = vsel %vm662, %v641, 0
      %v976 = vsel %vm662, %v646, 0
      %v979 = vsel %vm662, %v651, 0
      %v982 = vsel %vm662, %v656, 0
      %v985 = vsel %vm675, %v971, 0
      %987 = vmatprep.subr.mxu0 0.0
      %988 = vmatpush1.msra.mxu0 %v985
      %989 = vmatprep.subr.mxu0 0.0
      %990 = vmatpush1.msra.mxu0 0.0
      %991 = vmatprep.subr.mxu0 0.0
      %992 = vmatpush1.msra.mxu0 0.0
      %993 = vmatprep.subr.mxu0 0.0
      %994 = vmatpush1.msra.mxu0 0.0
      %995 = vmatprep.subr.mxu0 0.0
      %996 = vmatpush1.msra.mxu0 0.0
      %997 = vmatprep.subr.mxu0 0.0
      %998 = vmatpush1.msra.mxu0 0.0
      %999 = vmatprep.subr.mxu0 0.0
      %1000 = vmatpush1.msra.mxu0 0.0
      %1001 = vmatprep.subr.mxu0 0.0
      %1002 = vmatpush1.msra.mxu0 0.0
      %1003 = vmatprep.subr.mxu0 0.0
      %1004 = vmatpush1.msra.mxu0 0.0
      %1005 = vmatprep.subr.mxu0 0.0
      %1006 = vmatpush1.msra.mxu0 0.0
      %1007 = vmatprep.subr.mxu0 0.0
      %1008 = vmatpush1.msra.mxu0 0.0
      %1009 = vmatprep.subr.mxu0 0.0
      %1010 = vmatpush1.msra.mxu0 0.0
      %1011 = vmatprep.subr.mxu0 0.0
      %1012 = vmatpush1.msra.mxu0 0.0
      %1013 = vmatprep.subr.mxu0 0.0
      %1014 = vmatpush1.msra.mxu0 0.0
      %1015 = vmatprep.subr.mxu0 0.0
      %1016 = vmatpush1.msra.mxu0 0.0
      %1017 = vmatprep.subr.mxu0 0.0
      %1018 = vmatpush1.msra.mxu0 0.0
      %1019 = vmatprep.subr.mxu0 0.0
      %1020 = vmatpush1.msra.mxu0 0.0
      %1021 = vmatprep.subr.mxu0 0.0
      %1022 = vmatpush1.msra.mxu0 0.0
      %1023 = vmatprep.subr.mxu0 0.0
      %1024 = vmatpush1.msra.mxu0 0.0
      %1025 = vmatprep.subr.mxu0 0.0
      %1026 = vmatpush1.msra.mxu0 0.0
      %1027 = vmatprep.subr.mxu0 0.0
      %1028 = vmatpush1.msra.mxu0 0.0
      %1029 = vmatprep.subr.mxu0 0.0
      %1030 = vmatpush1.msra.mxu0 0.0
      %1031 = vmatprep.subr.mxu0 0.0
      %1032 = vmatpush1.msra.mxu0 0.0
      %1033 = vmatprep.subr.mxu0 0.0
      %1034 = vmatpush1.msra.mxu0 0.0
      %1035 = vmatprep.subr.mxu0 0.0
      %1036 = vmatpush1.msra.mxu0 0.0
      %1037 = vmatprep.subr.mxu0 0.0
      %1038 = vmatpush1.msra.mxu0 0.0
      %1039 = vmatprep.subr.mxu0 0.0
      %1040 = vmatpush1.msra.mxu0 0.0
      %1041 = vmatprep.subr.mxu0 0.0
      %1042 = vmatpush1.msra.mxu0 0.0
      %1043 = vmatprep.subr.mxu0 0.0
      %1044 = vmatpush1.msra.mxu0 0.0
      %1045 = vmatprep.subr.mxu0 0.0
      %1046 = vmatpush1.msra.mxu0 0.0
      %1047 = vmatprep.subr.mxu0 0.0
      %1048 = vmatpush1.msra.mxu0 0.0
      %1049 = vmatprep.subr.mxu0 0.0
      %1050 = vmatpush1.msra.mxu0 0.0
      %1051 = vmatprep.mubr.f32.mxu0 0.0
      %1052 = vmatmul.mubr.f32.gmra.mrb[0].mxu0 %v973
      %v1053 = vpop.f32.mrb[0].mxu0
      %v1054 = vadd.f32 0.0, %v1053
      %v1055 = vpop.f32.mrb[0].mxu0
      %1056 = vmatprep.mubr.f32.mxu0 0.0
      %1057 = vmatmul.mubr.f32.gmra.mrb[0].mxu0 %v976
      %v1058 = vpop.f32.mrb[0].mxu0
      %v1059 = vadd.f32 0.0, %v1058
      %v1060 = vpop.f32.mrb[0].mxu0
      %1061 = vmatprep.mubr.f32.mxu0 0.0
      %1062 = vmatmul.mubr.f32.gmra.mrb[0].mxu0 %v979
      %v1063 = vpop.f32.mrb[0].mxu0
      %v1064 = vadd.f32 0.0, %v1063
      %v1065 = vpop.f32.mrb[0].mxu0
      %1066 = vmatprep.mubr.f32.mxu0 0.0
      %1067 = vmatmul.mubr.f32.gmra.mrb[0].mxu0 %v982
      %v1068 = vpop.f32.mrb[0].mxu0
      %v1069 = vadd.f32 0.0, %v1068
      %v1070 = vpop.f32.mrb[0].mxu0
      %1071 = vdwg.mxu0
      %v1072 = vadd.f32 %v966, %v1054
      %v1073 = vadd.f32 %v967, %v1059
      %v1074 = vadd.f32 %v968, %v1064
      %v1075 = vadd.f32 %v969, %v1069
      %v1076 = vld [vmem:[%s3] sm:$0x1]
      %v1078 = vlaneseq
      %v1079 = vshrl.u32 %v1078, 7
      %v1080 = vsub.s32 0, %v1079
      %v1081 = vrot.slane %v1076, %v1080
      %v1083 = vadd.f32 %v1072, %v1081
      %v1084 = vadd.f32 %v1073, %v1081
      %v1085 = vadd.f32 %v1074, %v1081
      %v1086 = vadd.f32 %v1075, %v1081
      %v1087 = vmul.f32 %v1083, 0.2
      %v1088 = vmul.f32 %v1084, 0.2
      %v1089 = vmul.f32 %v1085, 0.2
      %v1090 = vmul.f32 %v1086, 0.2
      %v1091 = vmax.f32 %v1083, %v1087
      %v1092 = vmax.f32 %v1084, %v1088
      %v1093 = vmax.f32 %v1085, %v1089
      %v1094 = vmax.f32 %v1086, %v1090
      %v1095 = vld [vmem:[%s4] sm:$0xff]
      %v1096 = vld [vmem:[%s4 + $0x8] sm:$0xff]
      %v1097 = vld [vmem:[%s4 + $0x10] sm:$0xff]
      %v1098 = vld [vmem:[%s4 + $0x18] sm:$0xff]
      %v1099 = vld [vmem:[%s4 + $0x20] sm:$0xff]
      %v1100 = vld [vmem:[%s4 + $0x28] sm:$0xff]
      %v1101 = vld [vmem:[%s4 + $0x30] sm:$0xff]
      %v1102 = vld [vmem:[%s4 + $0x38] sm:$0xff]
      %vm1103 = vcmask 261120
      %v1105 = vsel %vm1103, %v1095, 0
      %v1108 = vsel %vm1103, %v1096, 0
      %v1111 = vsel %vm1103, %v1097, 0
      %v1114 = vsel %vm1103, %v1098, 0
      %v1117 = vsel %vm1103, %v1099, 0
      %v1120 = vsel %vm1103, %v1100, 0
      %v1123 = vsel %vm1103, %v1101, 0
      %v1126 = vsel %vm1103, %v1102, 0
      %1128 = vmatprep.subr.mxu0 0.0
      %1129 = vmatpush1.msra.mxu0 %v1091
      %1130 = vmatprep.subr.mxu0 0.0
      %1131 = vmatpush1.msra.mxu0 %v1092
      %1132 = vmatprep.subr.mxu0 0.0
      %1133 = vmatpush1.msra.mxu0 %v1093
      %1134 = vmatprep.subr.mxu0 0.0
      %1135 = vmatpush1.msra.mxu0 %v1094
      %1136 = vmatprep.subr.mxu0 0.0
      %1137 = vmatpush1.msra.mxu0 0.0
      %1138 = vmatprep.subr.mxu0 0.0
      %1139 = vmatpush1.msra.mxu0 0.0
      %1140 = vmatprep.subr.mxu0 0.0
      %1141 = vmatpush1.msra.mxu0 0.0
      %1142 = vmatprep.subr.mxu0 0.0
      %1143 = vmatpush1.msra.mxu0 0.0
      %1144 = vmatprep.subr.mxu0 0.0
      %1145 = vmatpush1.msra.mxu0 0.0
      %1146 = vmatprep.subr.mxu0 0.0
      %1147 = vmatpush1.msra.mxu0 0.0
      %1148 = vmatprep.subr.mxu0 0.0
      %1149 = vmatpush1.msra.mxu0 0.0
      %1150 = vmatprep.subr.mxu0 0.0
      %1151 = vmatpush1.msra.mxu0 0.0
      %1152 = vmatprep.subr.mxu0 0.0
      %1153 = vmatpush1.msra.mxu0 0.0
      %1154 = vmatprep.subr.mxu0 0.0
      %1155 = vmatpush1.msra.mxu0 0.0
      %1156 = vmatprep.subr.mxu0 0.0
      %1157 = vmatpush1.msra.mxu0 0.0
      %1158 = vmatprep.subr.mxu0 0.0
      %1159 = vmatpush1.msra.mxu0 0.0
      %1160 = vmatprep.subr.mxu0 0.0
      %1161 = vmatpush1.msra.mxu0 0.0
      %1162 = vmatprep.subr.mxu0 0.0
      %1163 = vmatpush1.msra.mxu0 0.0
      %1164 = vmatprep.subr.mxu0 0.0
      %1165 = vmatpush1.msra.mxu0 0.0
      %1166 = vmatprep.subr.mxu0 0.0
      %1167 = vmatpush1.msra.mxu0 0.0
      %1168 = vmatprep.subr.mxu0 0.0
      %1169 = vmatpush1.msra.mxu0 0.0
      %1170 = vmatprep.subr.mxu0 0.0
      %1171 = vmatpush1.msra.mxu0 0.0
      %1172 = vmatprep.subr.mxu0 0.0
      %1173 = vmatpush1.msra.mxu0 0.0
      %1174 = vmatprep.subr.mxu0 0.0
      %1175 = vmatpush1.msra.mxu0 0.0
      %1176 = vmatprep.subr.mxu0 0.0
      %1177 = vmatpush1.msra.mxu0 0.0
      %1178 = vmatprep.subr.mxu0 0.0
      %1179 = vmatpush1.msra.mxu0 0.0
      %1180 = vmatprep.subr.mxu0 0.0
      %1181 = vmatpush1.msra.mxu0 0.0
      %1182 = vmatprep.subr.mxu0 0.0
      %1183 = vmatpush1.msra.mxu0 0.0
      %1184 = vmatprep.subr.mxu0 0.0
      %1185 = vmatpush1.msra.mxu0 0.0
      %1186 = vmatprep.subr.mxu0 0.0
      %1187 = vmatpush1.msra.mxu0 0.0
      %1188 = vmatprep.subr.mxu0 0.0
      %1189 = vmatpush1.msra.mxu0 0.0
      %1190 = vmatprep.subr.mxu0 0.0
      %1191 = vmatpush1.msra.mxu0 0.0
      %1192 = vmatprep.mubr.f32.mxu0 0.0
      %1193 = vmatmul.mubr.f32.gmra.mrb[0].mxu0 %v1105
      %v1194 = vpop.f32.mrb[0].mxu0
      %v1195 = vadd.f32 0.0, %v1194
      %v1196 = vpop.f32.mrb[0].mxu0
      %1197 = vmatprep.mubr.f32.mxu0 0.0
      %1198 = vmatmul.mubr.f32.gmra.mrb[0].mxu0 %v1108
      %v1199 = vpop.f32.mrb[0].mxu0
      %v1200 = vadd.f32 0.0, %v1199
      %v1201 = vpop.f32.mrb[0].mxu0
      %1202 = vmatprep.mubr.f32.mxu0 0.0
      %1203 = vmatmul.mubr.f32.gmra.mrb[0].mxu0 %v1111
      %v1204 = vpop.f32.mrb[0].mxu0
      %v1205 = vadd.f32 0.0, %v1204
      %v1206 = vpop.f32.mrb[0].mxu0
      %1207 = vmatprep.mubr.f32.mxu0 0.0
      %1208 = vmatmul.mubr.f32.gmra.mrb[0].mxu0 %v1114
      %v1209 = vpop.f32.mrb[0].mxu0
      %v1210 = vadd.f32 0.0, %v1209
      %v1211 = vpop.f32.mrb[0].mxu0
      %1212 = vmatprep.mubr.f32.mxu0 0.0
      %1213 = vmatmul.mubr.f32.gmra.mrb[0].mxu0 %v1117
      %v1214 = vpop.f32.mrb[0].mxu0
      %v1215 = vadd.f32 0.0, %v1214
      %v1216 = vpop.f32.mrb[0].mxu0
      %1217 = vmatprep.mubr.f32.mxu0 0.0
      %1218 = vmatmul.mubr.f32.gmra.mrb[0].mxu0 %v1120
      %v1219 = vpop.f32.mrb[0].mxu0
      %v1220 = vadd.f32 0.0, %v1219
      %v1221 = vpop.f32.mrb[0].mxu0
      %1222 = vmatprep.mubr.f32.mxu0 0.0
      %1223 = vmatmul.mubr.f32.gmra.mrb[0].mxu0 %v1123
      %v1224 = vpop.f32.mrb[0].mxu0
      %v1225 = vadd.f32 0.0, %v1224
      %v1226 = vpop.f32.mrb[0].mxu0
      %1227 = vmatprep.mubr.f32.mxu0 0.0
      %1228 = vmatmul.mubr.f32.gmra.mrb[0].mxu0 %v1126
      %v1229 = vpop.f32.mrb[0].mxu0
      %v1230 = vadd.f32 0.0, %v1229
      %v1231 = vpop.f32.mrb[0].mxu0
      %1232 = vdwg.mxu0
      %v1233 = vld [vmem:[%s5] sm:$0xff]
      %v1234 = vld [vmem:[%s5 + $0x8] sm:$0xff]
      %v1235 = vld [vmem:[%s5 + $0x10] sm:$0xff]
      %v1236 = vld [vmem:[%s5 + $0x18] sm:$0xff]
      %v1237 = vld [vmem:[%s5 + $0x20] sm:$0xff]
      %v1238 = vld [vmem:[%s5 + $0x28] sm:$0xff]
      %v1239 = vld [vmem:[%s5 + $0x30] sm:$0xff]
      %v1240 = vld [vmem:[%s5 + $0x38] sm:$0xff]
      %s1241 = scalar_lea.vmem %s5, 64
      %v1242 = vld [vmem:[%s1241] sm:$0xff]
      %v1243 = vld [vmem:[%s1241 + $0x8] sm:$0xff]
      %v1244 = vld [vmem:[%s1241 + $0x10] sm:$0xff]
      %v1245 = vld [vmem:[%s1241 + $0x18] sm:$0xff]
      %v1246 = vld [vmem:[%s1241 + $0x20] sm:$0xff]
      %v1247 = vld [vmem:[%s1241 + $0x28] sm:$0xff]
      %v1248 = vld [vmem:[%s1241 + $0x30] sm:$0xff]
      %v1249 = vld [vmem:[%s1241 + $0x38] sm:$0xff]
      %v1251 = vsel %vm465, %v1205, 0
      %v1254 = vsel %vm465, %v1210, 0
      %1256 = vmatprep.subr.mxu0 0.0
      %1257 = vmatpush1.msra.mxu0 %v1242
      %1258 = vmatprep.subr.mxu0 0.0
      %1259 = vmatpush1.msra.mxu0 %v1243
      %1260 = vmatprep.subr.mxu0 0.0
      %1261 = vmatpush1.msra.mxu0 %v1244
      %1262 = vmatprep.subr.mxu0 0.0
      %1263 = vmatpush1.msra.mxu0 %v1245
      %1264 = vmatprep.subr.mxu0 0.0
      %1265 = vmatpush1.msra.mxu0 %v1246
      %1266 = vmatprep.subr.mxu0 0.0
      %1267 = vmatpush1.msra.mxu0 %v1247
      %1268 = vmatprep.subr.mxu0 0.0
      %1269 = vmatpush1.msra.mxu0 %v1248
      %1270 = vmatprep.subr.mxu0 0.0
      %1271 = vmatpush1.msra.mxu0 %v1249
      %1272 = vmatprep.subr.mxu0 0.0
      %1273 = vmatpush1.msra.mxu0 0.0
      %1274 = vmatprep.subr.mxu0 0.0
      %1275 = vmatpush1.msra.mxu0 0.0
      %1276 = vmatprep.subr.mxu0 0.0
      %1277 = vmatpush1.msra.mxu0 0.0
      %1278 = vmatprep.subr.mxu0 0.0
      %1279 = vmatpush1.msra.mxu0 0.0
      %1280 = vmatprep.subr.mxu0 0.0
      %1281 = vmatpush1.msra.mxu0 0.0
      %1282 = vmatprep.subr.mxu0 0.0
      %1283 = vmatpush1.msra.mxu0 0.0
      %1284 = vmatprep.subr.mxu0 0.0
      %1285 = vmatpush1.msra.mxu0 0.0
      %1286 = vmatprep.subr.mxu0 0.0
      %1287 = vmatpush1.msra.mxu0 0.0
      %1288 = vmatprep.subr.mxu0 0.0
      %1289 = vmatpush1.msra.mxu0 0.0
      %1290 = vmatprep.subr.mxu0 0.0
      %1291 = vmatpush1.msra.mxu0 0.0
      %1292 = vmatprep.subr.mxu0 0.0
      %1293 = vmatpush1.msra.mxu0 0.0
      %1294 = vmatprep.subr.mxu0 0.0
      %1295 = vmatpush1.msra.mxu0 0.0
      %1296 = vmatprep.subr.mxu0 0.0
      %1297 = vmatpush1.msra.mxu0 0.0
      %1298 = vmatprep.subr.mxu0 0.0
      %1299 = vmatpush1.msra.mxu0 0.0
      %1300 = vmatprep.subr.mxu0 0.0
      %1301 = vmatpush1.msra.mxu0 0.0
      %1302 = vmatprep.subr.mxu0 0.0
      %1303 = vmatpush1.msra.mxu0 0.0
      %1304 = vmatprep.subr.mxu0 0.0
      %1305 = vmatpush1.msra.mxu0 0.0
      %1306 = vmatprep.subr.mxu0 0.0
      %1307 = vmatpush1.msra.mxu0 0.0
      %1308 = vmatprep.subr.mxu0 0.0
      %1309 = vmatpush1.msra.mxu0 0.0
      %1310 = vmatprep.subr.mxu0 0.0
      %1311 = vmatpush1.msra.mxu0 0.0
      %1312 = vmatprep.subr.mxu0 0.0
      %1313 = vmatpush1.msra.mxu0 0.0
      %1314 = vmatprep.subr.mxu0 0.0
      %1315 = vmatpush1.msra.mxu0 0.0
      %1316 = vmatprep.subr.mxu0 0.0
      %1317 = vmatpush1.msra.mxu0 0.0
      %1318 = vmatprep.subr.mxu0 0.0
      %1319 = vmatpush1.msra.mxu0 0.0
      %1320 = vmatprep.mubr.f32.mxu0 0.0
      %1321 = vmatmul.mubr.f32.gmra.mrb[0].mxu0 %v1251
      %v1322 = vpop.f32.mrb[0].mxu0
      %v1323 = vadd.f32 0.0, %v1322
      %v1324 = vpop.f32.mrb[0].mxu0
      %1325 = vmatprep.mubr.f32.mxu0 0.0
      %1326 = vmatmul.mubr.f32.gmra.mrb[0].mxu0 %v1254
      %v1327 = vpop.f32.mrb[0].mxu0
      %v1328 = vadd.f32 0.0, %v1327
      %v1329 = vpop.f32.mrb[0].mxu0
      %1330 = vdwg.mxu0
      %v1332 = vsel %vm465, %v1195, 0
      %v1335 = vsel %vm465, %v1200, 0
      %1337 = vmatprep.subr.mxu0 0.0
      %1338 = vmatpush1.msra.mxu0 %v1233
      %1339 = vmatprep.subr.mxu0 0.0
      %1340 = vmatpush1.msra.mxu0 %v1234
      %1341 = vmatprep.subr.mxu0 0.0
      %1342 = vmatpush1.msra.mxu0 %v1235
      %1343 = vmatprep.subr.mxu0 0.0
      %1344 = vmatpush1.msra.mxu0 %v1236
      %1345 = vmatprep.subr.mxu0 0.0
      %1346 = vmatpush1.msra.mxu0 %v1237
      %1347 = vmatprep.subr.mxu0 0.0
      %1348 = vmatpush1.msra.mxu0 %v1238
      %1349 = vmatprep.subr.mxu0 0.0
      %1350 = vmatpush1.msra.mxu0 %v1239
      %1351 = vmatprep.subr.mxu0 0.0
      %1352 = vmatpush1.msra.mxu0 %v1240
      %1353 = vmatprep.subr.mxu0 0.0
      %1354 = vmatpush1.msra.mxu0 0.0
      %1355 = vmatprep.subr.mxu0 0.0
      %1356 = vmatpush1.msra.mxu0 0.0
      %1357 = vmatprep.subr.mxu0 0.0
      %1358 = vmatpush1.msra.mxu0 0.0
      %1359 = vmatprep.subr.mxu0 0.0
      %1360 = vmatpush1.msra.mxu0 0.0
      %1361 = vmatprep.subr.mxu0 0.0
      %1362 = vmatpush1.msra.mxu0 0.0
      %1363 = vmatprep.subr.mxu0 0.0
      %1364 = vmatpush1.msra.mxu0 0.0
      %1365 = vmatprep.subr.mxu0 0.0
      %1366 = vmatpush1.msra.mxu0 0.0
      %1367 = vmatprep.subr.mxu0 0.0
      %1368 = vmatpush1.msra.mxu0 0.0
      %1369 = vmatprep.subr.mxu0 0.0
      %1370 = vmatpush1.msra.mxu0 0.0
      %1371 = vmatprep.subr.mxu0 0.0
      %1372 = vmatpush1.msra.mxu0 0.0
      %1373 = vmatprep.subr.mxu0 0.0
      %1374 = vmatpush1.msra.mxu0 0.0
      %1375 = vmatprep.subr.mxu0 0.0
      %1376 = vmatpush1.msra.mxu0 0.0
      %1377 = vmatprep.subr.mxu0 0.0
      %1378 = vmatpush1.msra.mxu0 0.0
      %1379 = vmatprep.subr.mxu0 0.0
      %1380 = vmatpush1.msra.mxu0 0.0
      %1381 = vmatprep.subr.mxu0 0.0
      %1382 = vmatpush1.msra.mxu0 0.0
      %1383 = vmatprep.subr.mxu0 0.0
      %1384 = vmatpush1.msra.mxu0 0.0
      %1385 = vmatprep.subr.mxu0 0.0
      %1386 = vmatpush1.msra.mxu0 0.0
      %1387 = vmatprep.subr.mxu0 0.0
      %1388 = vmatpush1.msra.mxu0 0.0
      %1389 = vmatprep.subr.mxu0 0.0
      %1390 = vmatpush1.msra.mxu0 0.0
      %1391 = vmatprep.subr.mxu0 0.0
      %1392 = vmatpush1.msra.mxu0 0.0
      %1393 = vmatprep.subr.mxu0 0.0
      %1394 = vmatpush1.msra.mxu0 0.0
      %1395 = vmatprep.subr.mxu0 0.0
      %1396 = vmatpush1.msra.mxu0 0.0
      %1397 = vmatprep.subr.mxu0 0.0
      %1398 = vmatpush1.msra.mxu0 0.0
      %1399 = vmatprep.subr.mxu0 0.0
      %1400 = vmatpush1.msra.mxu0 0.0
      %1401 = vmatprep.mubr.f32.mxu0 0.0
      %1402 = vmatmul.mubr.f32.gmra.mrb[0].mxu0 %v1332
      %v1403 = vpop.f32.mrb[0].mxu0
      %v1404 = vadd.f32 %v1323, %v1403
      %v1405 = vpop.f32.mrb[0].mxu0
      %1406 = vmatprep.mubr.f32.mxu0 0.0
      %1407 = vmatmul.mubr.f32.gmra.mrb[0].mxu0 %v1335
      %v1408 = vpop.f32.mrb[0].mxu0
      %v1409 = vadd.f32 %v1328, %v1408
      %v1410 = vpop.f32.mrb[0].mxu0
      %1411 = vdwg.mxu0
      %s1412 = scalar_lea.vmem %s5, 128
      %v1413 = vld [vmem:[%s1412] sm:$0xff]
      %v1414 = vld [vmem:[%s1412 + $0x8] sm:$0xff]
      %v1415 = vld [vmem:[%s1412 + $0x10] sm:$0xff]
      %v1416 = vld [vmem:[%s1412 + $0x18] sm:$0xff]
      %v1417 = vld [vmem:[%s1412 + $0x20] sm:$0xff]
      %v1418 = vld [vmem:[%s1412 + $0x28] sm:$0xff]
      %v1419 = vld [vmem:[%s1412 + $0x30] sm:$0xff]
      %v1420 = vld [vmem:[%s1412 + $0x38] sm:$0xff]
      %v1422 = vsel %vm465, %v1215, 0
      %v1425 = vsel %vm465, %v1220, 0
      %1427 = vmatprep.subr.mxu0 0.0
      %1428 = vmatpush1.msra.mxu0 %v1413
      %1429 = vmatprep.subr.mxu0 0.0
      %1430 = vmatpush1.msra.mxu0 %v1414
      %1431 = vmatprep.subr.mxu0 0.0
      %1432 = vmatpush1.msra.mxu0 %v1415
      %1433 = vmatprep.subr.mxu0 0.0
      %1434 = vmatpush1.msra.mxu0 %v1416
      %1435 = vmatprep.subr.mxu0 0.0
      %1436 = vmatpush1.msra.mxu0 %v1417
      %1437 = vmatprep.subr.mxu0 0.0
      %1438 = vmatpush1.msra.mxu0 %v1418
      %1439 = vmatprep.subr.mxu0 0.0
      %1440 = vmatpush1.msra.mxu0 %v1419
      %1441 = vmatprep.subr.mxu0 0.0
      %1442 = vmatpush1.msra.mxu0 %v1420
      %1443 = vmatprep.subr.mxu0 0.0
      %1444 = vmatpush1.msra.mxu0 0.0
      %1445 = vmatprep.subr.mxu0 0.0
      %1446 = vmatpush1.msra.mxu0 0.0
      %1447 = vmatprep.subr.mxu0 0.0
      %1448 = vmatpush1.msra.mxu0 0.0
      %1449 = vmatprep.subr.mxu0 0.0
      %1450 = vmatpush1.msra.mxu0 0.0
      %1451 = vmatprep.subr.mxu0 0.0
      %1452 = vmatpush1.msra.mxu0 0.0
      %1453 = vmatprep.subr.mxu0 0.0
      %1454 = vmatpush1.msra.mxu0 0.0
      %1455 = vmatprep.subr.mxu0 0.0
      %1456 = vmatpush1.msra.mxu0 0.0
      %1457 = vmatprep.subr.mxu0 0.0
      %1458 = vmatpush1.msra.mxu0 0.0
      %1459 = vmatprep.subr.mxu0 0.0
      %1460 = vmatpush1.msra.mxu0 0.0
      %1461 = vmatprep.subr.mxu0 0.0
      %1462 = vmatpush1.msra.mxu0 0.0
      %1463 = vmatprep.subr.mxu0 0.0
      %1464 = vmatpush1.msra.mxu0 0.0
      %1465 = vmatprep.subr.mxu0 0.0
      %1466 = vmatpush1.msra.mxu0 0.0
      %1467 = vmatprep.subr.mxu0 0.0
      %1468 = vmatpush1.msra.mxu0 0.0
      %1469 = vmatprep.subr.mxu0 0.0
      %1470 = vmatpush1.msra.mxu0 0.0
      %1471 = vmatprep.subr.mxu0 0.0
      %1472 = vmatpush1.msra.mxu0 0.0
      %1473 = vmatprep.subr.mxu0 0.0
      %1474 = vmatpush1.msra.mxu0 0.0
      %1475 = vmatprep.subr.mxu0 0.0
      %1476 = vmatpush1.msra.mxu0 0.0
      %1477 = vmatprep.subr.mxu0 0.0
      %1478 = vmatpush1.msra.mxu0 0.0
      %1479 = vmatprep.subr.mxu0 0.0
      %1480 = vmatpush1.msra.mxu0 0.0
      %1481 = vmatprep.subr.mxu0 0.0
      %1482 = vmatpush1.msra.mxu0 0.0
      %1483 = vmatprep.subr.mxu0 0.0
      %1484 = vmatpush1.msra.mxu0 0.0
      %1485 = vmatprep.subr.mxu0 0.0
      %1486 = vmatpush1.msra.mxu0 0.0
      %1487 = vmatprep.subr.mxu0 0.0
      %1488 = vmatpush1.msra.mxu0 0.0
      %1489 = vmatprep.subr.mxu0 0.0
      %1490 = vmatpush1.msra.mxu0 0.0
      %1491 = vmatprep.mubr.f32.mxu0 0.0
      %1492 = vmatmul.mubr.f32.gmra.mrb[0].mxu0 %v1422
      %v1493 = vpop.f32.mrb[0].mxu0
      %v1494 = vadd.f32 0.0, %v1493
      %v1495 = vpop.f32.mrb[0].mxu0
      %1496 = vmatprep.mubr.f32.mxu0 0.0
      %1497 = vmatmul.mubr.f32.gmra.mrb[0].mxu0 %v1425
      %v1498 = vpop.f32.mrb[0].mxu0
      %v1499 = vadd.f32 0.0, %v1498
      %v1500 = vpop.f32.mrb[0].mxu0
      %1501 = vdwg.mxu0
      %v1502 = vadd.f32 %v1404, %v1494
      %v1503 = vadd.f32 %v1409, %v1499
      %s1504 = scalar_lea.vmem %s5, 192
      %v1505 = vld [vmem:[%s1504] sm:$0xff]
      %v1506 = vld [vmem:[%s1504 + $0x8] sm:$0xff]
      %v1507 = vld [vmem:[%s1504 + $0x10] sm:$0xff]
      %v1508 = vld [vmem:[%s1504 + $0x18] sm:$0xff]
      %v1509 = vld [vmem:[%s1504 + $0x20] sm:$0xff]
      %v1510 = vld [vmem:[%s1504 + $0x28] sm:$0xff]
      %v1511 = vld [vmem:[%s1504 + $0x30] sm:$0xff]
      %v1512 = vld [vmem:[%s1504 + $0x38] sm:$0xff]
      %v1514 = vsel %vm465, %v1225, 0
      %v1517 = vsel %vm465, %v1230, 0
      %1519 = vmatprep.subr.mxu0 0.0
      %1520 = vmatpush1.msra.mxu0 %v1505
      %1521 = vmatprep.subr.mxu0 0.0
      %1522 = vmatpush1.msra.mxu0 %v1506
      %1523 = vmatprep.subr.mxu0 0.0
      %1524 = vmatpush1.msra.mxu0 %v1507
      %1525 = vmatprep.subr.mxu0 0.0
      %1526 = vmatpush1.msra.mxu0 %v1508
      %1527 = vmatprep.subr.mxu0 0.0
      %1528 = vmatpush1.msra.mxu0 %v1509
      %1529 = vmatprep.subr.mxu0 0.0
      %1530 = vmatpush1.msra.mxu0 %v1510
      %1531 = vmatprep.subr.mxu0 0.0
      %1532 = vmatpush1.msra.mxu0 %v1511
      %1533 = vmatprep.subr.mxu0 0.0
      %1534 = vmatpush1.msra.mxu0 %v1512
      %1535 = vmatprep.subr.mxu0 0.0
      %1536 = vmatpush1.msra.mxu0 0.0
      %1537 = vmatprep.subr.mxu0 0.0
      %1538 = vmatpush1.msra.mxu0 0.0
      %1539 = vmatprep.subr.mxu0 0.0
      %1540 = vmatpush1.msra.mxu0 0.0
      %1541 = vmatprep.subr.mxu0 0.0
      %1542 = vmatpush1.msra.mxu0 0.0
      %1543 = vmatprep.subr.mxu0 0.0
      %1544 = vmatpush1.msra.mxu0 0.0
      %1545 = vmatprep.subr.mxu0 0.0
      %1546 = vmatpush1.msra.mxu0 0.0
      %1547 = vmatprep.subr.mxu0 0.0
      %1548 = vmatpush1.msra.mxu0 0.0
      %1549 = vmatprep.subr.mxu0 0.0
      %1550 = vmatpush1.msra.mxu0 0.0
      %1551 = vmatprep.subr.mxu0 0.0
      %1552 = vmatpush1.msra.mxu0 0.0
      %1553 = vmatprep.subr.mxu0 0.0
      %1554 = vmatpush1.msra.mxu0 0.0
      %1555 = vmatprep.subr.mxu0 0.0
      %1556 = vmatpush1.msra.mxu0 0.0
      %1557 = vmatprep.subr.mxu0 0.0
      %1558 = vmatpush1.msra.mxu0 0.0
      %1559 = vmatprep.subr.mxu0 0.0
      %1560 = vmatpush1.msra.mxu0 0.0
      %1561 = vmatprep.subr.mxu0 0.0
      %1562 = vmatpush1.msra.mxu0 0.0
      %1563 = vmatprep.subr.mxu0 0.0
      %1564 = vmatpush1.msra.mxu0 0.0
      %1565 = vmatprep.subr.mxu0 0.0
      %1566 = vmatpush1.msra.mxu0 0.0
      %1567 = vmatprep.subr.mxu0 0.0
      %1568 = vmatpush1.msra.mxu0 0.0
      %1569 = vmatprep.subr.mxu0 0.0
      %1570 = vmatpush1.msra.mxu0 0.0
      %1571 = vmatprep.subr.mxu0 0.0
      %1572 = vmatpush1.msra.mxu0 0.0
      %1573 = vmatprep.subr.mxu0 0.0
      %1574 = vmatpush1.msra.mxu0 0.0
      %1575 = vmatprep.subr.mxu0 0.0
      %1576 = vmatpush1.msra.mxu0 0.0
      %1577 = vmatprep.subr.mxu0 0.0
      %1578 = vmatpush1.msra.mxu0 0.0
      %1579 = vmatprep.subr.mxu0 0.0
      %1580 = vmatpush1.msra.mxu0 0.0
      %1581 = vmatprep.subr.mxu0 0.0
      %1582 = vmatpush1.msra.mxu0 0.0
      %1583 = vmatprep.mubr.f32.mxu0 0.0
      %1584 = vmatmul.mubr.f32.gmra.mrb[0].mxu0 %v1514
      %v1585 = vpop.f32.mrb[0].mxu0
      %v1586 = vadd.f32 0.0, %v1585
      %v1587 = vpop.f32.mrb[0].mxu0
      %1588 = vmatprep.mubr.f32.mxu0 0.0
      %1589 = vmatmul.mubr.f32.gmra.mrb[0].mxu0 %v1517
      %v1590 = vpop.f32.mrb[0].mxu0
      %v1591 = vadd.f32 0.0, %v1590
      %v1592 = vpop.f32.mrb[0].mxu0
      %1593 = vdwg.mxu0
      %v1594 = vadd.f32 %v1502, %v1586
      %v1595 = vadd.f32 %v1503, %v1591
      %v1596 = vadd.f32 %v1594, %v1595
      %v1597 = vrot.slane %v1596, 4
      %v1598 = vadd.f32 %v1596, %v1597
      %v1599 = vrot.slane %v1598, 2
      %v1600 = vadd.f32 %v1598, %v1599
      %v1601 = vrot.slane %v1600, 1
      %v1602 = vadd.f32 %v1600, %v1601
      %v1603 = vrcp.pop 16.0
      %v1604 = vmul.f32 %v1602, %v1603
      %v1605 = vsub.f32 %v1594, %v1604
      %v1606 = vsub.f32 %v1595, %v1604
      %v1607 = vmul.f32 %v1605, %v1605
      %v1608 = vmul.f32 %v1606, %v1606
      %v1609 = vadd.f32 %v1607, %v1608
      %v1610 = vrot.slane %v1609, 4
      %v1611 = vadd.f32 %v1609, %v1610
      %v1612 = vrot.slane %v1611, 2
      %v1613 = vadd.f32 %v1611, %v1612
      %v1614 = vrot.slane %v1613, 1
      %v1615 = vadd.f32 %v1613, %v1614
      %v1616 = vmul.f32 %v1615, %v1603
      %v1617 = vadd.f32 %v1616, 1e-05
      %v1618 = vrsqrt.pop %v1617
      %v1619 = vmul.f32 %v1605, %v1618
      %v1620 = vmul.f32 %v1606, %v1618
      %v1621 = vmul.f32 %v1619, 0.2
      %v1622 = vmul.f32 %v1620, 0.2
      %v1623 = vmax.f32 %v1619, %v1621
      %v1624 = vmax.f32 %v1620, %v1622
      %v1625 = vld [vmem:[%s6] sm:$0xff]
      %v1626 = vld [vmem:[%s6 + $0x8] sm:$0xff]
      %v1627 = vld [vmem:[%s6 + $0x10] sm:$0xff]
      %v1628 = vld [vmem:[%s6 + $0x18] sm:$0xff]
      %vm1629 = vcmask 130048
      %v1631 = vsel %vm1629, %v1625, 0
      %v1634 = vsel %vm1629, %v1626, 0
      %v1637 = vsel %vm1629, %v1627, 0
      %v1640 = vsel %vm1629, %v1628, 0
      %1642 = vmatprep.subr.mxu0 0.0
      %1643 = vmatpush1.msra.mxu0 %v1623
      %1644 = vmatprep.subr.mxu0 0.0
      %1645 = vmatpush1.msra.mxu0 %v1624
      %1646 = vmatprep.subr.mxu0 0.0
      %1647 = vmatpush1.msra.mxu0 0.0
      %1648 = vmatprep.subr.mxu0 0.0
      %1649 = vmatpush1.msra.mxu0 0.0
      %1650 = vmatprep.subr.mxu0 0.0
      %1651 = vmatpush1.msra.mxu0 0.0
      %1652 = vmatprep.subr.mxu0 0.0
      %1653 = vmatpush1.msra.mxu0 0.0
      %1654 = vmatprep.subr.mxu0 0.0
      %1655 = vmatpush1.msra.mxu0 0.0
      %1656 = vmatprep.subr.mxu0 0.0
      %1657 = vmatpush1.msra.mxu0 0.0
      %1658 = vmatprep.subr.mxu0 0.0
      %1659 = vmatpush1.msra.mxu0 0.0
      %1660 = vmatprep.subr.mxu0 0.0
      %1661 = vmatpush1.msra.mxu0 0.0
      %1662 = vmatprep.subr.mxu0 0.0
      %1663 = vmatpush1.msra.mxu0 0.0
      %1664 = vmatprep.subr.mxu0 0.0
      %1665 = vmatpush1.msra.mxu0 0.0
      %1666 = vmatprep.subr.mxu0 0.0
      %1667 = vmatpush1.msra.mxu0 0.0
      %1668 = vmatprep.subr.mxu0 0.0
      %1669 = vmatpush1.msra.mxu0 0.0
      %1670 = vmatprep.subr.mxu0 0.0
      %1671 = vmatpush1.msra.mxu0 0.0
      %1672 = vmatprep.subr.mxu0 0.0
      %1673 = vmatpush1.msra.mxu0 0.0
      %1674 = vmatprep.subr.mxu0 0.0
      %1675 = vmatpush1.msra.mxu0 0.0
      %1676 = vmatprep.subr.mxu0 0.0
      %1677 = vmatpush1.msra.mxu0 0.0
      %1678 = vmatprep.subr.mxu0 0.0
      %1679 = vmatpush1.msra.mxu0 0.0
      %1680 = vmatprep.subr.mxu0 0.0
      %1681 = vmatpush1.msra.mxu0 0.0
      %1682 = vmatprep.subr.mxu0 0.0
      %1683 = vmatpush1.msra.mxu0 0.0
      %1684 = vmatprep.subr.mxu0 0.0
      %1685 = vmatpush1.msra.mxu0 0.0
      %1686 = vmatprep.subr.mxu0 0.0
      %1687 = vmatpush1.msra.mxu0 0.0
      %1688 = vmatprep.subr.mxu0 0.0
      %1689 = vmatpush1.msra.mxu0 0.0
      %1690 = vmatprep.subr.mxu0 0.0
      %1691 = vmatpush1.msra.mxu0 0.0
      %1692 = vmatprep.subr.mxu0 0.0
      %1693 = vmatpush1.msra.mxu0 0.0
      %1694 = vmatprep.subr.mxu0 0.0
      %1695 = vmatpush1.msra.mxu0 0.0
      %1696 = vmatprep.subr.mxu0 0.0
      %1697 = vmatpush1.msra.mxu0 0.0
      %1698 = vmatprep.subr.mxu0 0.0
      %1699 = vmatpush1.msra.mxu0 0.0
      %1700 = vmatprep.subr.mxu0 0.0
      %1701 = vmatpush1.msra.mxu0 0.0
      %1702 = vmatprep.subr.mxu0 0.0
      %1703 = vmatpush1.msra.mxu0 0.0
      %1704 = vmatprep.subr.mxu0 0.0
      %1705 = vmatpush1.msra.mxu0 0.0
      %1706 = vmatprep.mubr.f32.mxu0 0.0
      %1707 = vmatmul.mubr.f32.gmra.mrb[0].mxu0 %v1631
      %v1708 = vpop.f32.mrb[0].mxu0
      %v1709 = vadd.f32 0.0, %v1708
      %v1710 = vpop.f32.mrb[0].mxu0
      %1711 = vmatprep.mubr.f32.mxu0 0.0
      %1712 = vmatmul.mubr.f32.gmra.mrb[0].mxu0 %v1634
      %v1713 = vpop.f32.mrb[0].mxu0
      %v1714 = vadd.f32 0.0, %v1713
      %v1715 = vpop.f32.mrb[0].mxu0
      %1716 = vmatprep.mubr.f32.mxu0 0.0
      %1717 = vmatmul.mubr.f32.gmra.mrb[0].mxu0 %v1637
      %v1718 = vpop.f32.mrb[0].mxu0
      %v1719 = vadd.f32 0.0, %v1718
      %v1720 = vpop.f32.mrb[0].mxu0
      %1721 = vmatprep.mubr.f32.mxu0 0.0
      %1722 = vmatmul.mubr.f32.gmra.mrb[0].mxu0 %v1640
      %v1723 = vpop.f32.mrb[0].mxu0
      %v1724 = vadd.f32 0.0, %v1723
      %v1725 = vpop.f32.mrb[0].mxu0
      %1726 = vdwg.mxu0
      %v1727 = vld [vmem:[%s7] sm:$0xff]
      %v1728 = vld [vmem:[%s7 + $0x8] sm:$0xff]
      %v1729 = vld [vmem:[%s7 + $0x10] sm:$0xff]
      %v1730 = vld [vmem:[%s7 + $0x18] sm:$0xff]
      %v1731 = vld [vmem:[%s7 + $0x20] sm:$0xff]
      %v1732 = vld [vmem:[%s7 + $0x28] sm:$0xff]
      %v1733 = vld [vmem:[%s7 + $0x30] sm:$0xff]
      %v1734 = vld [vmem:[%s7 + $0x38] sm:$0xff]
      %v1735 = vld [vmem:[%s7 + $0x40] sm:$0xff]
      %v1736 = vld [vmem:[%s7 + $0x48] sm:$0xff]
      %v1737 = vld [vmem:[%s7 + $0x50] sm:$0xff]
      %v1738 = vld [vmem:[%s7 + $0x58] sm:$0xff]
      %v1739 = vld [vmem:[%s7 + $0x60] sm:$0xff]
      %v1740 = vld [vmem:[%s7 + $0x68] sm:$0xff]
      %v1741 = vld [vmem:[%s7 + $0x70] sm:$0xff]
      %v1742 = vld [vmem:[%s7 + $0x78] sm:$0xff]
      %v1743 = vld [vmem:[%s7 + $0x80] sm:$0xff]
      %v1744 = vld [vmem:[%s7 + $0x88] sm:$0xff]
      %v1745 = vld [vmem:[%s7 + $0x90] sm:$0xff]
      %v1746 = vld [vmem:[%s7 + $0x98] sm:$0xff]
      %v1747 = vld [vmem:[%s7 + $0xa0] sm:$0xff]
      %v1748 = vld [vmem:[%s7 + $0xa8] sm:$0xff]
      %v1749 = vld [vmem:[%s7 + $0xb0] sm:$0xff]
      %v1750 = vld [vmem:[%s7 + $0xb8] sm:$0xff]
      %v1751 = vld [vmem:[%s7 + $0xc0] sm:$0xff]
      %v1752 = vld [vmem:[%s7 + $0xc8] sm:$0xff]
      %v1753 = vld [vmem:[%s7 + $0xd0] sm:$0xff]
      %v1754 = vld [vmem:[%s7 + $0xd8] sm:$0xff]
      %v1755 = vld [vmem:[%s7 + $0xe0] sm:$0xff]
      %v1756 = vld [vmem:[%s7 + $0xe8] sm:$0xff]
      %v1757 = vld [vmem:[%s7 + $0xf0] sm:$0xff]
      %v1758 = vld [vmem:[%s7 + $0xf8] sm:$0xff]
      %s1759 = scalar_lea.vmem %s7, 256
      %v1760 = vld [vmem:[%s1759] sm:$0xff]
      %v1761 = vld [vmem:[%s1759 + $0x8] sm:$0xff]
      %v1762 = vld [vmem:[%s1759 + $0x10] sm:$0xff]
      %v1763 = vld [vmem:[%s1759 + $0x18] sm:$0xff]
      %v1764 = vld [vmem:[%s1759 + $0x20] sm:$0xff]
      %v1765 = vld [vmem:[%s1759 + $0x28] sm:$0xff]
      %v1766 = vld [vmem:[%s1759 + $0x30] sm:$0xff]
      %v1767 = vld [vmem:[%s1759 + $0x38] sm:$0xff]
      %v1768 = vld [vmem:[%s1759 + $0x40] sm:$0xff]
      %v1769 = vld [vmem:[%s1759 + $0x48] sm:$0xff]
      %v1770 = vld [vmem:[%s1759 + $0x50] sm:$0xff]
      %v1771 = vld [vmem:[%s1759 + $0x58] sm:$0xff]
      %v1772 = vld [vmem:[%s1759 + $0x60] sm:$0xff]
      %v1773 = vld [vmem:[%s1759 + $0x68] sm:$0xff]
      %v1774 = vld [vmem:[%s1759 + $0x70] sm:$0xff]
      %v1775 = vld [vmem:[%s1759 + $0x78] sm:$0xff]
      %v1776 = vld [vmem:[%s1759 + $0x80] sm:$0xff]
      %v1777 = vld [vmem:[%s1759 + $0x88] sm:$0xff]
      %v1778 = vld [vmem:[%s1759 + $0x90] sm:$0xff]
      %v1779 = vld [vmem:[%s1759 + $0x98] sm:$0xff]
      %v1780 = vld [vmem:[%s1759 + $0xa0] sm:$0xff]
      %v1781 = vld [vmem:[%s1759 + $0xa8] sm:$0xff]
      %v1782 = vld [vmem:[%s1759 + $0xb0] sm:$0xff]
      %v1783 = vld [vmem:[%s1759 + $0xb8] sm:$0xff]
      %v1784 = vld [vmem:[%s1759 + $0xc0] sm:$0xff]
      %v1785 = vld [vmem:[%s1759 + $0xc8] sm:$0xff]
      %v1786 = vld [vmem:[%s1759 + $0xd0] sm:$0xff]
      %v1787 = vld [vmem:[%s1759 + $0xd8] sm:$0xff]
      %v1788 = vld [vmem:[%s1759 + $0xe0] sm:$0xff]
      %v1789 = vld [vmem:[%s1759 + $0xe8] sm:$0xff]
      %v1790 = vld [vmem:[%s1759 + $0xf0] sm:$0xff]
      %v1791 = vld [vmem:[%s1759 + $0xf8] sm:$0xff]
      %1792 = vmatprep.subr.mxu0 %v1761
      %1793 = vmatpush1.msra.mxu0 %v1760
      %1794 = vmatprep.subr.mxu0 %v1763
      %1795 = vmatpush1.msra.mxu0 %v1762
      %1796 = vmatprep.subr.mxu0 %v1765
      %1797 = vmatpush1.msra.mxu0 %v1764
      %1798 = vmatprep.subr.mxu0 %v1767
      %1799 = vmatpush1.msra.mxu0 %v1766
      %1800 = vmatprep.subr.mxu0 %v1769
      %1801 = vmatpush1.msra.mxu0 %v1768
      %1802 = vmatprep.subr.mxu0 %v1771
      %1803 = vmatpush1.msra.mxu0 %v1770
      %1804 = vmatprep.subr.mxu0 %v1773
      %1805 = vmatpush1.msra.mxu0 %v1772
      %1806 = vmatprep.subr.mxu0 %v1775
      %1807 = vmatpush1.msra.mxu0 %v1774
      %1808 = vmatprep.subr.mxu0 %v1777
      %1809 = vmatpush1.msra.mxu0 %v1776
      %1810 = vmatprep.subr.mxu0 %v1779
      %1811 = vmatpush1.msra.mxu0 %v1778
      %1812 = vmatprep.subr.mxu0 %v1781
      %1813 = vmatpush1.msra.mxu0 %v1780
      %1814 = vmatprep.subr.mxu0 %v1783
      %1815 = vmatpush1.msra.mxu0 %v1782
      %1816 = vmatprep.subr.mxu0 %v1785
      %1817 = vmatpush1.msra.mxu0 %v1784
      %1818 = vmatprep.subr.mxu0 %v1787
      %1819 = vmatpush1.msra.mxu0 %v1786
      %1820 = vmatprep.subr.mxu0 %v1789
      %1821 = vmatpush1.msra.mxu0 %v1788
      %1822 = vmatprep.subr.mxu0 %v1791
      %1823 = vmatpush1.msra.mxu0 %v1790
      %1824 = vmatprep.subr.mxu0 0.0
      %1825 = vmatpush1.msra.mxu0 0.0
      %1826 = vmatprep.subr.mxu0 0.0
      %1827 = vmatpush1.msra.mxu0 0.0
      %1828 = vmatprep.subr.mxu0 0.0
      %1829 = vmatpush1.msra.mxu0 0.0
      %1830 = vmatprep.subr.mxu0 0.0
      %1831 = vmatpush1.msra.mxu0 0.0
      %1832 = vmatprep.subr.mxu0 0.0
      %1833 = vmatpush1.msra.mxu0 0.0
      %1834 = vmatprep.subr.mxu0 0.0
      %1835 = vmatpush1.msra.mxu0 0.0
      %1836 = vmatprep.subr.mxu0 0.0
      %1837 = vmatpush1.msra.mxu0 0.0
      %1838 = vmatprep.subr.mxu0 0.0
      %1839 = vmatpush1.msra.mxu0 0.0
      %1840 = vmatprep.subr.mxu0 0.0
      %1841 = vmatpush1.msra.mxu0 0.0
      %1842 = vmatprep.subr.mxu0 0.0
      %1843 = vmatpush1.msra.mxu0 0.0
      %1844 = vmatprep.subr.mxu0 0.0
      %1845 = vmatpush1.msra.mxu0 0.0
      %1846 = vmatprep.subr.mxu0 0.0
      %1847 = vmatpush1.msra.mxu0 0.0
      %1848 = vmatprep.subr.mxu0 0.0
      %1849 = vmatpush1.msra.mxu0 0.0
      %1850 = vmatprep.subr.mxu0 0.0
      %1851 = vmatpush1.msra.mxu0 0.0
      %1852 = vmatprep.subr.mxu0 0.0
      %1853 = vmatpush1.msra.mxu0 0.0
      %1854 = vmatprep.subr.mxu0 0.0
      %1855 = vmatpush1.msra.mxu0 0.0
      %1856 = vmatprep.mubr.f32.mxu0 0.0
      %1857 = vmatmul.mubr.f32.gmra.mrb[0].mxu0 %v1714
      %v1858 = vpop.f32.mrb[0].mxu0
      %v1859 = vadd.f32 0.0, %v1858
      %v1860 = vpop.f32.mrb[0].mxu0
      %v1861 = vadd.f32 0.0, %v1860
      %1862 = vdwg.mxu0
      %1863 = vmatprep.subr.mxu0 %v1728
      %1864 = vmatpush1.msra.mxu0 %v1727
      %1865 = vmatprep.subr.mxu0 %v1730
      %1866 = vmatpush1.msra.mxu0 %v1729
      %1867 = vmatprep.subr.mxu0 %v1732
      %1868 = vmatpush1.msra.mxu0 %v1731
      %1869 = vmatprep.subr.mxu0 %v1734
      %1870 = vmatpush1.msra.mxu0 %v1733
      %1871 = vmatprep.subr.mxu0 %v1736
      %1872 = vmatpush1.msra.mxu0 %v1735
      %1873 = vmatprep.subr.mxu0 %v1738
      %1874 = vmatpush1.msra.mxu0 %v1737
      %1875 = vmatprep.subr.mxu0 %v1740
      %1876 = vmatpush1.msra.mxu0 %v1739
      %1877 = vmatprep.subr.mxu0 %v1742
      %1878 = vmatpush1.msra.mxu0 %v1741
      %1879 = vmatprep.subr.mxu0 %v1744
      %1880 = vmatpush1.msra.mxu0 %v1743
      %1881 = vmatprep.subr.mxu0 %v1746
      %1882 = vmatpush1.msra.mxu0 %v1745
      %1883 = vmatprep.subr.mxu0 %v1748
      %1884 = vmatpush1.msra.mxu0 %v1747
      %1885 = vmatprep.subr.mxu0 %v1750
      %1886 = vmatpush1.msra.mxu0 %v1749
      %1887 = vmatprep.subr.mxu0 %v1752
      %1888 = vmatpush1.msra.mxu0 %v1751
      %1889 = vmatprep.subr.mxu0 %v1754
      %1890 = vmatpush1.msra.mxu0 %v1753
      %1891 = vmatprep.subr.mxu0 %v1756
      %1892 = vmatpush1.msra.mxu0 %v1755
      %1893 = vmatprep.subr.mxu0 %v1758
      %1894 = vmatpush1.msra.mxu0 %v1757
      %1895 = vmatprep.subr.mxu0 0.0
      %1896 = vmatpush1.msra.mxu0 0.0
      %1897 = vmatprep.subr.mxu0 0.0
      %1898 = vmatpush1.msra.mxu0 0.0
      %1899 = vmatprep.subr.mxu0 0.0
      %1900 = vmatpush1.msra.mxu0 0.0
      %1901 = vmatprep.subr.mxu0 0.0
      %1902 = vmatpush1.msra.mxu0 0.0
      %1903 = vmatprep.subr.mxu0 0.0
      %1904 = vmatpush1.msra.mxu0 0.0
      %1905 = vmatprep.subr.mxu0 0.0
      %1906 = vmatpush1.msra.mxu0 0.0
      %1907 = vmatprep.subr.mxu0 0.0
      %1908 = vmatpush1.msra.mxu0 0.0
      %1909 = vmatprep.subr.mxu0 0.0
      %1910 = vmatpush1.msra.mxu0 0.0
      %1911 = vmatprep.subr.mxu0 0.0
      %1912 = vmatpush1.msra.mxu0 0.0
      %1913 = vmatprep.subr.mxu0 0.0
      %1914 = vmatpush1.msra.mxu0 0.0
      %1915 = vmatprep.subr.mxu0 0.0
      %1916 = vmatpush1.msra.mxu0 0.0
      %1917 = vmatprep.subr.mxu0 0.0
      %1918 = vmatpush1.msra.mxu0 0.0
      %1919 = vmatprep.subr.mxu0 0.0
      %1920 = vmatpush1.msra.mxu0 0.0
      %1921 = vmatprep.subr.mxu0 0.0
      %1922 = vmatpush1.msra.mxu0 0.0
      %1923 = vmatprep.subr.mxu0 0.0
      %1924 = vmatpush1.msra.mxu0 0.0
      %1925 = vmatprep.subr.mxu0 0.0
      %1926 = vmatpush1.msra.mxu0 0.0
      %1927 = vmatprep.mubr.f32.mxu0 0.0
      %1928 = vmatmul.mubr.f32.gmra.mrb[0].mxu0 %v1709
      %v1929 = vpop.f32.mrb[0].mxu0
      %v1930 = vadd.f32 %v1859, %v1929
      %v1931 = vpop.f32.mrb[0].mxu0
      %v1932 = vadd.f32 %v1861, %v1931
      %1933 = vdwg.mxu0
      %s1934 = scalar_lea.vmem %s7, 512
      %v1935 = vld [vmem:[%s1934] sm:$0xff]
      %v1936 = vld [vmem:[%s1934 + $0x8] sm:$0xff]
      %v1937 = vld [vmem:[%s1934 + $0x10] sm:$0xff]
      %v1938 = vld [vmem:[%s1934 + $0x18] sm:$0xff]
      %v1939 = vld [vmem:[%s1934 + $0x20] sm:$0xff]
      %v1940 = vld [vmem:[%s1934 + $0x28] sm:$0xff]
      %v1941 = vld [vmem:[%s1934 + $0x30] sm:$0xff]
      %v1942 = vld [vmem:[%s1934 + $0x38] sm:$0xff]
      %v1943 = vld [vmem:[%s1934 + $0x40] sm:$0xff]
      %v1944 = vld [vmem:[%s1934 + $0x48] sm:$0xff]
      %v1945 = vld [vmem:[%s1934 + $0x50] sm:$0xff]
      %v1946 = vld [vmem:[%s1934 + $0x58] sm:$0xff]
      %v1947 = vld [vmem:[%s1934 + $0x60] sm:$0xff]
      %v1948 = vld [vmem:[%s1934 + $0x68] sm:$0xff]
      %v1949 = vld [vmem:[%s1934 + $0x70] sm:$0xff]
      %v1950 = vld [vmem:[%s1934 + $0x78] sm:$0xff]
      %v1951 = vld [vmem:[%s1934 + $0x80] sm:$0xff]
      %v1952 = vld [vmem:[%s1934 + $0x88] sm:$0xff]
      %v1953 = vld [vmem:[%s1934 + $0x90] sm:$0xff]
      %v1954 = vld [vmem:[%s1934 + $0x98] sm:$0xff]
      %v1955 = vld [vmem:[%s1934 + $0xa0] sm:$0xff]
      %v1956 = vld [vmem:[%s1934 + $0xa8] sm:$0xff]
      %v1957 = vld [vmem:[%s1934 + $0xb0] sm:$0xff]
      %v1958 = vld [vmem:[%s1934 + $0xb8] sm:$0xff]
      %v1959 = vld [vmem:[%s1934 + $0xc0] sm:$0xff]
      %v1960 = vld [vmem:[%s1934 + $0xc8] sm:$0xff]
      %v1961 = vld [vmem:[%s1934 + $0xd0] sm:$0xff]
      %v1962 = vld [vmem:[%s1934 + $0xd8] sm:$0xff]
      %v1963 = vld [vmem:[%s1934 + $0xe0] sm:$0xff]
      %v1964 = vld [vmem:[%s1934 + $0xe8] sm:$0xff]
      %v1965 = vld [vmem:[%s1934 + $0xf0] sm:$0xff]
      %v1966 = vld [vmem:[%s1934 + $0xf8] sm:$0xff]
      %1967 = vmatprep.subr.mxu0 %v1936
      %1968 = vmatpush1.msra.mxu0 %v1935
      %1969 = vmatprep.subr.mxu0 %v1938
      %1970 = vmatpush1.msra.mxu0 %v1937
      %1971 = vmatprep.subr.mxu0 %v1940
      %1972 = vmatpush1.msra.mxu0 %v1939
      %1973 = vmatprep.subr.mxu0 %v1942
      %1974 = vmatpush1.msra.mxu0 %v1941
      %1975 = vmatprep.subr.mxu0 %v1944
      %1976 = vmatpush1.msra.mxu0 %v1943
      %1977 = vmatprep.subr.mxu0 %v1946
      %1978 = vmatpush1.msra.mxu0 %v1945
      %1979 = vmatprep.subr.mxu0 %v1948
      %1980 = vmatpush1.msra.mxu0 %v1947
      %1981 = vmatprep.subr.mxu0 %v1950
      %1982 = vmatpush1.msra.mxu0 %v1949
      %1983 = vmatprep.subr.mxu0 %v1952
      %1984 = vmatpush1.msra.mxu0 %v1951
      %1985 = vmatprep.subr.mxu0 %v1954
      %1986 = vmatpush1.msra.mxu0 %v1953
      %1987 = vmatprep.subr.mxu0 %v1956
      %1988 = vmatpush1.msra.mxu0 %v1955
      %1989 = vmatprep.subr.mxu0 %v1958
      %1990 = vmatpush1.msra.mxu0 %v1957
      %1991 = vmatprep.subr.mxu0 %v1960
      %1992 = vmatpush1.msra.mxu0 %v1959
      %1993 = vmatprep.subr.mxu0 %v1962
      %1994 = vmatpush1.msra.mxu0 %v1961
      %1995 = vmatprep.subr.mxu0 %v1964
      %1996 = vmatpush1.msra.mxu0 %v1963
      %1997 = vmatprep.subr.mxu0 %v1966
      %1998 = vmatpush1.msra.mxu0 %v1965
      %1999 = vmatprep.subr.mxu0 0.0
      %2000 = vmatpush1.msra.mxu0 0.0
      %2001 = vmatprep.subr.mxu0 0.0
      %2002 = vmatpush1.msra.mxu0 0.0
      %2003 = vmatprep.subr.mxu0 0.0
      %2004 = vmatpush1.msra.mxu0 0.0
      %2005 = vmatprep.subr.mxu0 0.0
      %2006 = vmatpush1.msra.mxu0 0.0
      %2007 = vmatprep.subr.mxu0 0.0
      %2008 = vmatpush1.msra.mxu0 0.0
      %2009 = vmatprep.subr.mxu0 0.0
      %2010 = vmatpush1.msra.mxu0 0.0
      %2011 = vmatprep.subr.mxu0 0.0
      %2012 = vmatpush1.msra.mxu0 0.0
      %2013 = vmatprep.subr.mxu0 0.0
      %2014 = vmatpush1.msra.mxu0 0.0
      %2015 = vmatprep.subr.mxu0 0.0
      %2016 = vmatpush1.msra.mxu0 0.0
      %2017 = vmatprep.subr.mxu0 0.0
      %2018 = vmatpush1.msra.mxu0 0.0
      %2019 = vmatprep.subr.mxu0 0.0
      %2020 = vmatpush1.msra.mxu0 0.0
      %2021 = vmatprep.subr.mxu0 0.0
      %2022 = vmatpush1.msra.mxu0 0.0
      %2023 = vmatprep.subr.mxu0 0.0
      %2024 = vmatpush1.msra.mxu0 0.0
      %2025 = vmatprep.subr.mxu0 0.0
      %2026 = vmatpush1.msra.mxu0 0.0
      %2027 = vmatprep.subr.mxu0 0.0
      %2028 = vmatpush1.msra.mxu0 0.0
      %2029 = vmatprep.subr.mxu0 0.0
      %2030 = vmatpush1.msra.mxu0 0.0
      %2031 = vmatprep.mubr.f32.mxu0 0.0
      %2032 = vmatmul.mubr.f32.gmra.mrb[0].mxu0 %v1719
      %v2033 = vpop.f32.mrb[0].mxu0
      %v2034 = vadd.f32 0.0, %v2033
      %v2035 = vpop.f32.mrb[0].mxu0
      %v2036 = vadd.f32 0.0, %v2035
      %2037 = vdwg.mxu0
      %v2038 = vadd.f32 %v1930, %v2034
      %v2039 = vadd.f32 %v1932, %v2036
      %s2040 = scalar_lea.vmem %s7, 768
      %v2041 = vld [vmem:[%s2040] sm:$0xff]
      %v2042 = vld [vmem:[%s2040 + $0x8] sm:$0xff]
      %v2043 = vld [vmem:[%s2040 + $0x10] sm:$0xff]
      %v2044 = vld [vmem:[%s2040 + $0x18] sm:$0xff]
      %v2045 = vld [vmem:[%s2040 + $0x20] sm:$0xff]
      %v2046 = vld [vmem:[%s2040 + $0x28] sm:$0xff]
      %v2047 = vld [vmem:[%s2040 + $0x30] sm:$0xff]
      %v2048 = vld [vmem:[%s2040 + $0x38] sm:$0xff]
      %v2049 = vld [vmem:[%s2040 + $0x40] sm:$0xff]
      %v2050 = vld [vmem:[%s2040 + $0x48] sm:$0xff]
      %v2051 = vld [vmem:[%s2040 + $0x50] sm:$0xff]
      %v2052 = vld [vmem:[%s2040 + $0x58] sm:$0xff]
      %v2053 = vld [vmem:[%s2040 + $0x60] sm:$0xff]
      %v2054 = vld [vmem:[%s2040 + $0x68] sm:$0xff]
      %v2055 = vld [vmem:[%s2040 + $0x70] sm:$0xff]
      %v2056 = vld [vmem:[%s2040 + $0x78] sm:$0xff]
      %v2057 = vld [vmem:[%s2040 + $0x80] sm:$0xff]
      %v2058 = vld [vmem:[%s2040 + $0x88] sm:$0xff]
      %v2059 = vld [vmem:[%s2040 + $0x90] sm:$0xff]
      %v2060 = vld [vmem:[%s2040 + $0x98] sm:$0xff]
      %v2061 = vld [vmem:[%s2040 + $0xa0] sm:$0xff]
      %v2062 = vld [vmem:[%s2040 + $0xa8] sm:$0xff]
      %v2063 = vld [vmem:[%s2040 + $0xb0] sm:$0xff]
      %v2064 = vld [vmem:[%s2040 + $0xb8] sm:$0xff]
      %v2065 = vld [vmem:[%s2040 + $0xc0] sm:$0xff]
      %v2066 = vld [vmem:[%s2040 + $0xc8] sm:$0xff]
      %v2067 = vld [vmem:[%s2040 + $0xd0] sm:$0xff]
      %v2068 = vld [vmem:[%s2040 + $0xd8] sm:$0xff]
      %v2069 = vld [vmem:[%s2040 + $0xe0] sm:$0xff]
      %v2070 = vld [vmem:[%s2040 + $0xe8] sm:$0xff]
      %v2071 = vld [vmem:[%s2040 + $0xf0] sm:$0xff]
      %v2072 = vld [vmem:[%s2040 + $0xf8] sm:$0xff]
      %2073 = vmatprep.subr.mxu0 %v2042
      %2074 = vmatpush1.msra.mxu0 %v2041
      %2075 = vmatprep.subr.mxu0 %v2044
      %2076 = vmatpush1.msra.mxu0 %v2043
      %2077 = vmatprep.subr.mxu0 %v2046
      %2078 = vmatpush1.msra.mxu0 %v2045
      %2079 = vmatprep.subr.mxu0 %v2048
      %2080 = vmatpush1.msra.mxu0 %v2047
      %2081 = vmatprep.subr.mxu0 %v2050
      %2082 = vmatpush1.msra.mxu0 %v2049
      %2083 = vmatprep.subr.mxu0 %v2052
      %2084 = vmatpush1.msra.mxu0 %v2051
      %2085 = vmatprep.subr.mxu0 %v2054
      %2086 = vmatpush1.msra.mxu0 %v2053
      %2087 = vmatprep.subr.mxu0 %v2056
      %2088 = vmatpush1.msra.mxu0 %v2055
      %2089 = vmatprep.subr.mxu0 %v2058
      %2090 = vmatpush1.msra.mxu0 %v2057
      %2091 = vmatprep.subr.mxu0 %v2060
      %2092 = vmatpush1.msra.mxu0 %v2059
      %2093 = vmatprep.subr.mxu0 %v2062
      %2094 = vmatpush1.msra.mxu0 %v2061
      %2095 = vmatprep.subr.mxu0 %v2064
      %2096 = vmatpush1.msra.mxu0 %v2063
      %2097 = vmatprep.subr.mxu0 %v2066
      %2098 = vmatpush1.msra.mxu0 %v2065
      %2099 = vmatprep.subr.mxu0 %v2068
      %2100 = vmatpush1.msra.mxu0 %v2067
      %2101 = vmatprep.subr.mxu0 %v2070
      %2102 = vmatpush1.msra.mxu0 %v2069
      %2103 = vmatprep.subr.mxu0 %v2072
      %2104 = vmatpush1.msra.mxu0 %v2071
      %2105 = vmatprep.subr.mxu0 0.0
      %2106 = vmatpush1.msra.mxu0 0.0
      %2107 = vmatprep.subr.mxu0 0.0
      %2108 = vmatpush1.msra.mxu0 0.0
      %2109 = vmatprep.subr.mxu0 0.0
      %2110 = vmatpush1.msra.mxu0 0.0
      %2111 = vmatprep.subr.mxu0 0.0
      %2112 = vmatpush1.msra.mxu0 0.0
      %2113 = vmatprep.subr.mxu0 0.0
      %2114 = vmatpush1.msra.mxu0 0.0
      %2115 = vmatprep.subr.mxu0 0.0
      %2116 = vmatpush1.msra.mxu0 0.0
      %2117 = vmatprep.subr.mxu0 0.0
      %2118 = vmatpush1.msra.mxu0 0.0
      %2119 = vmatprep.subr.mxu0 0.0
      %2120 = vmatpush1.msra.mxu0 0.0
      %2121 = vmatprep.subr.mxu0 0.0
      %2122 = vmatpush1.msra.mxu0 0.0
      %2123 = vmatprep.subr.mxu0 0.0
      %2124 = vmatpush1.msra.mxu0 0.0
      %2125 = vmatprep.subr.mxu0 0.0
      %2126 = vmatpush1.msra.mxu0 0.0
      %2127 = vmatprep.subr.mxu0 0.0
      %2128 = vmatpush1.msra.mxu0 0.0
      %2129 = vmatprep.subr.mxu0 0.0
      %2130 = vmatpush1.msra.mxu0 0.0
      %2131 = vmatprep.subr.mxu0 0.0
      %2132 = vmatpush1.msra.mxu0 0.0
      %2133 = vmatprep.subr.mxu0 0.0
      %2134 = vmatpush1.msra.mxu0 0.0
      %2135 = vmatprep.subr.mxu0 0.0
      %2136 = vmatpush1.msra.mxu0 0.0
      %2137 = vmatprep.mubr.f32.mxu0 0.0
      %2138 = vmatmul.mubr.f32.gmra.mrb[0].mxu0 %v1724
      %v2139 = vpop.f32.mrb[0].mxu0
      %v2140 = vadd.f32 0.0, %v2139
      %v2141 = vpop.f32.mrb[0].mxu0
      %v2142 = vadd.f32 0.0, %v2141
      %2143 = vdwg.mxu0
      %v2144 = vadd.f32 %v2038, %v2140
      %v2145 = vadd.f32 %v2039, %v2142
      %v2146 = vrot.slane %v2144, 4
      %v2147 = vadd.f32 %v2144, %v2146
      %v2148 = vrot.slane %v2147, 2
      %v2149 = vadd.f32 %v2147, %v2148
      %v2150 = vrot.slane %v2149, 1
      %v2151 = vadd.f32 %v2149, %v2150
      %v2152 = vrot.slane %v2145, 4
      %v2153 = vadd.f32 %v2145, %v2152
      %v2154 = vrot.slane %v2153, 2
      %v2155 = vadd.f32 %v2153, %v2154
      %v2156 = vrot.slane %v2155, 1
      %v2157 = vadd.f32 %v2155, %v2156
      %v2158 = vrcp.pop 8.0
      %v2159 = vmul.f32 %v2151, %v2158
      %v2160 = vmul.f32 %v2157, %v2158
      %v2161 = vsub.f32 %v2144, %v2159
      %v2162 = vsub.f32 %v2145, %v2160
      %v2163 = vmul.f32 %v2161, %v2161
      %v2164 = vmul.f32 %v2162, %v2162
      %v2165 = vrot.slane %v2163, 4
      %v2166 = vadd.f32 %v2163, %v2165
      %v2167 = vrot.slane %v2166, 2
      %v2168 = vadd.f32 %v2166, %v2167
      %v2169 = vrot.slane %v2168, 1
      %v2170 = vadd.f32 %v2168, %v2169
      %v2171 = vrot.slane %v2164, 4
      %v2172 = vadd.f32 %v2164, %v2171
      %v2173 = vrot.slane %v2172, 2
      %v2174 = vadd.f32 %v2172, %v2173
      %v2175 = vrot.slane %v2174, 1
      %v2176 = vadd.f32 %v2174, %v2175
      %v2177 = vmul.f32 %v2170, %v2158
      %v2178 = vmul.f32 %v2176, %v2158
      %v2179 = vadd.f32 %v2177, 1e-05
      %v2180 = vadd.f32 %v2178, 1e-05
      %v2181 = vrsqrt.pop %v2179
      %v2182 = vrsqrt.pop %v2180
      %v2183 = vmul.f32 %v2161, %v2181
      %v2184 = vmul.f32 %v2162, %v2182
      %v2185 = vmul.f32 %v2183, 0.2
      %v2186 = vmul.f32 %v2184, 0.2
      %v2187 = vmax.f32 %v2183, %v2185
      %v2188 = vmax.f32 %v2184, %v2186
      %v2189 = vld [vmem:[%s8] sm:$0xff]
      %v2190 = vld [vmem:[%s8 + $0x8] sm:$0xff]
      %v2191 = vld [vmem:[%s8 + $0x10] sm:$0xff]
      %v2192 = vld [vmem:[%s8 + $0x18] sm:$0xff]
      %vm2193 = vcmask 64512
      %v2195 = vsel %vm2193, %v2189, 0
      %v2198 = vsel %vm2193, %v2190, 0
      %v2201 = vsel %vm2193, %v2191, 0
      %v2204 = vsel %vm2193, %v2192, 0
      %2206 = vmatprep.subr.mxu0 %v2188
      %2207 = vmatpush1.msra.mxu0 %v2187
      %2208 = vmatprep.subr.mxu0 0.0
      %2209 = vmatpush1.msra.mxu0 0.0
      %2210 = vmatprep.subr.mxu0 0.0
      %2211 = vmatpush1.msra.mxu0 0.0
      %2212 = vmatprep.subr.mxu0 0.0
      %2213 = vmatpush1.msra.mxu0 0.0
      %2214 = vmatprep.subr.mxu0 0.0
      %2215 = vmatpush1.msra.mxu0 0.0
      %2216 = vmatprep.subr.mxu0 0.0
      %2217 = vmatpush1.msra.mxu0 0.0
      %2218 = vmatprep.subr.mxu0 0.0
      %2219 = vmatpush1.msra.mxu0 0.0
      %2220 = vmatprep.subr.mxu0 0.0
      %2221 = vmatpush1.msra.mxu0 0.0
      %2222 = vmatprep.subr.mxu0 0.0
      %2223 = vmatpush1.msra.mxu0 0.0
      %2224 = vmatprep.subr.mxu0 0.0
      %2225 = vmatpush1.msra.mxu0 0.0
      %2226 = vmatprep.subr.mxu0 0.0
      %2227 = vmatpush1.msra.mxu0 0.0
      %2228 = vmatprep.subr.mxu0 0.0
      %2229 = vmatpush1.msra.mxu0 0.0
      %2230 = vmatprep.subr.mxu0 0.0
      %2231 = vmatpush1.msra.mxu0 0.0
      %2232 = vmatprep.subr.mxu0 0.0
      %2233 = vmatpush1.msra.mxu0 0.0
      %2234 = vmatprep.subr.mxu0 0.0
      %2235 = vmatpush1.msra.mxu0 0.0
      %2236 = vmatprep.subr.mxu0 0.0
      %2237 = vmatpush1.msra.mxu0 0.0
      %2238 = vmatprep.subr.mxu0 0.0
      %2239 = vmatpush1.msra.mxu0 0.0
      %2240 = vmatprep.subr.mxu0 0.0
      %2241 = vmatpush1.msra.mxu0 0.0
      %2242 = vmatprep.subr.mxu0 0.0
      %2243 = vmatpush1.msra.mxu0 0.0
      %2244 = vmatprep.subr.mxu0 0.0
      %2245 = vmatpush1.msra.mxu0 0.0
      %2246 = vmatprep.subr.mxu0 0.0
      %2247 = vmatpush1.msra.mxu0 0.0
      %2248 = vmatprep.subr.mxu0 0.0
      %2249 = vmatpush1.msra.mxu0 0.0
      %2250 = vmatprep.subr.mxu0 0.0
      %2251 = vmatpush1.msra.mxu0 0.0
      %2252 = vmatprep.subr.mxu0 0.0
      %2253 = vmatpush1.msra.mxu0 0.0
      %2254 = vmatprep.subr.mxu0 0.0
      %2255 = vmatpush1.msra.mxu0 0.0
      %2256 = vmatprep.subr.mxu0 0.0
      %2257 = vmatpush1.msra.mxu0 0.0
      %2258 = vmatprep.subr.mxu0 0.0
      %2259 = vmatpush1.msra.mxu0 0.0
      %2260 = vmatprep.subr.mxu0 0.0
      %2261 = vmatpush1.msra.mxu0 0.0
      %2262 = vmatprep.subr.mxu0 0.0
      %2263 = vmatpush1.msra.mxu0 0.0
      %2264 = vmatprep.subr.mxu0 0.0
      %2265 = vmatpush1.msra.mxu0 0.0
      %2266 = vmatprep.subr.mxu0 0.0
      %2267 = vmatpush1.msra.mxu0 0.0
      %2268 = vmatprep.subr.mxu0 0.0
      %2269 = vmatpush1.msra.mxu0 0.0
      %2270 = vmatprep.mubr.f32.mxu0 0.0
      %2271 = vmatmul.mubr.f32.gmra.mrb[0].mxu0 %v2195
      %v2272 = vpop.f32.mrb[0].mxu0
      %v2273 = vadd.f32 0.0, %v2272
      %v2274 = vpop.f32.mrb[0].mxu0
      %v2275 = vadd.f32 0.0, %v2274
      %2276 = vmatprep.mubr.f32.mxu0 0.0
      %2277 = vmatmul.mubr.f32.gmra.mrb[0].mxu0 %v2198
      %v2278 = vpop.f32.mrb[0].mxu0
      %v2279 = vadd.f32 0.0, %v2278
      %v2280 = vpop.f32.mrb[0].mxu0
      %v2281 = vadd.f32 0.0, %v2280
      %2282 = vmatprep.mubr.f32.mxu0 0.0
      %2283 = vmatmul.mubr.f32.gmra.mrb[0].mxu0 %v2201
      %v2284 = vpop.f32.mrb[0].mxu0
      %v2285 = vadd.f32 0.0, %v2284
      %v2286 = vpop.f32.mrb[0].mxu0
      %v2287 = vadd.f32 0.0, %v2286
      %2288 = vmatprep.mubr.f32.mxu0 0.0
      %2289 = vmatmul.mubr.f32.gmra.mrb[0].mxu0 %v2204
      %v2290 = vpop.f32.mrb[0].mxu0
      %v2291 = vadd.f32 0.0, %v2290
      %v2292 = vpop.f32.mrb[0].mxu0
      %v2293 = vadd.f32 0.0, %v2292
      %2294 = vdwg.mxu0
      %v2295 = vld [vmem:[%s9] sm:$0xff]
      %v2296 = vld [vmem:[%s9 + $0x8] sm:$0xff]
      %v2297 = vld [vmem:[%s9 + $0x10] sm:$0xff]
      %v2298 = vld [vmem:[%s9 + $0x18] sm:$0xff]
      %v2299 = vld [vmem:[%s9 + $0x20] sm:$0xff]
      %v2300 = vld [vmem:[%s9 + $0x28] sm:$0xff]
      %v2301 = vld [vmem:[%s9 + $0x30] sm:$0xff]
      %v2302 = vld [vmem:[%s9 + $0x38] sm:$0xff]
      %v2303 = vld [vmem:[%s9 + $0x40] sm:$0xff]
      %v2304 = vld [vmem:[%s9 + $0x48] sm:$0xff]
      %v2305 = vld [vmem:[%s9 + $0x50] sm:$0xff]
      %v2306 = vld [vmem:[%s9 + $0x58] sm:$0xff]
      %v2307 = vld [vmem:[%s9 + $0x60] sm:$0xff]
      %v2308 = vld [vmem:[%s9 + $0x68] sm:$0xff]
      %v2309 = vld [vmem:[%s9 + $0x70] sm:$0xff]
      %v2310 = vld [vmem:[%s9 + $0x78] sm:$0xff]
      %v2311 = vld [vmem:[%s9 + $0x80] sm:$0xff]
      %v2312 = vld [vmem:[%s9 + $0x88] sm:$0xff]
      %v2313 = vld [vmem:[%s9 + $0x90] sm:$0xff]
      %v2314 = vld [vmem:[%s9 + $0x98] sm:$0xff]
      %v2315 = vld [vmem:[%s9 + $0xa0] sm:$0xff]
      %v2316 = vld [vmem:[%s9 + $0xa8] sm:$0xff]
      %v2317 = vld [vmem:[%s9 + $0xb0] sm:$0xff]
      %v2318 = vld [vmem:[%s9 + $0xb8] sm:$0xff]
      %v2319 = vld [vmem:[%s9 + $0xc0] sm:$0xff]
      %v2320 = vld [vmem:[%s9 + $0xc8] sm:$0xff]
      %v2321 = vld [vmem:[%s9 + $0xd0] sm:$0xff]
      %v2322 = vld [vmem:[%s9 + $0xd8] sm:$0xff]
      %v2323 = vld [vmem:[%s9 + $0xe0] sm:$0xff]
      %v2324 = vld [vmem:[%s9 + $0xe8] sm:$0xff]
      %v2325 = vld [vmem:[%s9 + $0xf0] sm:$0xff]
      %v2326 = vld [vmem:[%s9 + $0xf8] sm:$0xff]
      %v2327 = vld [vmem:[%s9 + $0x100] sm:$0xff]
      %v2328 = vld [vmem:[%s9 + $0x108] sm:$0xff]
      %v2329 = vld [vmem:[%s9 + $0x110] sm:$0xff]
      %v2330 = vld [vmem:[%s9 + $0x118] sm:$0xff]
      %v2331 = vld [vmem:[%s9 + $0x120] sm:$0xff]
      %v2332 = vld [vmem:[%s9 + $0x128] sm:$0xff]
      %v2333 = vld [vmem:[%s9 + $0x130] sm:$0xff]
      %v2334 = vld [vmem:[%s9 + $0x138] sm:$0xff]
      %v2335 = vld [vmem:[%s9 + $0x140] sm:$0xff]
      %v2336 = vld [vmem:[%s9 + $0x148] sm:$0xff]
      %v2337 = vld [vmem:[%s9 + $0x150] sm:$0xff]
      %v2338 = vld [vmem:[%s9 + $0x158] sm:$0xff]
      %v2339 = vld [vmem:[%s9 + $0x160] sm:$0xff]
      %v2340 = vld [vmem:[%s9 + $0x168] sm:$0xff]
      %v2341 = vld [vmem:[%s9 + $0x170] sm:$0xff]
      %v2342 = vld [vmem:[%s9 + $0x178] sm:$0xff]
      %v2343 = vld [vmem:[%s9 + $0x180] sm:$0xff]
      %v2344 = vld [vmem:[%s9 + $0x188] sm:$0xff]
      %v2345 = vld [vmem:[%s9 + $0x190] sm:$0xff]
      %v2346 = vld [vmem:[%s9 + $0x198] sm:$0xff]
      %v2347 = vld [vmem:[%s9 + $0x1a0] sm:$0xff]
      %v2348 = vld [vmem:[%s9 + $0x1a8] sm:$0xff]
      %v2349 = vld [vmem:[%s9 + $0x1b0] sm:$0xff]
      %v2350 = vld [vmem:[%s9 + $0x1b8] sm:$0xff]
      %v2351 = vld [vmem:[%s9 + $0x1c0] sm:$0xff]
      %v2352 = vld [vmem:[%s9 + $0x1c8] sm:$0xff]
      %v2353 = vld [vmem:[%s9 + $0x1d0] sm:$0xff]
      %v2354 = vld [vmem:[%s9 + $0x1d8] sm:$0xff]
      %v2355 = vld [vmem:[%s9 + $0x1e0] sm:$0xff]
      %v2356 = vld [vmem:[%s9 + $0x1e8] sm:$0xff]
      %v2357 = vld [vmem:[%s9 + $0x1f0] sm:$0xff]
      %v2358 = vld [vmem:[%s9 + $0x1f8] sm:$0xff]
      %v2359 = vld [vmem:[%s9 + $0x200] sm:$0xff]
      %v2360 = vld [vmem:[%s9 + $0x208] sm:$0xff]
      %v2361 = vld [vmem:[%s9 + $0x210] sm:$0xff]
      %v2362 = vld [vmem:[%s9 + $0x218] sm:$0xff]
      %v2363 = vld [vmem:[%s9 + $0x220] sm:$0xff]
      %v2364 = vld [vmem:[%s9 + $0x228] sm:$0xff]
      %v2365 = vld [vmem:[%s9 + $0x230] sm:$0xff]
      %v2366 = vld [vmem:[%s9 + $0x238] sm:$0xff]
      %v2367 = vld [vmem:[%s9 + $0x240] sm:$0xff]
      %v2368 = vld [vmem:[%s9 + $0x248] sm:$0xff]
      %v2369 = vld [vmem:[%s9 + $0x250] sm:$0xff]
      %v2370 = vld [vmem:[%s9 + $0x258] sm:$0xff]
      %v2371 = vld [vmem:[%s9 + $0x260] sm:$0xff]
      %v2372 = vld [vmem:[%s9 + $0x268] sm:$0xff]
      %v2373 = vld [vmem:[%s9 + $0x270] sm:$0xff]
      %v2374 = vld [vmem:[%s9 + $0x278] sm:$0xff]
      %v2375 = vld [vmem:[%s9 + $0x280] sm:$0xff]
      %v2376 = vld [vmem:[%s9 + $0x288] sm:$0xff]
      %v2377 = vld [vmem:[%s9 + $0x290] sm:$0xff]
      %v2378 = vld [vmem:[%s9 + $0x298] sm:$0xff]
      %v2379 = vld [vmem:[%s9 + $0x2a0] sm:$0xff]
      %v2380 = vld [vmem:[%s9 + $0x2a8] sm:$0xff]
      %v2381 = vld [vmem:[%s9 + $0x2b0] sm:$0xff]
      %v2382 = vld [vmem:[%s9 + $0x2b8] sm:$0xff]
      %v2383 = vld [vmem:[%s9 + $0x2c0] sm:$0xff]
      %v2384 = vld [vmem:[%s9 + $0x2c8] sm:$0xff]
      %v2385 = vld [vmem:[%s9 + $0x2d0] sm:$0xff]
      %v2386 = vld [vmem:[%s9 + $0x2d8] sm:$0xff]
      %v2387 = vld [vmem:[%s9 + $0x2e0] sm:$0xff]
      %v2388 = vld [vmem:[%s9 + $0x2e8] sm:$0xff]
      %v2389 = vld [vmem:[%s9 + $0x2f0] sm:$0xff]
      %v2390 = vld [vmem:[%s9 + $0x2f8] sm:$0xff]
      %v2391 = vld [vmem:[%s9 + $0x300] sm:$0xff]
      %v2392 = vld [vmem:[%s9 + $0x308] sm:$0xff]
      %v2393 = vld [vmem:[%s9 + $0x310] sm:$0xff]
      %v2394 = vld [vmem:[%s9 + $0x318] sm:$0xff]
      %v2395 = vld [vmem:[%s9 + $0x320] sm:$0xff]
      %v2396 = vld [vmem:[%s9 + $0x328] sm:$0xff]
      %v2397 = vld [vmem:[%s9 + $0x330] sm:$0xff]
      %v2398 = vld [vmem:[%s9 + $0x338] sm:$0xff]
      %v2399 = vld [vmem:[%s9 + $0x340] sm:$0xff]
      %v2400 = vld [vmem:[%s9 + $0x348] sm:$0xff]
      %v2401 = vld [vmem:[%s9 + $0x350] sm:$0xff]
      %v2402 = vld [vmem:[%s9 + $0x358] sm:$0xff]
      %v2403 = vld [vmem:[%s9 + $0x360] sm:$0xff]
      %v2404 = vld [vmem:[%s9 + $0x368] sm:$0xff]
      %v2405 = vld [vmem:[%s9 + $0x370] sm:$0xff]
      %v2406 = vld [vmem:[%s9 + $0x378] sm:$0xff]
      %v2407 = vld [vmem:[%s9 + $0x380] sm:$0xff]
      %v2408 = vld [vmem:[%s9 + $0x388] sm:$0xff]
      %v2409 = vld [vmem:[%s9 + $0x390] sm:$0xff]
      %v2410 = vld [vmem:[%s9 + $0x398] sm:$0xff]
      %v2411 = vld [vmem:[%s9 + $0x3a0] sm:$0xff]
      %v2412 = vld [vmem:[%s9 + $0x3a8] sm:$0xff]
      %v2413 = vld [vmem:[%s9 + $0x3b0] sm:$0xff]
      %v2414 = vld [vmem:[%s9 + $0x3b8] sm:$0xff]
      %v2415 = vld [vmem:[%s9 + $0x3c0] sm:$0xff]
      %v2416 = vld [vmem:[%s9 + $0x3c8] sm:$0xff]
      %v2417 = vld [vmem:[%s9 + $0x3d0] sm:$0xff]
      %v2418 = vld [vmem:[%s9 + $0x3d8] sm:$0xff]
      %v2419 = vld [vmem:[%s9 + $0x3e0] sm:$0xff]
      %v2420 = vld [vmem:[%s9 + $0x3e8] sm:$0xff]
      %v2421 = vld [vmem:[%s9 + $0x3f0] sm:$0xff]
      %v2422 = vld [vmem:[%s9 + $0x3f8] sm:$0xff]
      %s2423 = scalar_lea.vmem %s9, 1024
      %v2424 = vld [vmem:[%s2423] sm:$0xff]
      %v2425 = vld [vmem:[%s2423 + $0x8] sm:$0xff]
      %v2426 = vld [vmem:[%s2423 + $0x10] sm:$0xff]
      %v2427 = vld [vmem:[%s2423 + $0x18] sm:$0xff]
      %v2428 = vld [vmem:[%s2423 + $0x20] sm:$0xff]
      %v2429 = vld [vmem:[%s2423 + $0x28] sm:$0xff]
      %v2430 = vld [vmem:[%s2423 + $0x30] sm:$0xff]
      %v2431 = vld [vmem:[%s2423 + $0x38] sm:$0xff]
      %v2432 = vld [vmem:[%s2423 + $0x40] sm:$0xff]
      %v2433 = vld [vmem:[%s2423 + $0x48] sm:$0xff]
      %v2434 = vld [vmem:[%s2423 + $0x50] sm:$0xff]
      %v2435 = vld [vmem:[%s2423 + $0x58] sm:$0xff]
      %v2436 = vld [vmem:[%s2423 + $0x60] sm:$0xff]
      %v2437 = vld [vmem:[%s2423 + $0x68] sm:$0xff]
      %v2438 = vld [vmem:[%s2423 + $0x70] sm:$0xff]
      %v2439 = vld [vmem:[%s2423 + $0x78] sm:$0xff]
      %v2440 = vld [vmem:[%s2423 + $0x80] sm:$0xff]
      %v2441 = vld [vmem:[%s2423 + $0x88] sm:$0xff]
      %v2442 = vld [vmem:[%s2423 + $0x90] sm:$0xff]
      %v2443 = vld [vmem:[%s2423 + $0x98] sm:$0xff]
      %v2444 = vld [vmem:[%s2423 + $0xa0] sm:$0xff]
      %v2445 = vld [vmem:[%s2423 + $0xa8] sm:$0xff]
      %v2446 = vld [vmem:[%s2423 + $0xb0] sm:$0xff]
      %v2447 = vld [vmem:[%s2423 + $0xb8] sm:$0xff]
      %v2448 = vld [vmem:[%s2423 + $0xc0] sm:$0xff]
      %v2449 = vld [vmem:[%s2423 + $0xc8] sm:$0xff]
      %v2450 = vld [vmem:[%s2423 + $0xd0] sm:$0xff]
      %v2451 = vld [vmem:[%s2423 + $0xd8] sm:$0xff]
      %v2452 = vld [vmem:[%s2423 + $0xe0] sm:$0xff]
      %v2453 = vld [vmem:[%s2423 + $0xe8] sm:$0xff]
      %v2454 = vld [vmem:[%s2423 + $0xf0] sm:$0xff]
      %v2455 = vld [vmem:[%s2423 + $0xf8] sm:$0xff]
      %v2456 = vld [vmem:[%s2423 + $0x100] sm:$0xff]
      %v2457 = vld [vmem:[%s2423 + $0x108] sm:$0xff]
      %v2458 = vld [vmem:[%s2423 + $0x110] sm:$0xff]
      %v2459 = vld [vmem:[%s2423 + $0x118] sm:$0xff]
      %v2460 = vld [vmem:[%s2423 + $0x120] sm:$0xff]
      %v2461 = vld [vmem:[%s2423 + $0x128] sm:$0xff]
      %v2462 = vld [vmem:[%s2423 + $0x130] sm:$0xff]
      %v2463 = vld [vmem:[%s2423 + $0x138] sm:$0xff]
      %v2464 = vld [vmem:[%s2423 + $0x140] sm:$0xff]
      %v2465 = vld [vmem:[%s2423 + $0x148] sm:$0xff]
      %v2466 = vld [vmem:[%s2423 + $0x150] sm:$0xff]
      %v2467 = vld [vmem:[%s2423 + $0x158] sm:$0xff]
      %v2468 = vld [vmem:[%s2423 + $0x160] sm:$0xff]
      %v2469 = vld [vmem:[%s2423 + $0x168] sm:$0xff]
      %v2470 = vld [vmem:[%s2423 + $0x170] sm:$0xff]
      %v2471 = vld [vmem:[%s2423 + $0x178] sm:$0xff]
      %v2472 = vld [vmem:[%s2423 + $0x180] sm:$0xff]
      %v2473 = vld [vmem:[%s2423 + $0x188] sm:$0xff]
      %v2474 = vld [vmem:[%s2423 + $0x190] sm:$0xff]
      %v2475 = vld [vmem:[%s2423 + $0x198] sm:$0xff]
      %v2476 = vld [vmem:[%s2423 + $0x1a0] sm:$0xff]
      %v2477 = vld [vmem:[%s2423 + $0x1a8] sm:$0xff]
      %v2478 = vld [vmem:[%s2423 + $0x1b0] sm:$0xff]
      %v2479 = vld [vmem:[%s2423 + $0x1b8] sm:$0xff]
      %v2480 = vld [vmem:[%s2423 + $0x1c0] sm:$0xff]
      %v2481 = vld [vmem:[%s2423 + $0x1c8] sm:$0xff]
      %v2482 = vld [vmem:[%s2423 + $0x1d0] sm:$0xff]
      %v2483 = vld [vmem:[%s2423 + $0x1d8] sm:$0xff]
      %v2484 = vld [vmem:[%s2423 + $0x1e0] sm:$0xff]
      %v2485 = vld [vmem:[%s2423 + $0x1e8] sm:$0xff]
      %v2486 = vld [vmem:[%s2423 + $0x1f0] sm:$0xff]
      %v2487 = vld [vmem:[%s2423 + $0x1f8] sm:$0xff]
      %v2488 = vld [vmem:[%s2423 + $0x200] sm:$0xff]
      %v2489 = vld [vmem:[%s2423 + $0x208] sm:$0xff]
      %v2490 = vld [vmem:[%s2423 + $0x210] sm:$0xff]
      %v2491 = vld [vmem:[%s2423 + $0x218] sm:$0xff]
      %v2492 = vld [vmem:[%s2423 + $0x220] sm:$0xff]
      %v2493 = vld [vmem:[%s2423 + $0x228] sm:$0xff]
      %v2494 = vld [vmem:[%s2423 + $0x230] sm:$0xff]
      %v2495 = vld [vmem:[%s2423 + $0x238] sm:$0xff]
      %v2496 = vld [vmem:[%s2423 + $0x240] sm:$0xff]
      %v2497 = vld [vmem:[%s2423 + $0x248] sm:$0xff]
      %v2498 = vld [vmem:[%s2423 + $0x250] sm:$0xff]
      %v2499 = vld [vmem:[%s2423 + $0x258] sm:$0xff]
      %v2500 = vld [vmem:[%s2423 + $0x260] sm:$0xff]
      %v2501 = vld [vmem:[%s2423 + $0x268] sm:$0xff]
      %v2502 = vld [vmem:[%s2423 + $0x270] sm:$0xff]
      %v2503 = vld [vmem:[%s2423 + $0x278] sm:$0xff]
      %v2504 = vld [vmem:[%s2423 + $0x280] sm:$0xff]
      %v2505 = vld [vmem:[%s2423 + $0x288] sm:$0xff]
      %v2506 = vld [vmem:[%s2423 + $0x290] sm:$0xff]
      %v2507 = vld [vmem:[%s2423 + $0x298] sm:$0xff]
      %v2508 = vld [vmem:[%s2423 + $0x2a0] sm:$0xff]
      %v2509 = vld [vmem:[%s2423 + $0x2a8] sm:$0xff]
      %v2510 = vld [vmem:[%s2423 + $0x2b0] sm:$0xff]
      %v2511 = vld [vmem:[%s2423 + $0x2b8] sm:$0xff]
      %v2512 = vld [vmem:[%s2423 + $0x2c0] sm:$0xff]
      %v2513 = vld [vmem:[%s2423 + $0x2c8] sm:$0xff]
      %v2514 = vld [vmem:[%s2423 + $0x2d0] sm:$0xff]
      %v2515 = vld [vmem:[%s2423 + $0x2d8] sm:$0xff]
      %v2516 = vld [vmem:[%s2423 + $0x2e0] sm:$0xff]
      %v2517 = vld [vmem:[%s2423 + $0x2e8] sm:$0xff]
      %v2518 = vld [vmem:[%s2423 + $0x2f0] sm:$0xff]
      %v2519 = vld [vmem:[%s2423 + $0x2f8] sm:$0xff]
      %v2520 = vld [vmem:[%s2423 + $0x300] sm:$0xff]
      %v2521 = vld [vmem:[%s2423 + $0x308] sm:$0xff]
      %v2522 = vld [vmem:[%s2423 + $0x310] sm:$0xff]
      %v2523 = vld [vmem:[%s2423 + $0x318] sm:$0xff]
      %v2524 = vld [vmem:[%s2423 + $0x320] sm:$0xff]
      %v2525 = vld [vmem:[%s2423 + $0x328] sm:$0xff]
      %v2526 = vld [vmem:[%s2423 + $0x330] sm:$0xff]
      %v2527 = vld [vmem:[%s2423 + $0x338] sm:$0xff]
      %v2528 = vld [vmem:[%s2423 + $0x340] sm:$0xff]
      %v2529 = vld [vmem:[%s2423 + $0x348] sm:$0xff]
      %v2530 = vld [vmem:[%s2423 + $0x350] sm:$0xff]
      %v2531 = vld [vmem:[%s2423 + $0x358] sm:$0xff]
      %v2532 = vld [vmem:[%s2423 + $0x360] sm:$0xff]
      %v2533 = vld [vmem:[%s2423 + $0x368] sm:$0xff]
      %v2534 = vld [vmem:[%s2423 + $0x370] sm:$0xff]
      %v2535 = vld [vmem:[%s2423 + $0x378] sm:$0xff]
      %v2536 = vld [vmem:[%s2423 + $0x380] sm:$0xff]
      %v2537 = vld [vmem:[%s2423 + $0x388] sm:$0xff]
      %v2538 = vld [vmem:[%s2423 + $0x390] sm:$0xff]
      %v2539 = vld [vmem:[%s2423 + $0x398] sm:$0xff]
      %v2540 = vld [vmem:[%s2423 + $0x3a0] sm:$0xff]
      %v2541 = vld [vmem:[%s2423 + $0x3a8] sm:$0xff]
      %v2542 = vld [vmem:[%s2423 + $0x3b0] sm:$0xff]
      %v2543 = vld [vmem:[%s2423 + $0x3b8] sm:$0xff]
      %v2544 = vld [vmem:[%s2423 + $0x3c0] sm:$0xff]
      %v2545 = vld [vmem:[%s2423 + $0x3c8] sm:$0xff]
      %v2546 = vld [vmem:[%s2423 + $0x3d0] sm:$0xff]
      %v2547 = vld [vmem:[%s2423 + $0x3d8] sm:$0xff]
      %v2548 = vld [vmem:[%s2423 + $0x3e0] sm:$0xff]
      %v2549 = vld [vmem:[%s2423 + $0x3e8] sm:$0xff]
      %v2550 = vld [vmem:[%s2423 + $0x3f0] sm:$0xff]
      %v2551 = vld [vmem:[%s2423 + $0x3f8] sm:$0xff]
      %2552 = vmatprep.subr.mxu0 %v2425
      %2553 = vmatpush1.msra.mxu0 %v2424
      %2554 = vmatprep.subr.mxu0 %v2429
      %2555 = vmatpush1.msra.mxu0 %v2428
      %2556 = vmatprep.subr.mxu0 %v2433
      %2557 = vmatpush1.msra.mxu0 %v2432
      %2558 = vmatprep.subr.mxu0 %v2437
      %2559 = vmatpush1.msra.mxu0 %v2436
      %2560 = vmatprep.subr.mxu0 %v2441
      %2561 = vmatpush1.msra.mxu0 %v2440
      %2562 = vmatprep.subr.mxu0 %v2445
      %2563 = vmatpush1.msra.mxu0 %v2444
      %2564 = vmatprep.subr.mxu0 %v2449
      %2565 = vmatpush1.msra.mxu0 %v2448
      %2566 = vmatprep.subr.mxu0 %v2453
      %2567 = vmatpush1.msra.mxu0 %v2452
      %2568 = vmatprep.subr.mxu0 %v2457
      %2569 = vmatpush1.msra.mxu0 %v2456
      %2570 = vmatprep.subr.mxu0 %v2461
      %2571 = vmatpush1.msra.mxu0 %v2460
      %2572 = vmatprep.subr.mxu0 %v2465
      %2573 = vmatpush1.msra.mxu0 %v2464
      %2574 = vmatprep.subr.mxu0 %v2469
      %2575 = vmatpush1.msra.mxu0 %v2468
      %2576 = vmatprep.subr.mxu0 %v2473
      %2577 = vmatpush1.msra.mxu0 %v2472
      %2578 = vmatprep.subr.mxu0 %v2477
      %2579 = vmatpush1.msra.mxu0 %v2476
      %2580 = vmatprep.subr.mxu0 %v2481
      %2581 = vmatpush1.msra.mxu0 %v2480
      %2582 = vmatprep.subr.mxu0 %v2485
      %2583 = vmatpush1.msra.mxu0 %v2484
      %2584 = vmatprep.subr.mxu0 %v2489
      %2585 = vmatpush1.msra.mxu0 %v2488
      %2586 = vmatprep.subr.mxu0 %v2493
      %2587 = vmatpush1.msra.mxu0 %v2492
      %2588 = vmatprep.subr.mxu0 %v2497
      %2589 = vmatpush1.msra.mxu0 %v2496
      %2590 = vmatprep.subr.mxu0 %v2501
      %2591 = vmatpush1.msra.mxu0 %v2500
      %2592 = vmatprep.subr.mxu0 %v2505
      %2593 = vmatpush1.msra.mxu0 %v2504
      %2594 = vmatprep.subr.mxu0 %v2509
      %2595 = vmatpush1.msra.mxu0 %v2508
      %2596 = vmatprep.subr.mxu0 %v2513
      %2597 = vmatpush1.msra.mxu0 %v2512
      %2598 = vmatprep.subr.mxu0 %v2517
      %2599 = vmatpush1.msra.mxu0 %v2516
      %2600 = vmatprep.subr.mxu0 %v2521
      %2601 = vmatpush1.msra.mxu0 %v2520
      %2602 = vmatprep.subr.mxu0 %v2525
      %2603 = vmatpush1.msra.mxu0 %v2524
      %2604 = vmatprep.subr.mxu0 %v2529
      %2605 = vmatpush1.msra.mxu0 %v2528
      %2606 = vmatprep.subr.mxu0 %v2533
      %2607 = vmatpush1.msra.mxu0 %v2532
      %2608 = vmatprep.subr.mxu0 %v2537
      %2609 = vmatpush1.msra.mxu0 %v2536
      %2610 = vmatprep.subr.mxu0 %v2541
      %2611 = vmatpush1.msra.mxu0 %v2540
      %2612 = vmatprep.subr.mxu0 %v2545
      %2613 = vmatpush1.msra.mxu0 %v2544
      %2614 = vmatprep.subr.mxu0 %v2549
      %2615 = vmatpush1.msra.mxu0 %v2548
      %2616 = vmatprep.mubr.f32.mxu0 %v2281
      %2617 = vmatmul.mubr.f32.gmra.mrb[0].mxu0 %v2279
      %v2618 = vpop.f32.mrb[0].mxu0
      %v2619 = vadd.f32 0.0, %v2618
      %v2620 = vpop.f32.mrb[0].mxu0
      %v2621 = vadd.f32 0.0, %v2620
      %2622 = vdwg.mxu0
      %2623 = vmatprep.subr.mxu0 %v2427
      %2624 = vmatpush1.msra.mxu0 %v2426
      %2625 = vmatprep.subr.mxu0 %v2431
      %2626 = vmatpush1.msra.mxu0 %v2430
      %2627 = vmatprep.subr.mxu0 %v2435
      %2628 = vmatpush1.msra.mxu0 %v2434
      %2629 = vmatprep.subr.mxu0 %v2439
      %2630 = vmatpush1.msra.mxu0 %v2438
      %2631 = vmatprep.subr.mxu0 %v2443
      %2632 = vmatpush1.msra.mxu0 %v2442
      %2633 = vmatprep.subr.mxu0 %v2447
      %2634 = vmatpush1.msra.mxu0 %v2446
      %2635 = vmatprep.subr.mxu0 %v2451
      %2636 = vmatpush1.msra.mxu0 %v2450
      %2637 = vmatprep.subr.mxu0 %v2455
      %2638 = vmatpush1.msra.mxu0 %v2454
      %2639 = vmatprep.subr.mxu0 %v2459
      %2640 = vmatpush1.msra.mxu0 %v2458
      %2641 = vmatprep.subr.mxu0 %v2463
      %2642 = vmatpush1.msra.mxu0 %v2462
      %2643 = vmatprep.subr.mxu0 %v2467
      %2644 = vmatpush1.msra.mxu0 %v2466
      %2645 = vmatprep.subr.mxu0 %v2471
      %2646 = vmatpush1.msra.mxu0 %v2470
      %2647 = vmatprep.subr.mxu0 %v2475
      %2648 = vmatpush1.msra.mxu0 %v2474
      %2649 = vmatprep.subr.mxu0 %v2479
      %2650 = vmatpush1.msra.mxu0 %v2478
      %2651 = vmatprep.subr.mxu0 %v2483
      %2652 = vmatpush1.msra.mxu0 %v2482
      %2653 = vmatprep.subr.mxu0 %v2487
      %2654 = vmatpush1.msra.mxu0 %v2486
      %2655 = vmatprep.subr.mxu0 %v2491
      %2656 = vmatpush1.msra.mxu0 %v2490
      %2657 = vmatprep.subr.mxu0 %v2495
      %2658 = vmatpush1.msra.mxu0 %v2494
      %2659 = vmatprep.subr.mxu0 %v2499
      %2660 = vmatpush1.msra.mxu0 %v2498
      %2661 = vmatprep.subr.mxu0 %v2503
      %2662 = vmatpush1.msra.mxu0 %v2502
      %2663 = vmatprep.subr.mxu0 %v2507
      %2664 = vmatpush1.msra.mxu0 %v2506
      %2665 = vmatprep.subr.mxu0 %v2511
      %2666 = vmatpush1.msra.mxu0 %v2510
      %2667 = vmatprep.subr.mxu0 %v2515
      %2668 = vmatpush1.msra.mxu0 %v2514
      %2669 = vmatprep.subr.mxu0 %v2519
      %2670 = vmatpush1.msra.mxu0 %v2518
      %2671 = vmatprep.subr.mxu0 %v2523
      %2672 = vmatpush1.msra.mxu0 %v2522
      %2673 = vmatprep.subr.mxu0 %v2527
      %2674 = vmatpush1.msra.mxu0 %v2526
      %2675 = vmatprep.subr.mxu0 %v2531
      %2676 = vmatpush1.msra.mxu0 %v2530
      %2677 = vmatprep.subr.mxu0 %v2535
      %2678 = vmatpush1.msra.mxu0 %v2534
      %2679 = vmatprep.subr.mxu0 %v2539
      %2680 = vmatpush1.msra.mxu0 %v2538
      %2681 = vmatprep.subr.mxu0 %v2543
      %2682 = vmatpush1.msra.mxu0 %v2542
      %2683 = vmatprep.subr.mxu0 %v2547
      %2684 = vmatpush1.msra.mxu0 %v2546
      %2685 = vmatprep.subr.mxu0 %v2551
      %2686 = vmatpush1.msra.mxu0 %v2550
      %2687 = vmatprep.mubr.f32.mxu0 %v2281
      %2688 = vmatmul.mubr.f32.gmra.mrb[0].mxu0 %v2279
      %v2689 = vpop.f32.mrb[0].mxu0
      %v2690 = vadd.f32 0.0, %v2689
      %v2691 = vpop.f32.mrb[0].mxu0
      %v2692 = vadd.f32 0.0, %v2691
      %2693 = vdwg.mxu0
      %2694 = vmatprep.subr.mxu0 %v2296
      %2695 = vmatpush1.msra.mxu0 %v2295
      %2696 = vmatprep.subr.mxu0 %v2300
      %2697 = vmatpush1.msra.mxu0 %v2299
      %2698 = vmatprep.subr.mxu0 %v2304
      %2699 = vmatpush1.msra.mxu0 %v2303
      %2700 = vmatprep.subr.mxu0 %v2308
      %2701 = vmatpush1.msra.mxu0 %v2307
      %2702 = vmatprep.subr.mxu0 %v2312
      %2703 = vmatpush1.msra.mxu0 %v2311
      %2704 = vmatprep.subr.mxu0 %v2316
      %2705 = vmatpush1.msra.mxu0 %v2315
      %2706 = vmatprep.subr.mxu0 %v2320
      %2707 = vmatpush1.msra.mxu0 %v2319
      %2708 = vmatprep.subr.mxu0 %v2324
      %2709 = vmatpush1.msra.mxu0 %v2323
      %2710 = vmatprep.subr.mxu0 %v2328
      %2711 = vmatpush1.msra.mxu0 %v2327
      %2712 = vmatprep.subr.mxu0 %v2332
      %2713 = vmatpush1.msra.mxu0 %v2331
      %2714 = vmatprep.subr.mxu0 %v2336
      %2715 = vmatpush1.msra.mxu0 %v2335
      %2716 = vmatprep.subr.mxu0 %v2340
      %2717 = vmatpush1.msra.mxu0 %v2339
      %2718 = vmatprep.subr.mxu0 %v2344
      %2719 = vmatpush1.msra.mxu0 %v2343
      %2720 = vmatprep.subr.mxu0 %v2348
      %2721 = vmatpush1.msra.mxu0 %v2347
      %2722 = vmatprep.subr.mxu0 %v2352
      %2723 = vmatpush1.msra.mxu0 %v2351
      %2724 = vmatprep.subr.mxu0 %v2356
      %2725 = vmatpush1.msra.mxu0 %v2355
      %2726 = vmatprep.subr.mxu0 %v2360
      %2727 = vmatpush1.msra.mxu0 %v2359
      %2728 = vmatprep.subr.mxu0 %v2364
      %2729 = vmatpush1.msra.mxu0 %v2363
      %2730 = vmatprep.subr.mxu0 %v2368
      %2731 = vmatpush1.msra.mxu0 %v2367
      %2732 = vmatprep.subr.mxu0 %v2372
      %2733 = vmatpush1.msra.mxu0 %v2371
      %2734 = vmatprep.subr.mxu0 %v2376
      %2735 = vmatpush1.msra.mxu0 %v2375
      %2736 = vmatprep.subr.mxu0 %v2380
      %2737 = vmatpush1.msra.mxu0 %v2379
      %2738 = vmatprep.subr.mxu0 %v2384
      %2739 = vmatpush1.msra.mxu0 %v2383
      %2740 = vmatprep.subr.mxu0 %v2388
      %2741 = vmatpush1.msra.mxu0 %v2387
      %2742 = vmatprep.subr.mxu0 %v2392
      %2743 = vmatpush1.msra.mxu0 %v2391
      %2744 = vmatprep.subr.mxu0 %v2396
      %2745 = vmatpush1.msra.mxu0 %v2395
      %2746 = vmatprep.subr.mxu0 %v2400
      %2747 = vmatpush1.msra.mxu0 %v2399
      %2748 = vmatprep.subr.mxu0 %v2404
      %2749 = vmatpush1.msra.mxu0 %v2403
      %2750 = vmatprep.subr.mxu0 %v2408
      %2751 = vmatpush1.msra.mxu0 %v2407
      %2752 = vmatprep.subr.mxu0 %v2412
      %2753 = vmatpush1.msra.mxu0 %v2411
      %2754 = vmatprep.subr.mxu0 %v2416
      %2755 = vmatpush1.msra.mxu0 %v2415
      %2756 = vmatprep.subr.mxu0 %v2420
      %2757 = vmatpush1.msra.mxu0 %v2419
      %2758 = vmatprep.mubr.f32.mxu0 %v2275
      %2759 = vmatmul.mubr.f32.gmra.mrb[0].mxu0 %v2273
      %v2760 = vpop.f32.mrb[0].mxu0
      %v2761 = vadd.f32 %v2619, %v2760
      %v2762 = vpop.f32.mrb[0].mxu0
      %v2763 = vadd.f32 %v2621, %v2762
      %2764 = vdwg.mxu0
      %2765 = vmatprep.subr.mxu0 %v2298
      %2766 = vmatpush1.msra.mxu0 %v2297
      %2767 = vmatprep.subr.mxu0 %v2302
      %2768 = vmatpush1.msra.mxu0 %v2301
      %2769 = vmatprep.subr.mxu0 %v2306
      %2770 = vmatpush1.msra.mxu0 %v2305
      %2771 = vmatprep.subr.mxu0 %v2310
      %2772 = vmatpush1.msra.mxu0 %v2309
      %2773 = vmatprep.subr.mxu0 %v2314
      %2774 = vmatpush1.msra.mxu0 %v2313
      %2775 = vmatprep.subr.mxu0 %v2318
      %2776 = vmatpush1.msra.mxu0 %v2317
      %2777 = vmatprep.subr.mxu0 %v2322
      %2778 = vmatpush1.msra.mxu0 %v2321
      %2779 = vmatprep.subr.mxu0 %v2326
      %2780 = vmatpush1.msra.mxu0 %v2325
      %2781 = vmatprep.subr.mxu0 %v2330
      %2782 = vmatpush1.msra.mxu0 %v2329
      %2783 = vmatprep.subr.mxu0 %v2334
      %2784 = vmatpush1.msra.mxu0 %v2333
      %2785 = vmatprep.subr.mxu0 %v2338
      %2786 = vmatpush1.msra.mxu0 %v2337
      %2787 = vmatprep.subr.mxu0 %v2342
      %2788 = vmatpush1.msra.mxu0 %v2341
      %2789 = vmatprep.subr.mxu0 %v2346
      %2790 = vmatpush1.msra.mxu0 %v2345
      %2791 = vmatprep.subr.mxu0 %v2350
      %2792 = vmatpush1.msra.mxu0 %v2349
      %2793 = vmatprep.subr.mxu0 %v2354
      %2794 = vmatpush1.msra.mxu0 %v2353
      %2795 = vmatprep.subr.mxu0 %v2358
      %2796 = vmatpush1.msra.mxu0 %v2357
      %2797 = vmatprep.subr.mxu0 %v2362
      %2798 = vmatpush1.msra.mxu0 %v2361
      %2799 = vmatprep.subr.mxu0 %v2366
      %2800 = vmatpush1.msra.mxu0 %v2365
      %2801 = vmatprep.subr.mxu0 %v2370
      %2802 = vmatpush1.msra.mxu0 %v2369
      %2803 = vmatprep.subr.mxu0 %v2374
      %2804 = vmatpush1.msra.mxu0 %v2373
      %2805 = vmatprep.subr.mxu0 %v2378
      %2806 = vmatpush1.msra.mxu0 %v2377
      %2807 = vmatprep.subr.mxu0 %v2382
      %2808 = vmatpush1.msra.mxu0 %v2381
      %2809 = vmatprep.subr.mxu0 %v2386
      %2810 = vmatpush1.msra.mxu0 %v2385
      %2811 = vmatprep.subr.mxu0 %v2390
      %2812 = vmatpush1.msra.mxu0 %v2389
      %2813 = vmatprep.subr.mxu0 %v2394
      %2814 = vmatpush1.msra.mxu0 %v2393
      %2815 = vmatprep.subr.mxu0 %v2398
      %2816 = vmatpush1.msra.mxu0 %v2397
      %2817 = vmatprep.subr.mxu0 %v2402
      %2818 = vmatpush1.msra.mxu0 %v2401
      %2819 = vmatprep.subr.mxu0 %v2406
      %2820 = vmatpush1.msra.mxu0 %v2405
      %2821 = vmatprep.subr.mxu0 %v2410
      %2822 = vmatpush1.msra.mxu0 %v2409
      %2823 = vmatprep.subr.mxu0 %v2414
      %2824 = vmatpush1.msra.mxu0 %v2413
      %2825 = vmatprep.subr.mxu0 %v2418
      %2826 = vmatpush1.msra.mxu0 %v2417
      %2827 = vmatprep.subr.mxu0 %v2422
      %2828 = vmatpush1.msra.mxu0 %v2421
      %2829 = vmatprep.mubr.f32.mxu0 %v2275
      %2830 = vmatmul.mubr.f32.gmra.mrb[0].mxu0 %v2273
      %v2831 = vpop.f32.mrb[0].mxu0
      %v2832 = vadd.f32 %v2690, %v2831
      %v2833 = vpop.f32.mrb[0].mxu0
      %v2834 = vadd.f32 %v2692, %v2833
      %2835 = vdwg.mxu0
      %s2836 = scalar_lea.vmem %s9, 2048
      %v2837 = vld [vmem:[%s2836] sm:$0xff]
      %v2838 = vld [vmem:[%s2836 + $0x8] sm:$0xff]
      %v2839 = vld [vmem:[%s2836 + $0x10] sm:$0xff]
      %v2840 = vld [vmem:[%s2836 + $0x18] sm:$0xff]
      %v2841 = vld [vmem:[%s2836 + $0x20] sm:$0xff]
      %v2842 = vld [vmem:[%s2836 + $0x28] sm:$0xff]
      %v2843 = vld [vmem:[%s2836 + $0x30] sm:$0xff]
      %v2844 = vld [vmem:[%s2836 + $0x38] sm:$0xff]
      %v2845 = vld [vmem:[%s2836 + $0x40] sm:$0xff]
      %v2846 = vld [vmem:[%s2836 + $0x48] sm:$0xff]
      %v2847 = vld [vmem:[%s2836 + $0x50] sm:$0xff]
      %v2848 = vld [vmem:[%s2836 + $0x58] sm:$0xff]
      %v2849 = vld [vmem:[%s2836 + $0x60] sm:$0xff]
      %v2850 = vld [vmem:[%s2836 + $0x68] sm:$0xff]
      %v2851 = vld [vmem:[%s2836 + $0x70] sm:$0xff]
      %v2852 = vld [vmem:[%s2836 + $0x78] sm:$0xff]
      %v2853 = vld [vmem:[%s2836 + $0x80] sm:$0xff]
      %v2854 = vld [vmem:[%s2836 + $0x88] sm:$0xff]
      %v2855 = vld [vmem:[%s2836 + $0x90] sm:$0xff]
      %v2856 = vld [vmem:[%s2836 + $0x98] sm:$0xff]
      %v2857 = vld [vmem:[%s2836 + $0xa0] sm:$0xff]
      %v2858 = vld [vmem:[%s2836 + $0xa8] sm:$0xff]
      %v2859 = vld [vmem:[%s2836 + $0xb0] sm:$0xff]
      %v2860 = vld [vmem:[%s2836 + $0xb8] sm:$0xff]
      %v2861 = vld [vmem:[%s2836 + $0xc0] sm:$0xff]
      %v2862 = vld [vmem:[%s2836 + $0xc8] sm:$0xff]
      %v2863 = vld [vmem:[%s2836 + $0xd0] sm:$0xff]
      %v2864 = vld [vmem:[%s2836 + $0xd8] sm:$0xff]
      %v2865 = vld [vmem:[%s2836 + $0xe0] sm:$0xff]
      %v2866 = vld [vmem:[%s2836 + $0xe8] sm:$0xff]
      %v2867 = vld [vmem:[%s2836 + $0xf0] sm:$0xff]
      %v2868 = vld [vmem:[%s2836 + $0xf8] sm:$0xff]
      %v2869 = vld [vmem:[%s2836 + $0x100] sm:$0xff]
      %v2870 = vld [vmem:[%s2836 + $0x108] sm:$0xff]
      %v2871 = vld [vmem:[%s2836 + $0x110] sm:$0xff]
      %v2872 = vld [vmem:[%s2836 + $0x118] sm:$0xff]
      %v2873 = vld [vmem:[%s2836 + $0x120] sm:$0xff]
      %v2874 = vld [vmem:[%s2836 + $0x128] sm:$0xff]
      %v2875 = vld [vmem:[%s2836 + $0x130] sm:$0xff]
      %v2876 = vld [vmem:[%s2836 + $0x138] sm:$0xff]
      %v2877 = vld [vmem:[%s2836 + $0x140] sm:$0xff]
      %v2878 = vld [vmem:[%s2836 + $0x148] sm:$0xff]
      %v2879 = vld [vmem:[%s2836 + $0x150] sm:$0xff]
      %v2880 = vld [vmem:[%s2836 + $0x158] sm:$0xff]
      %v2881 = vld [vmem:[%s2836 + $0x160] sm:$0xff]
      %v2882 = vld [vmem:[%s2836 + $0x168] sm:$0xff]
      %v2883 = vld [vmem:[%s2836 + $0x170] sm:$0xff]
      %v2884 = vld [vmem:[%s2836 + $0x178] sm:$0xff]
      %v2885 = vld [vmem:[%s2836 + $0x180] sm:$0xff]
      %v2886 = vld [vmem:[%s2836 + $0x188] sm:$0xff]
      %v2887 = vld [vmem:[%s2836 + $0x190] sm:$0xff]
      %v2888 = vld [vmem:[%s2836 + $0x198] sm:$0xff]
      %v2889 = vld [vmem:[%s2836 + $0x1a0] sm:$0xff]
      %v2890 = vld [vmem:[%s2836 + $0x1a8] sm:$0xff]
      %v2891 = vld [vmem:[%s2836 + $0x1b0] sm:$0xff]
      %v2892 = vld [vmem:[%s2836 + $0x1b8] sm:$0xff]
      %v2893 = vld [vmem:[%s2836 + $0x1c0] sm:$0xff]
      %v2894 = vld [vmem:[%s2836 + $0x1c8] sm:$0xff]
      %v2895 = vld [vmem:[%s2836 + $0x1d0] sm:$0xff]
      %v2896 = vld [vmem:[%s2836 + $0x1d8] sm:$0xff]
      %v2897 = vld [vmem:[%s2836 + $0x1e0] sm:$0xff]
      %v2898 = vld [vmem:[%s2836 + $0x1e8] sm:$0xff]
      %v2899 = vld [vmem:[%s2836 + $0x1f0] sm:$0xff]
      %v2900 = vld [vmem:[%s2836 + $0x1f8] sm:$0xff]
      %v2901 = vld [vmem:[%s2836 + $0x200] sm:$0xff]
      %v2902 = vld [vmem:[%s2836 + $0x208] sm:$0xff]
      %v2903 = vld [vmem:[%s2836 + $0x210] sm:$0xff]
      %v2904 = vld [vmem:[%s2836 + $0x218] sm:$0xff]
      %v2905 = vld [vmem:[%s2836 + $0x220] sm:$0xff]
      %v2906 = vld [vmem:[%s2836 + $0x228] sm:$0xff]
      %v2907 = vld [vmem:[%s2836 + $0x230] sm:$0xff]
      %v2908 = vld [vmem:[%s2836 + $0x238] sm:$0xff]
      %v2909 = vld [vmem:[%s2836 + $0x240] sm:$0xff]
      %v2910 = vld [vmem:[%s2836 + $0x248] sm:$0xff]
      %v2911 = vld [vmem:[%s2836 + $0x250] sm:$0xff]
      %v2912 = vld [vmem:[%s2836 + $0x258] sm:$0xff]
      %v2913 = vld [vmem:[%s2836 + $0x260] sm:$0xff]
      %v2914 = vld [vmem:[%s2836 + $0x268] sm:$0xff]
      %v2915 = vld [vmem:[%s2836 + $0x270] sm:$0xff]
      %v2916 = vld [vmem:[%s2836 + $0x278] sm:$0xff]
      %v2917 = vld [vmem:[%s2836 + $0x280] sm:$0xff]
      %v2918 = vld [vmem:[%s2836 + $0x288] sm:$0xff]
      %v2919 = vld [vmem:[%s2836 + $0x290] sm:$0xff]
      %v2920 = vld [vmem:[%s2836 + $0x298] sm:$0xff]
      %v2921 = vld [vmem:[%s2836 + $0x2a0] sm:$0xff]
      %v2922 = vld [vmem:[%s2836 + $0x2a8] sm:$0xff]
      %v2923 = vld [vmem:[%s2836 + $0x2b0] sm:$0xff]
      %v2924 = vld [vmem:[%s2836 + $0x2b8] sm:$0xff]
      %v2925 = vld [vmem:[%s2836 + $0x2c0] sm:$0xff]
      %v2926 = vld [vmem:[%s2836 + $0x2c8] sm:$0xff]
      %v2927 = vld [vmem:[%s2836 + $0x2d0] sm:$0xff]
      %v2928 = vld [vmem:[%s2836 + $0x2d8] sm:$0xff]
      %v2929 = vld [vmem:[%s2836 + $0x2e0] sm:$0xff]
      %v2930 = vld [vmem:[%s2836 + $0x2e8] sm:$0xff]
      %v2931 = vld [vmem:[%s2836 + $0x2f0] sm:$0xff]
      %v2932 = vld [vmem:[%s2836 + $0x2f8] sm:$0xff]
      %v2933 = vld [vmem:[%s2836 + $0x300] sm:$0xff]
      %v2934 = vld [vmem:[%s2836 + $0x308] sm:$0xff]
      %v2935 = vld [vmem:[%s2836 + $0x310] sm:$0xff]
      %v2936 = vld [vmem:[%s2836 + $0x318] sm:$0xff]
      %v2937 = vld [vmem:[%s2836 + $0x320] sm:$0xff]
      %v2938 = vld [vmem:[%s2836 + $0x328] sm:$0xff]
      %v2939 = vld [vmem:[%s2836 + $0x330] sm:$0xff]
      %v2940 = vld [vmem:[%s2836 + $0x338] sm:$0xff]
      %v2941 = vld [vmem:[%s2836 + $0x340] sm:$0xff]
      %v2942 = vld [vmem:[%s2836 + $0x348] sm:$0xff]
      %v2943 = vld [vmem:[%s2836 + $0x350] sm:$0xff]
      %v2944 = vld [vmem:[%s2836 + $0x358] sm:$0xff]
      %v2945 = vld [vmem:[%s2836 + $0x360] sm:$0xff]
      %v2946 = vld [vmem:[%s2836 + $0x368] sm:$0xff]
      %v2947 = vld [vmem:[%s2836 + $0x370] sm:$0xff]
      %v2948 = vld [vmem:[%s2836 + $0x378] sm:$0xff]
      %v2949 = vld [vmem:[%s2836 + $0x380] sm:$0xff]
      %v2950 = vld [vmem:[%s2836 + $0x388] sm:$0xff]
      %v2951 = vld [vmem:[%s2836 + $0x390] sm:$0xff]
      %v2952 = vld [vmem:[%s2836 + $0x398] sm:$0xff]
      %v2953 = vld [vmem:[%s2836 + $0x3a0] sm:$0xff]
      %v2954 = vld [vmem:[%s2836 + $0x3a8] sm:$0xff]
      %v2955 = vld [vmem:[%s2836 + $0x3b0] sm:$0xff]
      %v2956 = vld [vmem:[%s2836 + $0x3b8] sm:$0xff]
      %v2957 = vld [vmem:[%s2836 + $0x3c0] sm:$0xff]
      %v2958 = vld [vmem:[%s2836 + $0x3c8] sm:$0xff]
      %v2959 = vld [vmem:[%s2836 + $0x3d0] sm:$0xff]
      %v2960 = vld [vmem:[%s2836 + $0x3d8] sm:$0xff]
      %v2961 = vld [vmem:[%s2836 + $0x3e0] sm:$0xff]
      %v2962 = vld [vmem:[%s2836 + $0x3e8] sm:$0xff]
      %v2963 = vld [vmem:[%s2836 + $0x3f0] sm:$0xff]
      %v2964 = vld [vmem:[%s2836 + $0x3f8] sm:$0xff]
      %2965 = vmatprep.subr.mxu0 %v2838
      %2966 = vmatpush1.msra.mxu0 %v2837
      %2967 = vmatprep.subr.mxu0 %v2842
      %2968 = vmatpush1.msra.mxu0 %v2841
      %2969 = vmatprep.subr.mxu0 %v2846
      %2970 = vmatpush1.msra.mxu0 %v2845
      %2971 = vmatprep.subr.mxu0 %v2850
      %2972 = vmatpush1.msra.mxu0 %v2849
      %2973 = vmatprep.subr.mxu0 %v2854
      %2974 = vmatpush1.msra.mxu0 %v2853
      %2975 = vmatprep.subr.mxu0 %v2858
      %2976 = vmatpush1.msra.mxu0 %v2857
      %2977 = vmatprep.subr.mxu0 %v2862
      %2978 = vmatpush1.msra.mxu0 %v2861
      %2979 = vmatprep.subr.mxu0 %v2866
      %2980 = vmatpush1.msra.mxu0 %v2865
      %2981 = vmatprep.subr.mxu0 %v2870
      %2982 = vmatpush1.msra.mxu0 %v2869
      %2983 = vmatprep.subr.mxu0 %v2874
      %2984 = vmatpush1.msra.mxu0 %v2873
      %2985 = vmatprep.subr.mxu0 %v2878
      %2986 = vmatpush1.msra.mxu0 %v2877
      %2987 = vmatprep.subr.mxu0 %v2882
      %2988 = vmatpush1.msra.mxu0 %v2881
      %2989 = vmatprep.subr.mxu0 %v2886
      %2990 = vmatpush1.msra.mxu0 %v2885
      %2991 = vmatprep.subr.mxu0 %v2890
      %2992 = vmatpush1.msra.mxu0 %v2889
      %2993 = vmatprep.subr.mxu0 %v2894
      %2994 = vmatpush1.msra.mxu0 %v2893
      %2995 = vmatprep.subr.mxu0 %v2898
      %2996 = vmatpush1.msra.mxu0 %v2897
      %2997 = vmatprep.subr.mxu0 %v2902
      %2998 = vmatpush1.msra.mxu0 %v2901
      %2999 = vmatprep.subr.mxu0 %v2906
      %3000 = vmatpush1.msra.mxu0 %v2905
      %3001 = vmatprep.subr.mxu0 %v2910
      %3002 = vmatpush1.msra.mxu0 %v2909
      %3003 = vmatprep.subr.mxu0 %v2914
      %3004 = vmatpush1.msra.mxu0 %v2913
      %3005 = vmatprep.subr.mxu0 %v2918
      %3006 = vmatpush1.msra.mxu0 %v2917
      %3007 = vmatprep.subr.mxu0 %v2922
      %3008 = vmatpush1.msra.mxu0 %v2921
      %3009 = vmatprep.subr.mxu0 %v2926
      %3010 = vmatpush1.msra.mxu0 %v2925
      %3011 = vmatprep.subr.mxu0 %v2930
      %3012 = vmatpush1.msra.mxu0 %v2929
      %3013 = vmatprep.subr.mxu0 %v2934
      %3014 = vmatpush1.msra.mxu0 %v2933
      %3015 = vmatprep.subr.mxu0 %v2938
      %3016 = vmatpush1.msra.mxu0 %v2937
      %3017 = vmatprep.subr.mxu0 %v2942
      %3018 = vmatpush1.msra.mxu0 %v2941
      %3019 = vmatprep.subr.mxu0 %v2946
      %3020 = vmatpush1.msra.mxu0 %v2945
      %3021 = vmatprep.subr.mxu0 %v2950
      %3022 = vmatpush1.msra.mxu0 %v2949
      %3023 = vmatprep.subr.mxu0 %v2954
      %3024 = vmatpush1.msra.mxu0 %v2953
      %3025 = vmatprep.subr.mxu0 %v2958
      %3026 = vmatpush1.msra.mxu0 %v2957
      %3027 = vmatprep.subr.mxu0 %v2962
      %3028 = vmatpush1.msra.mxu0 %v2961
      %3029 = vmatprep.mubr.f32.mxu0 %v2287
      %3030 = vmatmul.mubr.f32.gmra.mrb[0].mxu0 %v2285
      %v3031 = vpop.f32.mrb[0].mxu0
      %v3032 = vadd.f32 0.0, %v3031
      %v3033 = vpop.f32.mrb[0].mxu0
      %v3034 = vadd.f32 0.0, %v3033
      %3035 = vdwg.mxu0
      %3036 = vmatprep.subr.mxu0 %v2840
      %3037 = vmatpush1.msra.mxu0 %v2839
      %3038 = vmatprep.subr.mxu0 %v2844
      %3039 = vmatpush1.msra.mxu0 %v2843
      %3040 = vmatprep.subr.mxu0 %v2848
      %3041 = vmatpush1.msra.mxu0 %v2847
      %3042 = vmatprep.subr.mxu0 %v2852
      %3043 = vmatpush1.msra.mxu0 %v2851
      %3044 = vmatprep.subr.mxu0 %v2856
      %3045 = vmatpush1.msra.mxu0 %v2855
      %3046 = vmatprep.subr.mxu0 %v2860
      %3047 = vmatpush1.msra.mxu0 %v2859
      %3048 = vmatprep.subr.mxu0 %v2864
      %3049 = vmatpush1.msra.mxu0 %v2863
      %3050 = vmatprep.subr.mxu0 %v2868
      %3051 = vmatpush1.msra.mxu0 %v2867
      %3052 = vmatprep.subr.mxu0 %v2872
      %3053 = vmatpush1.msra.mxu0 %v2871
      %3054 = vmatprep.subr.mxu0 %v2876
      %3055 = vmatpush1.msra.mxu0 %v2875
      %3056 = vmatprep.subr.mxu0 %v2880
      %3057 = vmatpush1.msra.mxu0 %v2879
      %3058 = vmatprep.subr.mxu0 %v2884
      %3059 = vmatpush1.msra.mxu0 %v2883
      %3060 = vmatprep.subr.mxu0 %v2888
      %3061 = vmatpush1.msra.mxu0 %v2887
      %3062 = vmatprep.subr.mxu0 %v2892
      %3063 = vmatpush1.msra.mxu0 %v2891
      %3064 = vmatprep.subr.mxu0 %v2896
      %3065 = vmatpush1.msra.mxu0 %v2895
      %3066 = vmatprep.subr.mxu0 %v2900
      %3067 = vmatpush1.msra.mxu0 %v2899
      %3068 = vmatprep.subr.mxu0 %v2904
      %3069 = vmatpush1.msra.mxu0 %v2903
      %3070 = vmatprep.subr.mxu0 %v2908
      %3071 = vmatpush1.msra.mxu0 %v2907
      %3072 = vmatprep.subr.mxu0 %v2912
      %3073 = vmatpush1.msra.mxu0 %v2911
      %3074 = vmatprep.subr.mxu0 %v2916
      %3075 = vmatpush1.msra.mxu0 %v2915
      %3076 = vmatprep.subr.mxu0 %v2920
      %3077 = vmatpush1.msra.mxu0 %v2919
      %3078 = vmatprep.subr.mxu0 %v2924
      %3079 = vmatpush1.msra.mxu0 %v2923
      %3080 = vmatprep.subr.mxu0 %v2928
      %3081 = vmatpush1.msra.mxu0 %v2927
      %3082 = vmatprep.subr.mxu0 %v2932
      %3083 = vmatpush1.msra.mxu0 %v2931
      %3084 = vmatprep.subr.mxu0 %v2936
      %3085 = vmatpush1.msra.mxu0 %v2935
      %3086 = vmatprep.subr.mxu0 %v2940
      %3087 = vmatpush1.msra.mxu0 %v2939
      %3088 = vmatprep.subr.mxu0 %v2944
      %3089 = vmatpush1.msra.mxu0 %v2943
      %3090 = vmatprep.subr.mxu0 %v2948
      %3091 = vmatpush1.msra.mxu0 %v2947
      %3092 = vmatprep.subr.mxu0 %v2952
      %3093 = vmatpush1.msra.mxu0 %v2951
      %3094 = vmatprep.subr.mxu0 %v2956
      %3095 = vmatpush1.msra.mxu0 %v2955
      %3096 = vmatprep.subr.mxu0 %v2960
      %3097 = vmatpush1.msra.mxu0 %v2959
      %3098 = vmatprep.subr.mxu0 %v2964
      %3099 = vmatpush1.msra.mxu0 %v2963
      %3100 = vmatprep.mubr.f32.mxu0 %v2287
      %3101 = vmatmul.mubr.f32.gmra.mrb[0].mxu0 %v2285
      %v3102 = vpop.f32.mrb[0].mxu0
      %v3103 = vadd.f32 0.0, %v3102
      %v3104 = vpop.f32.mrb[0].mxu0
      %v3105 = vadd.f32 0.0, %v3104
      %3106 = vdwg.mxu0
      %v3107 = vadd.f32 %v2761, %v3032
      %v3108 = vadd.f32 %v2763, %v3034
      %v3109 = vadd.f32 %v2832, %v3103
      %v3110 = vadd.f32 %v2834, %v3105
      %s3111 = scalar_lea.vmem %s9, 3072
      %v3112 = vld [vmem:[%s3111] sm:$0xff]
      %v3113 = vld [vmem:[%s3111 + $0x8] sm:$0xff]
      %v3114 = vld [vmem:[%s3111 + $0x10] sm:$0xff]
      %v3115 = vld [vmem:[%s3111 + $0x18] sm:$0xff]
      %v3116 = vld [vmem:[%s3111 + $0x20] sm:$0xff]
      %v3117 = vld [vmem:[%s3111 + $0x28] sm:$0xff]
      %v3118 = vld [vmem:[%s3111 + $0x30] sm:$0xff]
      %v3119 = vld [vmem:[%s3111 + $0x38] sm:$0xff]
      %v3120 = vld [vmem:[%s3111 + $0x40] sm:$0xff]
      %v3121 = vld [vmem:[%s3111 + $0x48] sm:$0xff]
      %v3122 = vld [vmem:[%s3111 + $0x50] sm:$0xff]
      %v3123 = vld [vmem:[%s3111 + $0x58] sm:$0xff]
      %v3124 = vld [vmem:[%s3111 + $0x60] sm:$0xff]
      %v3125 = vld [vmem:[%s3111 + $0x68] sm:$0xff]
      %v3126 = vld [vmem:[%s3111 + $0x70] sm:$0xff]
      %v3127 = vld [vmem:[%s3111 + $0x78] sm:$0xff]
      %v3128 = vld [vmem:[%s3111 + $0x80] sm:$0xff]
      %v3129 = vld [vmem:[%s3111 + $0x88] sm:$0xff]
      %v3130 = vld [vmem:[%s3111 + $0x90] sm:$0xff]
      %v3131 = vld [vmem:[%s3111 + $0x98] sm:$0xff]
      %v3132 = vld [vmem:[%s3111 + $0xa0] sm:$0xff]
      %v3133 = vld [vmem:[%s3111 + $0xa8] sm:$0xff]
      %v3134 = vld [vmem:[%s3111 + $0xb0] sm:$0xff]
      %v3135 = vld [vmem:[%s3111 + $0xb8] sm:$0xff]
      %v3136 = vld [vmem:[%s3111 + $0xc0] sm:$0xff]
      %v3137 = vld [vmem:[%s3111 + $0xc8] sm:$0xff]
      %v3138 = vld [vmem:[%s3111 + $0xd0] sm:$0xff]
      %v3139 = vld [vmem:[%s3111 + $0xd8] sm:$0xff]
      %v3140 = vld [vmem:[%s3111 + $0xe0] sm:$0xff]
      %v3141 = vld [vmem:[%s3111 + $0xe8] sm:$0xff]
      %v3142 = vld [vmem:[%s3111 + $0xf0] sm:$0xff]
      %v3143 = vld [vmem:[%s3111 + $0xf8] sm:$0xff]
      %v3144 = vld [vmem:[%s3111 + $0x100] sm:$0xff]
      %v3145 = vld [vmem:[%s3111 + $0x108] sm:$0xff]
      %v3146 = vld [vmem:[%s3111 + $0x110] sm:$0xff]
      %v3147 = vld [vmem:[%s3111 + $0x118] sm:$0xff]
      %v3148 = vld [vmem:[%s3111 + $0x120] sm:$0xff]
      %v3149 = vld [vmem:[%s3111 + $0x128] sm:$0xff]
      %v3150 = vld [vmem:[%s3111 + $0x130] sm:$0xff]
      %v3151 = vld [vmem:[%s3111 + $0x138] sm:$0xff]
      %v3152 = vld [vmem:[%s3111 + $0x140] sm:$0xff]
      %v3153 = vld [vmem:[%s3111 + $0x148] sm:$0xff]
      %v3154 = vld [vmem:[%s3111 + $0x150] sm:$0xff]
      %v3155 = vld [vmem:[%s3111 + $0x158] sm:$0xff]
      %v3156 = vld [vmem:[%s3111 + $0x160] sm:$0xff]
      %v3157 = vld [vmem:[%s3111 + $0x168] sm:$0xff]
      %v3158 = vld [vmem:[%s3111 + $0x170] sm:$0xff]
      %v3159 = vld [vmem:[%s3111 + $0x178] sm:$0xff]
      %v3160 = vld [vmem:[%s3111 + $0x180] sm:$0xff]
      %v3161 = vld [vmem:[%s3111 + $0x188] sm:$0xff]
      %v3162 = vld [vmem:[%s3111 + $0x190] sm:$0xff]
      %v3163 = vld [vmem:[%s3111 + $0x198] sm:$0xff]
      %v3164 = vld [vmem:[%s3111 + $0x1a0] sm:$0xff]
      %v3165 = vld [vmem:[%s3111 + $0x1a8] sm:$0xff]
      %v3166 = vld [vmem:[%s3111 + $0x1b0] sm:$0xff]
      %v3167 = vld [vmem:[%s3111 + $0x1b8] sm:$0xff]
      %v3168 = vld [vmem:[%s3111 + $0x1c0] sm:$0xff]
      %v3169 = vld [vmem:[%s3111 + $0x1c8] sm:$0xff]
      %v3170 = vld [vmem:[%s3111 + $0x1d0] sm:$0xff]
      %v3171 = vld [vmem:[%s3111 + $0x1d8] sm:$0xff]
      %v3172 = vld [vmem:[%s3111 + $0x1e0] sm:$0xff]
      %v3173 = vld [vmem:[%s3111 + $0x1e8] sm:$0xff]
      %v3174 = vld [vmem:[%s3111 + $0x1f0] sm:$0xff]
      %v3175 = vld [vmem:[%s3111 + $0x1f8] sm:$0xff]
      %v3176 = vld [vmem:[%s3111 + $0x200] sm:$0xff]
      %v3177 = vld [vmem:[%s3111 + $0x208] sm:$0xff]
      %v3178 = vld [vmem:[%s3111 + $0x210] sm:$0xff]
      %v3179 = vld [vmem:[%s3111 + $0x218] sm:$0xff]
      %v3180 = vld [vmem:[%s3111 + $0x220] sm:$0xff]
      %v3181 = vld [vmem:[%s3111 + $0x228] sm:$0xff]
      %v3182 = vld [vmem:[%s3111 + $0x230] sm:$0xff]
      %v3183 = vld [vmem:[%s3111 + $0x238] sm:$0xff]
      %v3184 = vld [vmem:[%s3111 + $0x240] sm:$0xff]
      %v3185 = vld [vmem:[%s3111 + $0x248] sm:$0xff]
      %v3186 = vld [vmem:[%s3111 + $0x250] sm:$0xff]
      %v3187 = vld [vmem:[%s3111 + $0x258] sm:$0xff]
      %v3188 = vld [vmem:[%s3111 + $0x260] sm:$0xff]
      %v3189 = vld [vmem:[%s3111 + $0x268] sm:$0xff]
      %v3190 = vld [vmem:[%s3111 + $0x270] sm:$0xff]
      %v3191 = vld [vmem:[%s3111 + $0x278] sm:$0xff]
      %v3192 = vld [vmem:[%s3111 + $0x280] sm:$0xff]
      %v3193 = vld [vmem:[%s3111 + $0x288] sm:$0xff]
      %v3194 = vld [vmem:[%s3111 + $0x290] sm:$0xff]
      %v3195 = vld [vmem:[%s3111 + $0x298] sm:$0xff]
      %v3196 = vld [vmem:[%s3111 + $0x2a0] sm:$0xff]
      %v3197 = vld [vmem:[%s3111 + $0x2a8] sm:$0xff]
      %v3198 = vld [vmem:[%s3111 + $0x2b0] sm:$0xff]
      %v3199 = vld [vmem:[%s3111 + $0x2b8] sm:$0xff]
      %v3200 = vld [vmem:[%s3111 + $0x2c0] sm:$0xff]
      %v3201 = vld [vmem:[%s3111 + $0x2c8] sm:$0xff]
      %v3202 = vld [vmem:[%s3111 + $0x2d0] sm:$0xff]
      %v3203 = vld [vmem:[%s3111 + $0x2d8] sm:$0xff]
      %v3204 = vld [vmem:[%s3111 + $0x2e0] sm:$0xff]
      %v3205 = vld [vmem:[%s3111 + $0x2e8] sm:$0xff]
      %v3206 = vld [vmem:[%s3111 + $0x2f0] sm:$0xff]
      %v3207 = vld [vmem:[%s3111 + $0x2f8] sm:$0xff]
      %v3208 = vld [vmem:[%s3111 + $0x300] sm:$0xff]
      %v3209 = vld [vmem:[%s3111 + $0x308] sm:$0xff]
      %v3210 = vld [vmem:[%s3111 + $0x310] sm:$0xff]
      %v3211 = vld [vmem:[%s3111 + $0x318] sm:$0xff]
      %v3212 = vld [vmem:[%s3111 + $0x320] sm:$0xff]
      %v3213 = vld [vmem:[%s3111 + $0x328] sm:$0xff]
      %v3214 = vld [vmem:[%s3111 + $0x330] sm:$0xff]
      %v3215 = vld [vmem:[%s3111 + $0x338] sm:$0xff]
      %v3216 = vld [vmem:[%s3111 + $0x340] sm:$0xff]
      %v3217 = vld [vmem:[%s3111 + $0x348] sm:$0xff]
      %v3218 = vld [vmem:[%s3111 + $0x350] sm:$0xff]
      %v3219 = vld [vmem:[%s3111 + $0x358] sm:$0xff]
      %v3220 = vld [vmem:[%s3111 + $0x360] sm:$0xff]
      %v3221 = vld [vmem:[%s3111 + $0x368] sm:$0xff]
      %v3222 = vld [vmem:[%s3111 + $0x370] sm:$0xff]
      %v3223 = vld [vmem:[%s3111 + $0x378] sm:$0xff]
      %v3224 = vld [vmem:[%s3111 + $0x380] sm:$0xff]
      %v3225 = vld [vmem:[%s3111 + $0x388] sm:$0xff]
      %v3226 = vld [vmem:[%s3111 + $0x390] sm:$0xff]
      %v3227 = vld [vmem:[%s3111 + $0x398] sm:$0xff]
      %v3228 = vld [vmem:[%s3111 + $0x3a0] sm:$0xff]
      %v3229 = vld [vmem:[%s3111 + $0x3a8] sm:$0xff]
      %v3230 = vld [vmem:[%s3111 + $0x3b0] sm:$0xff]
      %v3231 = vld [vmem:[%s3111 + $0x3b8] sm:$0xff]
      %v3232 = vld [vmem:[%s3111 + $0x3c0] sm:$0xff]
      %v3233 = vld [vmem:[%s3111 + $0x3c8] sm:$0xff]
      %v3234 = vld [vmem:[%s3111 + $0x3d0] sm:$0xff]
      %v3235 = vld [vmem:[%s3111 + $0x3d8] sm:$0xff]
      %v3236 = vld [vmem:[%s3111 + $0x3e0] sm:$0xff]
      %v3237 = vld [vmem:[%s3111 + $0x3e8] sm:$0xff]
      %v3238 = vld [vmem:[%s3111 + $0x3f0] sm:$0xff]
      %v3239 = vld [vmem:[%s3111 + $0x3f8] sm:$0xff]
      %3240 = vmatprep.subr.mxu0 %v3113
      %3241 = vmatpush1.msra.mxu0 %v3112
      %3242 = vmatprep.subr.mxu0 %v3117
      %3243 = vmatpush1.msra.mxu0 %v3116
      %3244 = vmatprep.subr.mxu0 %v3121
      %3245 = vmatpush1.msra.mxu0 %v3120
      %3246 = vmatprep.subr.mxu0 %v3125
      %3247 = vmatpush1.msra.mxu0 %v3124
      %3248 = vmatprep.subr.mxu0 %v3129
      %3249 = vmatpush1.msra.mxu0 %v3128
      %3250 = vmatprep.subr.mxu0 %v3133
      %3251 = vmatpush1.msra.mxu0 %v3132
      %3252 = vmatprep.subr.mxu0 %v3137
      %3253 = vmatpush1.msra.mxu0 %v3136
      %3254 = vmatprep.subr.mxu0 %v3141
      %3255 = vmatpush1.msra.mxu0 %v3140
      %3256 = vmatprep.subr.mxu0 %v3145
      %3257 = vmatpush1.msra.mxu0 %v3144
      %3258 = vmatprep.subr.mxu0 %v3149
      %3259 = vmatpush1.msra.mxu0 %v3148
      %3260 = vmatprep.subr.mxu0 %v3153
      %3261 = vmatpush1.msra.mxu0 %v3152
      %3262 = vmatprep.subr.mxu0 %v3157
      %3263 = vmatpush1.msra.mxu0 %v3156
      %3264 = vmatprep.subr.mxu0 %v3161
      %3265 = vmatpush1.msra.mxu0 %v3160
      %3266 = vmatprep.subr.mxu0 %v3165
      %3267 = vmatpush1.msra.mxu0 %v3164
      %3268 = vmatprep.subr.mxu0 %v3169
      %3269 = vmatpush1.msra.mxu0 %v3168
      %3270 = vmatprep.subr.mxu0 %v3173
      %3271 = vmatpush1.msra.mxu0 %v3172
      %3272 = vmatprep.subr.mxu0 %v3177
      %3273 = vmatpush1.msra.mxu0 %v3176
      %3274 = vmatprep.subr.mxu0 %v3181
      %3275 = vmatpush1.msra.mxu0 %v3180
      %3276 = vmatprep.subr.mxu0 %v3185
      %3277 = vmatpush1.msra.mxu0 %v3184
      %3278 = vmatprep.subr.mxu0 %v3189
      %3279 = vmatpush1.msra.mxu0 %v3188
      %3280 = vmatprep.subr.mxu0 %v3193
      %3281 = vmatpush1.msra.mxu0 %v3192
      %3282 = vmatprep.subr.mxu0 %v3197
      %3283 = vmatpush1.msra.mxu0 %v3196
      %3284 = vmatprep.subr.mxu0 %v3201
      %3285 = vmatpush1.msra.mxu0 %v3200
      %3286 = vmatprep.subr.mxu0 %v3205
      %3287 = vmatpush1.msra.mxu0 %v3204
      %3288 = vmatprep.subr.mxu0 %v3209
      %3289 = vmatpush1.msra.mxu0 %v3208
      %3290 = vmatprep.subr.mxu0 %v3213
      %3291 = vmatpush1.msra.mxu0 %v3212
      %3292 = vmatprep.subr.mxu0 %v3217
      %3293 = vmatpush1.msra.mxu0 %v3216
      %3294 = vmatprep.subr.mxu0 %v3221
      %3295 = vmatpush1.msra.mxu0 %v3220
      %3296 = vmatprep.subr.mxu0 %v3225
      %3297 = vmatpush1.msra.mxu0 %v3224
      %3298 = vmatprep.subr.mxu0 %v3229
      %3299 = vmatpush1.msra.mxu0 %v3228
      %3300 = vmatprep.subr.mxu0 %v3233
      %3301 = vmatpush1.msra.mxu0 %v3232
      %3302 = vmatprep.subr.mxu0 %v3237
      %3303 = vmatpush1.msra.mxu0 %v3236
      %3304 = vmatprep.mubr.f32.mxu0 %v2293
      %3305 = vmatmul.mubr.f32.gmra.mrb[0].mxu0 %v2291
      %v3306 = vpop.f32.mrb[0].mxu0
      %v3307 = vadd.f32 0.0, %v3306
      %v3308 = vpop.f32.mrb[0].mxu0
      %v3309 = vadd.f32 0.0, %v3308
      %3310 = vdwg.mxu0
      %3311 = vmatprep.subr.mxu0 %v3115
      %3312 = vmatpush1.msra.mxu0 %v3114
      %3313 = vmatprep.subr.mxu0 %v3119
      %3314 = vmatpush1.msra.mxu0 %v3118
      %3315 = vmatprep.subr.mxu0 %v3123
      %3316 = vmatpush1.msra.mxu0 %v3122
      %3317 = vmatprep.subr.mxu0 %v3127
      %3318 = vmatpush1.msra.mxu0 %v3126
      %3319 = vmatprep.subr.mxu0 %v3131
      %3320 = vmatpush1.msra.mxu0 %v3130
      %3321 = vmatprep.subr.mxu0 %v3135
      %3322 = vmatpush1.msra.mxu0 %v3134
      %3323 = vmatprep.subr.mxu0 %v3139
      %3324 = vmatpush1.msra.mxu0 %v3138
      %3325 = vmatprep.subr.mxu0 %v3143
      %3326 = vmatpush1.msra.mxu0 %v3142
      %3327 = vmatprep.subr.mxu0 %v3147
      %3328 = vmatpush1.msra.mxu0 %v3146
      %3329 = vmatprep.subr.mxu0 %v3151
      %3330 = vmatpush1.msra.mxu0 %v3150
      %3331 = vmatprep.subr.mxu0 %v3155
      %3332 = vmatpush1.msra.mxu0 %v3154
      %3333 = vmatprep.subr.mxu0 %v3159
      %3334 = vmatpush1.msra.mxu0 %v3158
      %3335 = vmatprep.subr.mxu0 %v3163
      %3336 = vmatpush1.msra.mxu0 %v3162
      %3337 = vmatprep.subr.mxu0 %v3167
      %3338 = vmatpush1.msra.mxu0 %v3166
      %3339 = vmatprep.subr.mxu0 %v3171
      %3340 = vmatpush1.msra.mxu0 %v3170
      %3341 = vmatprep.subr.mxu0 %v3175
      %3342 = vmatpush1.msra.mxu0 %v3174
      %3343 = vmatprep.subr.mxu0 %v3179
      %3344 = vmatpush1.msra.mxu0 %v3178
      %3345 = vmatprep.subr.mxu0 %v3183
      %3346 = vmatpush1.msra.mxu0 %v3182
      %3347 = vmatprep.subr.mxu0 %v3187
      %3348 = vmatpush1.msra.mxu0 %v3186
      %3349 = vmatprep.subr.mxu0 %v3191
      %3350 = vmatpush1.msra.mxu0 %v3190
      %3351 = vmatprep.subr.mxu0 %v3195
      %3352 = vmatpush1.msra.mxu0 %v3194
      %3353 = vmatprep.subr.mxu0 %v3199
      %3354 = vmatpush1.msra.mxu0 %v3198
      %3355 = vmatprep.subr.mxu0 %v3203
      %3356 = vmatpush1.msra.mxu0 %v3202
      %3357 = vmatprep.subr.mxu0 %v3207
      %3358 = vmatpush1.msra.mxu0 %v3206
      %3359 = vmatprep.subr.mxu0 %v3211
      %3360 = vmatpush1.msra.mxu0 %v3210
      %3361 = vmatprep.subr.mxu0 %v3215
      %3362 = vmatpush1.msra.mxu0 %v3214
      %3363 = vmatprep.subr.mxu0 %v3219
      %3364 = vmatpush1.msra.mxu0 %v3218
      %3365 = vmatprep.subr.mxu0 %v3223
      %3366 = vmatpush1.msra.mxu0 %v3222
      %3367 = vmatprep.subr.mxu0 %v3227
      %3368 = vmatpush1.msra.mxu0 %v3226
      %3369 = vmatprep.subr.mxu0 %v3231
      %3370 = vmatpush1.msra.mxu0 %v3230
      %3371 = vmatprep.subr.mxu0 %v3235
      %3372 = vmatpush1.msra.mxu0 %v3234
      %3373 = vmatprep.subr.mxu0 %v3239
      %3374 = vmatpush1.msra.mxu0 %v3238
      %3375 = vmatprep.mubr.f32.mxu0 %v2293
      %3376 = vmatmul.mubr.f32.gmra.mrb[0].mxu0 %v2291
      %v3377 = vpop.f32.mrb[0].mxu0
      %v3378 = vadd.f32 0.0, %v3377
      %v3379 = vpop.f32.mrb[0].mxu0
      %v3380 = vadd.f32 0.0, %v3379
      %3381 = vdwg.mxu0
      %v3382 = vadd.f32 %v3107, %v3307
      %v3383 = vadd.f32 %v3108, %v3309
      %v3384 = vadd.f32 %v3109, %v3378
      %v3385 = vadd.f32 %v3110, %v3380
      %v3386 = vsel %vm675, %v3382, 0.0
      %v3387 = vrot.slane %v3386, 4
      %v3388 = vadd.f32 %v3386, %v3387
      %v3389 = vrot.slane %v3388, 2
      %v3390 = vadd.f32 %v3388, %v3389
      %v3391 = vrot.slane %v3390, 1
      %v3392 = vadd.f32 %v3390, %v3391
      %v3393 = vsel %vm675, %v3383, 0.0
      %v3394 = vrot.slane %v3393, 4
      %v3395 = vadd.f32 %v3393, %v3394
      %v3396 = vrot.slane %v3395, 2
      %v3397 = vadd.f32 %v3395, %v3396
      %v3398 = vrot.slane %v3397, 1
      %v3399 = vadd.f32 %v3397, %v3398
      %v3400 = vsel %vm675, %v3384, 0.0
      %v3401 = vrot.slane %v3400, 4
      %v3402 = vadd.f32 %v3400, %v3401
      %v3403 = vrot.slane %v3402, 2
      %v3404 = vadd.f32 %v3402, %v3403
      %v3405 = vrot.slane %v3404, 1
      %v3406 = vadd.f32 %v3404, %v3405
      %v3407 = vsel %vm675, %v3385, 0.0
      %v3408 = vrot.slane %v3407, 4
      %v3409 = vadd.f32 %v3407, %v3408
      %v3410 = vrot.slane %v3409, 2
      %v3411 = vadd.f32 %v3409, %v3410
      %v3412 = vrot.slane %v3411, 1
      %v3413 = vadd.f32 %v3411, %v3412
      %v3414 = vrcp.pop 4.0
      %v3415 = vmul.f32 %v3392, %v3414
      %v3416 = vmul.f32 %v3399, %v3414
      %v3417 = vmul.f32 %v3406, %v3414
      %v3418 = vmul.f32 %v3413, %v3414
      %v3419 = vsub.f32 %v3382, %v3415
      %v3420 = vsub.f32 %v3383, %v3416
      %v3421 = vsub.f32 %v3384, %v3417
      %v3422 = vsub.f32 %v3385, %v3418
      %v3423 = vmul.f32 %v3419, %v3419
      %v3424 = vmul.f32 %v3420, %v3420
      %v3425 = vmul.f32 %v3421, %v3421
      %v3426 = vmul.f32 %v3422, %v3422
      %v3427 = vsel %vm675, %v3423, 0.0
      %v3428 = vrot.slane %v3427, 4
      %v3429 = vadd.f32 %v3427, %v3428
      %v3430 = vrot.slane %v3429, 2
      %v3431 = vadd.f32 %v3429, %v3430
      %v3432 = vrot.slane %v3431, 1
      %v3433 = vadd.f32 %v3431, %v3432
      %v3434 = vsel %vm675, %v3424, 0.0
      %v3435 = vrot.slane %v3434, 4
      %v3436 = vadd.f32 %v3434, %v3435
      %v3437 = vrot.slane %v3436, 2
      %v3438 = vadd.f32 %v3436, %v3437
      %v3439 = vrot.slane %v3438, 1
      %v3440 = vadd.f32 %v3438, %v3439
      %v3441 = vsel %vm675, %v3425, 0.0
      %v3442 = vrot.slane %v3441, 4
      %v3443 = vadd.f32 %v3441, %v3442
      %v3444 = vrot.slane %v3443, 2
      %v3445 = vadd.f32 %v3443, %v3444
      %v3446 = vrot.slane %v3445, 1
      %v3447 = vadd.f32 %v3445, %v3446
      %v3448 = vsel %vm675, %v3426, 0.0
      %v3449 = vrot.slane %v3448, 4
      %v3450 = vadd.f32 %v3448, %v3449
      %v3451 = vrot.slane %v3450, 2
      %v3452 = vadd.f32 %v3450, %v3451
      %v3453 = vrot.slane %v3452, 1
      %v3454 = vadd.f32 %v3452, %v3453
      %v3455 = vmul.f32 %v3433, %v3414
      %v3456 = vmul.f32 %v3440, %v3414
      %v3457 = vmul.f32 %v3447, %v3414
      %v3458 = vmul.f32 %v3454, %v3414
      %v3459 = vadd.f32 %v3455, 1e-05
      %v3460 = vadd.f32 %v3456, 1e-05
      %v3461 = vadd.f32 %v3457, 1e-05
      %v3462 = vadd.f32 %v3458, 1e-05
      %v3463 = vrsqrt.pop %v3459
      %v3464 = vrsqrt.pop %v3460
      %v3465 = vrsqrt.pop %v3461
      %v3466 = vrsqrt.pop %v3462
      %v3467 = vmul.f32 %v3419, %v3463
      %v3468 = vmul.f32 %v3420, %v3464
      %v3469 = vmul.f32 %v3421, %v3465
      %v3470 = vmul.f32 %v3422, %v3466
      %v3471 = vmul.f32 %v3467, 0.2
      %v3472 = vmul.f32 %v3468, 0.2
      %v3473 = vmul.f32 %v3469, 0.2
      %v3474 = vmul.f32 %v3470, 0.2
      %v3475 = vmax.f32 %v3467, %v3471
      %v3476 = vmax.f32 %v3468, %v3472
      %v3477 = vmax.f32 %v3469, %v3473
      %v3478 = vmax.f32 %v3470, %v3474
      %v3479 = vld [vmem:[%s10] sm:$0xff]
      %v3480 = vld [vmem:[%s10 + $0x8] sm:$0xff]
      %v3481 = vld [vmem:[%s10 + $0x10] sm:$0xff]
      %v3482 = vld [vmem:[%s10 + $0x18] sm:$0xff]
      %v3484 = vsel %vm662, %v3479, 0
      %v3487 = vsel %vm662, %v3480, 0
      %v3490 = vsel %vm662, %v3481, 0
      %v3493 = vsel %vm662, %v3482, 0
      %v3496 = vsel %vm675, %v3475, 0
      %v3499 = vsel %vm675, %v3476, 0
      %v3502 = vsel %vm675, %v3477, 0
      %v3505 = vsel %vm675, %v3478, 0
      %3507 = vmatprep.subr.mxu0 %v3499
      %3508 = vmatpush1.msra.mxu0 %v3496
      %3509 = vmatprep.subr.mxu0 0.0
      %3510 = vmatpush1.msra.mxu0 0.0
      %3511 = vmatprep.subr.mxu0 0.0
      %3512 = vmatpush1.msra.mxu0 0.0
      %3513 = vmatprep.subr.mxu0 0.0
      %3514 = vmatpush1.msra.mxu0 0.0
      %3515 = vmatprep.subr.mxu0 0.0
      %3516 = vmatpush1.msra.mxu0 0.0
      %3517 = vmatprep.subr.mxu0 0.0
      %3518 = vmatpush1.msra.mxu0 0.0
      %3519 = vmatprep.subr.mxu0 0.0
      %3520 = vmatpush1.msra.mxu0 0.0
      %3521 = vmatprep.subr.mxu0 0.0
      %3522 = vmatpush1.msra.mxu0 0.0
      %3523 = vmatprep.subr.mxu0 0.0
      %3524 = vmatpush1.msra.mxu0 0.0
      %3525 = vmatprep.subr.mxu0 0.0
      %3526 = vmatpush1.msra.mxu0 0.0
      %3527 = vmatprep.subr.mxu0 0.0
      %3528 = vmatpush1.msra.mxu0 0.0
      %3529 = vmatprep.subr.mxu0 0.0
      %3530 = vmatpush1.msra.mxu0 0.0
      %3531 = vmatprep.subr.mxu0 0.0
      %3532 = vmatpush1.msra.mxu0 0.0
      %3533 = vmatprep.subr.mxu0 0.0
      %3534 = vmatpush1.msra.mxu0 0.0
      %3535 = vmatprep.subr.mxu0 0.0
      %3536 = vmatpush1.msra.mxu0 0.0
      %3537 = vmatprep.subr.mxu0 0.0
      %3538 = vmatpush1.msra.mxu0 0.0
      %3539 = vmatprep.subr.mxu0 0.0
      %3540 = vmatpush1.msra.mxu0 0.0
      %3541 = vmatprep.subr.mxu0 0.0
      %3542 = vmatpush1.msra.mxu0 0.0
      %3543 = vmatprep.subr.mxu0 0.0
      %3544 = vmatpush1.msra.mxu0 0.0
      %3545 = vmatprep.subr.mxu0 0.0
      %3546 = vmatpush1.msra.mxu0 0.0
      %3547 = vmatprep.subr.mxu0 0.0
      %3548 = vmatpush1.msra.mxu0 0.0
      %3549 = vmatprep.subr.mxu0 0.0
      %3550 = vmatpush1.msra.mxu0 0.0
      %3551 = vmatprep.subr.mxu0 0.0
      %3552 = vmatpush1.msra.mxu0 0.0
      %3553 = vmatprep.subr.mxu0 0.0
      %3554 = vmatpush1.msra.mxu0 0.0
      %3555 = vmatprep.subr.mxu0 0.0
      %3556 = vmatpush1.msra.mxu0 0.0
      %3557 = vmatprep.subr.mxu0 0.0
      %3558 = vmatpush1.msra.mxu0 0.0
      %3559 = vmatprep.subr.mxu0 0.0
      %3560 = vmatpush1.msra.mxu0 0.0
      %3561 = vmatprep.subr.mxu0 0.0
      %3562 = vmatpush1.msra.mxu0 0.0
      %3563 = vmatprep.subr.mxu0 0.0
      %3564 = vmatpush1.msra.mxu0 0.0
      %3565 = vmatprep.subr.mxu0 0.0
      %3566 = vmatpush1.msra.mxu0 0.0
      %3567 = vmatprep.subr.mxu0 0.0
      %3568 = vmatpush1.msra.mxu0 0.0
      %3569 = vmatprep.subr.mxu0 0.0
      %3570 = vmatpush1.msra.mxu0 0.0
      %3571 = vmatprep.mubr.f32.mxu0 0.0
      %3572 = vmatmul.mubr.f32.gmra.mrb[0].mxu0 %v3484
      %v3573 = vpop.f32.mrb[0].mxu0
      %v3574 = vadd.f32 0.0, %v3573
      %v3575 = vpop.f32.mrb[0].mxu0
      %v3576 = vadd.f32 0.0, %v3575
      %3577 = vmatprep.mubr.f32.mxu0 0.0
      %3578 = vmatmul.mubr.f32.gmra.mrb[0].mxu0 %v3487
      %v3579 = vpop.f32.mrb[0].mxu0
      %v3580 = vadd.f32 0.0, %v3579
      %v3581 = vpop.f32.mrb[0].mxu0
      %v3582 = vadd.f32 0.0, %v3581
      %3583 = vmatprep.mubr.f32.mxu0 0.0
      %3584 = vmatmul.mubr.f32.gmra.mrb[0].mxu0 %v3490
      %v3585 = vpop.f32.mrb[0].mxu0
      %v3586 = vadd.f32 0.0, %v3585
      %v3587 = vpop.f32.mrb[0].mxu0
      %v3588 = vadd.f32 0.0, %v3587
      %3589 = vmatprep.mubr.f32.mxu0 0.0
      %3590 = vmatmul.mubr.f32.gmra.mrb[0].mxu0 %v3493
      %v3591 = vpop.f32.mrb[0].mxu0
      %v3592 = vadd.f32 0.0, %v3591
      %v3593 = vpop.f32.mrb[0].mxu0
      %v3594 = vadd.f32 0.0, %v3593
      %3595 = vdwg.mxu0
      %3596 = vmatprep.subr.mxu0 %v3505
      %3597 = vmatpush1.msra.mxu0 %v3502
      %3598 = vmatprep.subr.mxu0 0.0
      %3599 = vmatpush1.msra.mxu0 0.0
      %3600 = vmatprep.subr.mxu0 0.0
      %3601 = vmatpush1.msra.mxu0 0.0
      %3602 = vmatprep.subr.mxu0 0.0
      %3603 = vmatpush1.msra.mxu0 0.0
      %3604 = vmatprep.subr.mxu0 0.0
      %3605 = vmatpush1.msra.mxu0 0.0
      %3606 = vmatprep.subr.mxu0 0.0
      %3607 = vmatpush1.msra.mxu0 0.0
      %3608 = vmatprep.subr.mxu0 0.0
      %3609 = vmatpush1.msra.mxu0 0.0
      %3610 = vmatprep.subr.mxu0 0.0
      %3611 = vmatpush1.msra.mxu0 0.0
      %3612 = vmatprep.subr.mxu0 0.0
      %3613 = vmatpush1.msra.mxu0 0.0
      %3614 = vmatprep.subr.mxu0 0.0
      %3615 = vmatpush1.msra.mxu0 0.0
      %3616 = vmatprep.subr.mxu0 0.0
      %3617 = vmatpush1.msra.mxu0 0.0
      %3618 = vmatprep.subr.mxu0 0.0
      %3619 = vmatpush1.msra.mxu0 0.0
      %3620 = vmatprep.subr.mxu0 0.0
      %3621 = vmatpush1.msra.mxu0 0.0
      %3622 = vmatprep.subr.mxu0 0.0
      %3623 = vmatpush1.msra.mxu0 0.0
      %3624 = vmatprep.subr.mxu0 0.0
      %3625 = vmatpush1.msra.mxu0 0.0
      %3626 = vmatprep.subr.mxu0 0.0
      %3627 = vmatpush1.msra.mxu0 0.0
      %3628 = vmatprep.subr.mxu0 0.0
      %3629 = vmatpush1.msra.mxu0 0.0
      %3630 = vmatprep.subr.mxu0 0.0
      %3631 = vmatpush1.msra.mxu0 0.0
      %3632 = vmatprep.subr.mxu0 0.0
      %3633 = vmatpush1.msra.mxu0 0.0
      %3634 = vmatprep.subr.mxu0 0.0
      %3635 = vmatpush1.msra.mxu0 0.0
      %3636 = vmatprep.subr.mxu0 0.0
      %3637 = vmatpush1.msra.mxu0 0.0
      %3638 = vmatprep.subr.mxu0 0.0
      %3639 = vmatpush1.msra.mxu0 0.0
      %3640 = vmatprep.subr.mxu0 0.0
      %3641 = vmatpush1.msra.mxu0 0.0
      %3642 = vmatprep.subr.mxu0 0.0
      %3643 = vmatpush1.msra.mxu0 0.0
      %3644 = vmatprep.subr.mxu0 0.0
      %3645 = vmatpush1.msra.mxu0 0.0
      %3646 = vmatprep.subr.mxu0 0.0
      %3647 = vmatpush1.msra.mxu0 0.0
      %3648 = vmatprep.subr.mxu0 0.0
      %3649 = vmatpush1.msra.mxu0 0.0
      %3650 = vmatprep.subr.mxu0 0.0
      %3651 = vmatpush1.msra.mxu0 0.0
      %3652 = vmatprep.subr.mxu0 0.0
      %3653 = vmatpush1.msra.mxu0 0.0
      %3654 = vmatprep.subr.mxu0 0.0
      %3655 = vmatpush1.msra.mxu0 0.0
      %3656 = vmatprep.subr.mxu0 0.0
      %3657 = vmatpush1.msra.mxu0 0.0
      %3658 = vmatprep.subr.mxu0 0.0
      %3659 = vmatpush1.msra.mxu0 0.0
      %3660 = vmatprep.mubr.f32.mxu0 0.0
      %3661 = vmatmul.mubr.f32.gmra.mrb[0].mxu0 %v3484
      %v3662 = vpop.f32.mrb[0].mxu0
      %v3663 = vadd.f32 0.0, %v3662
      %v3664 = vpop.f32.mrb[0].mxu0
      %v3665 = vadd.f32 0.0, %v3664
      %3666 = vmatprep.mubr.f32.mxu0 0.0
      %3667 = vmatmul.mubr.f32.gmra.mrb[0].mxu0 %v3487
      %v3668 = vpop.f32.mrb[0].mxu0
      %v3669 = vadd.f32 0.0, %v3668
      %v3670 = vpop.f32.mrb[0].mxu0
      %v3671 = vadd.f32 0.0, %v3670
      %3672 = vmatprep.mubr.f32.mxu0 0.0
      %3673 = vmatmul.mubr.f32.gmra.mrb[0].mxu0 %v3490
      %v3674 = vpop.f32.mrb[0].mxu0
      %v3675 = vadd.f32 0.0, %v3674
      %v3676 = vpop.f32.mrb[0].mxu0
      %v3677 = vadd.f32 0.0, %v3676
      %3678 = vmatprep.mubr.f32.mxu0 0.0
      %3679 = vmatmul.mubr.f32.gmra.mrb[0].mxu0 %v3493
      %v3680 = vpop.f32.mrb[0].mxu0
      %v3681 = vadd.f32 0.0, %v3680
      %v3682 = vpop.f32.mrb[0].mxu0
      %v3683 = vadd.f32 0.0, %v3682
      %3684 = vdwg.mxu0
      %v3685 = vld [vmem:[%s11] sm:$0xff]
      %v3686 = vld [vmem:[%s11 + $0x8] sm:$0xff]
      %v3687 = vld [vmem:[%s11 + $0x10] sm:$0xff]
      %v3688 = vld [vmem:[%s11 + $0x18] sm:$0xff]
      %v3689 = vld [vmem:[%s11 + $0x20] sm:$0xff]
      %v3690 = vld [vmem:[%s11 + $0x28] sm:$0xff]
      %v3691 = vld [vmem:[%s11 + $0x30] sm:$0xff]
      %v3692 = vld [vmem:[%s11 + $0x38] sm:$0xff]
      %v3693 = vld [vmem:[%s11 + $0x40] sm:$0xff]
      %v3694 = vld [vmem:[%s11 + $0x48] sm:$0xff]
      %v3695 = vld [vmem:[%s11 + $0x50] sm:$0xff]
      %v3696 = vld [vmem:[%s11 + $0x58] sm:$0xff]
      %v3697 = vld [vmem:[%s11 + $0x60] sm:$0xff]
      %v3698 = vld [vmem:[%s11 + $0x68] sm:$0xff]
      %v3699 = vld [vmem:[%s11 + $0x70] sm:$0xff]
      %v3700 = vld [vmem:[%s11 + $0x78] sm:$0xff]
      %v3701 = vld [vmem:[%s11 + $0x80] sm:$0xff]
      %v3702 = vld [vmem:[%s11 + $0x88] sm:$0xff]
      %v3703 = vld [vmem:[%s11 + $0x90] sm:$0xff]
      %v3704 = vld [vmem:[%s11 + $0x98] sm:$0xff]
      %v3705 = vld [vmem:[%s11 + $0xa0] sm:$0xff]
      %v3706 = vld [vmem:[%s11 + $0xa8] sm:$0xff]
      %v3707 = vld [vmem:[%s11 + $0xb0] sm:$0xff]
      %v3708 = vld [vmem:[%s11 + $0xb8] sm:$0xff]
      %v3709 = vld [vmem:[%s11 + $0xc0] sm:$0xff]
      %v3710 = vld [vmem:[%s11 + $0xc8] sm:$0xff]
      %v3711 = vld [vmem:[%s11 + $0xd0] sm:$0xff]
      %v3712 = vld [vmem:[%s11 + $0xd8] sm:$0xff]
      %v3713 = vld [vmem:[%s11 + $0xe0] sm:$0xff]
      %v3714 = vld [vmem:[%s11 + $0xe8] sm:$0xff]
      %v3715 = vld [vmem:[%s11 + $0xf0] sm:$0xff]
      %v3716 = vld [vmem:[%s11 + $0xf8] sm:$0xff]
      %v3717 = vld [vmem:[%s11 + $0x100] sm:$0xff]
      %v3718 = vld [vmem:[%s11 + $0x108] sm:$0xff]
      %v3719 = vld [vmem:[%s11 + $0x110] sm:$0xff]
      %v3720 = vld [vmem:[%s11 + $0x118] sm:$0xff]
      %v3721 = vld [vmem:[%s11 + $0x120] sm:$0xff]
      %v3722 = vld [vmem:[%s11 + $0x128] sm:$0xff]
      %v3723 = vld [vmem:[%s11 + $0x130] sm:$0xff]
      %v3724 = vld [vmem:[%s11 + $0x138] sm:$0xff]
      %v3725 = vld [vmem:[%s11 + $0x140] sm:$0xff]
      %v3726 = vld [vmem:[%s11 + $0x148] sm:$0xff]
      %v3727 = vld [vmem:[%s11 + $0x150] sm:$0xff]
      %v3728 = vld [vmem:[%s11 + $0x158] sm:$0xff]
      %v3729 = vld [vmem:[%s11 + $0x160] sm:$0xff]
      %v3730 = vld [vmem:[%s11 + $0x168] sm:$0xff]
      %v3731 = vld [vmem:[%s11 + $0x170] sm:$0xff]
      %v3732 = vld [vmem:[%s11 + $0x178] sm:$0xff]
      %v3733 = vld [vmem:[%s11 + $0x180] sm:$0xff]
      %v3734 = vld [vmem:[%s11 + $0x188] sm:$0xff]
      %v3735 = vld [vmem:[%s11 + $0x190] sm:$0xff]
      %v3736 = vld [vmem:[%s11 + $0x198] sm:$0xff]
      %v3737 = vld [vmem:[%s11 + $0x1a0] sm:$0xff]
      %v3738 = vld [vmem:[%s11 + $0x1a8] sm:$0xff]
      %v3739 = vld [vmem:[%s11 + $0x1b0] sm:$0xff]
      %v3740 = vld [vmem:[%s11 + $0x1b8] sm:$0xff]
      %v3741 = vld [vmem:[%s11 + $0x1c0] sm:$0xff]
      %v3742 = vld [vmem:[%s11 + $0x1c8] sm:$0xff]
      %v3743 = vld [vmem:[%s11 + $0x1d0] sm:$0xff]
      %v3744 = vld [vmem:[%s11 + $0x1d8] sm:$0xff]
      %v3745 = vld [vmem:[%s11 + $0x1e0] sm:$0xff]
      %v3746 = vld [vmem:[%s11 + $0x1e8] sm:$0xff]
      %v3747 = vld [vmem:[%s11 + $0x1f0] sm:$0xff]
      %v3748 = vld [vmem:[%s11 + $0x1f8] sm:$0xff]
      %s3749 = scalar_lea.vmem %s11, 512
      %v3750 = vld [vmem:[%s3749] sm:$0xff]
      %v3751 = vld [vmem:[%s3749 + $0x8] sm:$0xff]
      %v3752 = vld [vmem:[%s3749 + $0x10] sm:$0xff]
      %v3753 = vld [vmem:[%s3749 + $0x18] sm:$0xff]
      %v3754 = vld [vmem:[%s3749 + $0x20] sm:$0xff]
      %v3755 = vld [vmem:[%s3749 + $0x28] sm:$0xff]
      %v3756 = vld [vmem:[%s3749 + $0x30] sm:$0xff]
      %v3757 = vld [vmem:[%s3749 + $0x38] sm:$0xff]
      %v3758 = vld [vmem:[%s3749 + $0x40] sm:$0xff]
      %v3759 = vld [vmem:[%s3749 + $0x48] sm:$0xff]
      %v3760 = vld [vmem:[%s3749 + $0x50] sm:$0xff]
      %v3761 = vld [vmem:[%s3749 + $0x58] sm:$0xff]
      %v3762 = vld [vmem:[%s3749 + $0x60] sm:$0xff]
      %v3763 = vld [vmem:[%s3749 + $0x68] sm:$0xff]
      %v3764 = vld [vmem:[%s3749 + $0x70] sm:$0xff]
      %v3765 = vld [vmem:[%s3749 + $0x78] sm:$0xff]
      %v3766 = vld [vmem:[%s3749 + $0x80] sm:$0xff]
      %v3767 = vld [vmem:[%s3749 + $0x88] sm:$0xff]
      %v3768 = vld [vmem:[%s3749 + $0x90] sm:$0xff]
      %v3769 = vld [vmem:[%s3749 + $0x98] sm:$0xff]
      %v3770 = vld [vmem:[%s3749 + $0xa0] sm:$0xff]
      %v3771 = vld [vmem:[%s3749 + $0xa8] sm:$0xff]
      %v3772 = vld [vmem:[%s3749 + $0xb0] sm:$0xff]
      %v3773 = vld [vmem:[%s3749 + $0xb8] sm:$0xff]
      %v3774 = vld [vmem:[%s3749 + $0xc0] sm:$0xff]
      %v3775 = vld [vmem:[%s3749 + $0xc8] sm:$0xff]
      %v3776 = vld [vmem:[%s3749 + $0xd0] sm:$0xff]
      %v3777 = vld [vmem:[%s3749 + $0xd8] sm:$0xff]
      %v3778 = vld [vmem:[%s3749 + $0xe0] sm:$0xff]
      %v3779 = vld [vmem:[%s3749 + $0xe8] sm:$0xff]
      %v3780 = vld [vmem:[%s3749 + $0xf0] sm:$0xff]
      %v3781 = vld [vmem:[%s3749 + $0xf8] sm:$0xff]
      %v3782 = vld [vmem:[%s3749 + $0x100] sm:$0xff]
      %v3783 = vld [vmem:[%s3749 + $0x108] sm:$0xff]
      %v3784 = vld [vmem:[%s3749 + $0x110] sm:$0xff]
      %v3785 = vld [vmem:[%s3749 + $0x118] sm:$0xff]
      %v3786 = vld [vmem:[%s3749 + $0x120] sm:$0xff]
      %v3787 = vld [vmem:[%s3749 + $0x128] sm:$0xff]
      %v3788 = vld [vmem:[%s3749 + $0x130] sm:$0xff]
      %v3789 = vld [vmem:[%s3749 + $0x138] sm:$0xff]
      %v3790 = vld [vmem:[%s3749 + $0x140] sm:$0xff]
      %v3791 = vld [vmem:[%s3749 + $0x148] sm:$0xff]
      %v3792 = vld [vmem:[%s3749 + $0x150] sm:$0xff]
      %v3793 = vld [vmem:[%s3749 + $0x158] sm:$0xff]
      %v3794 = vld [vmem:[%s3749 + $0x160] sm:$0xff]
      %v3795 = vld [vmem:[%s3749 + $0x168] sm:$0xff]
      %v3796 = vld [vmem:[%s3749 + $0x170] sm:$0xff]
      %v3797 = vld [vmem:[%s3749 + $0x178] sm:$0xff]
      %v3798 = vld [vmem:[%s3749 + $0x180] sm:$0xff]
      %v3799 = vld [vmem:[%s3749 + $0x188] sm:$0xff]
      %v3800 = vld [vmem:[%s3749 + $0x190] sm:$0xff]
      %v3801 = vld [vmem:[%s3749 + $0x198] sm:$0xff]
      %v3802 = vld [vmem:[%s3749 + $0x1a0] sm:$0xff]
      %v3803 = vld [vmem:[%s3749 + $0x1a8] sm:$0xff]
      %v3804 = vld [vmem:[%s3749 + $0x1b0] sm:$0xff]
      %v3805 = vld [vmem:[%s3749 + $0x1b8] sm:$0xff]
      %v3806 = vld [vmem:[%s3749 + $0x1c0] sm:$0xff]
      %v3807 = vld [vmem:[%s3749 + $0x1c8] sm:$0xff]
      %v3808 = vld [vmem:[%s3749 + $0x1d0] sm:$0xff]
      %v3809 = vld [vmem:[%s3749 + $0x1d8] sm:$0xff]
      %v3810 = vld [vmem:[%s3749 + $0x1e0] sm:$0xff]
      %v3811 = vld [vmem:[%s3749 + $0x1e8] sm:$0xff]
      %v3812 = vld [vmem:[%s3749 + $0x1f0] sm:$0xff]
      %v3813 = vld [vmem:[%s3749 + $0x1f8] sm:$0xff]
      %3814 = vmatprep.subr.mxu0 0.0
      %3815 = vmatpush1.msra.mxu0 %v3750
      %3816 = vmatprep.subr.mxu0 0.0
      %3817 = vmatpush1.msra.mxu0 %v3751
      %3818 = vmatprep.subr.mxu0 0.0
      %3819 = vmatpush1.msra.mxu0 %v3752
      %3820 = vmatprep.subr.mxu0 0.0
      %3821 = vmatpush1.msra.mxu0 %v3753
      %3822 = vmatprep.subr.mxu0 0.0
      %3823 = vmatpush1.msra.mxu0 %v3754
      %3824 = vmatprep.subr.mxu0 0.0
      %3825 = vmatpush1.msra.mxu0 %v3755
      %3826 = vmatprep.subr.mxu0 0.0
      %3827 = vmatpush1.msra.mxu0 %v3756
      %3828 = vmatprep.subr.mxu0 0.0
      %3829 = vmatpush1.msra.mxu0 %v3757
      %3830 = vmatprep.subr.mxu0 0.0
      %3831 = vmatpush1.msra.mxu0 %v3758
      %3832 = vmatprep.subr.mxu0 0.0
      %3833 = vmatpush1.msra.mxu0 %v3759
      %3834 = vmatprep.subr.mxu0 0.0
      %3835 = vmatpush1.msra.mxu0 %v3760
      %3836 = vmatprep.subr.mxu0 0.0
      %3837 = vmatpush1.msra.mxu0 %v3761
      %3838 = vmatprep.subr.mxu0 0.0
      %3839 = vmatpush1.msra.mxu0 %v3762
      %3840 = vmatprep.subr.mxu0 0.0
      %3841 = vmatpush1.msra.mxu0 %v3763
      %3842 = vmatprep.subr.mxu0 0.0
      %3843 = vmatpush1.msra.mxu0 %v3764
      %3844 = vmatprep.subr.mxu0 0.0
      %3845 = vmatpush1.msra.mxu0 %v3765
      %3846 = vmatprep.subr.mxu0 0.0
      %3847 = vmatpush1.msra.mxu0 %v3766
      %3848 = vmatprep.subr.mxu0 0.0
      %3849 = vmatpush1.msra.mxu0 %v3767
      %3850 = vmatprep.subr.mxu0 0.0
      %3851 = vmatpush1.msra.mxu0 %v3768
      %3852 = vmatprep.subr.mxu0 0.0
      %3853 = vmatpush1.msra.mxu0 %v3769
      %3854 = vmatprep.subr.mxu0 0.0
      %3855 = vmatpush1.msra.mxu0 %v3770
      %3856 = vmatprep.subr.mxu0 0.0
      %3857 = vmatpush1.msra.mxu0 %v3771
      %3858 = vmatprep.subr.mxu0 0.0
      %3859 = vmatpush1.msra.mxu0 %v3772
      %3860 = vmatprep.subr.mxu0 0.0
      %3861 = vmatpush1.msra.mxu0 %v3773
      %3862 = vmatprep.subr.mxu0 0.0
      %3863 = vmatpush1.msra.mxu0 %v3774
      %3864 = vmatprep.subr.mxu0 0.0
      %3865 = vmatpush1.msra.mxu0 %v3775
      %3866 = vmatprep.subr.mxu0 0.0
      %3867 = vmatpush1.msra.mxu0 %v3776
      %3868 = vmatprep.subr.mxu0 0.0
      %3869 = vmatpush1.msra.mxu0 %v3777
      %3870 = vmatprep.subr.mxu0 0.0
      %3871 = vmatpush1.msra.mxu0 %v3778
      %3872 = vmatprep.subr.mxu0 0.0
      %3873 = vmatpush1.msra.mxu0 %v3779
      %3874 = vmatprep.subr.mxu0 0.0
      %3875 = vmatpush1.msra.mxu0 %v3780
      %3876 = vmatprep.subr.mxu0 0.0
      %3877 = vmatpush1.msra.mxu0 %v3781
      %3878 = vmatprep.mubr.f32.mxu0 %v3582
      %3879 = vmatmul.mubr.f32.gmra.mrb[0].mxu0 %v3580
      %v3880 = vpop.f32.mrb[0].mxu0
      %v3881 = vadd.f32 0.0, %v3880
      %v3882 = vpop.f32.mrb[0].mxu0
      %3883 = vdwg.mxu0
      %3884 = vmatprep.subr.mxu0 0.0
      %3885 = vmatpush1.msra.mxu0 %v3782
      %3886 = vmatprep.subr.mxu0 0.0
      %3887 = vmatpush1.msra.mxu0 %v3783
      %3888 = vmatprep.subr.mxu0 0.0
      %3889 = vmatpush1.msra.mxu0 %v3784
      %3890 = vmatprep.subr.mxu0 0.0
      %3891 = vmatpush1.msra.mxu0 %v3785
      %3892 = vmatprep.subr.mxu0 0.0
      %3893 = vmatpush1.msra.mxu0 %v3786
      %3894 = vmatprep.subr.mxu0 0.0
      %3895 = vmatpush1.msra.mxu0 %v3787
      %3896 = vmatprep.subr.mxu0 0.0
      %3897 = vmatpush1.msra.mxu0 %v3788
      %3898 = vmatprep.subr.mxu0 0.0
      %3899 = vmatpush1.msra.mxu0 %v3789
      %3900 = vmatprep.subr.mxu0 0.0
      %3901 = vmatpush1.msra.mxu0 %v3790
      %3902 = vmatprep.subr.mxu0 0.0
      %3903 = vmatpush1.msra.mxu0 %v3791
      %3904 = vmatprep.subr.mxu0 0.0
      %3905 = vmatpush1.msra.mxu0 %v3792
      %3906 = vmatprep.subr.mxu0 0.0
      %3907 = vmatpush1.msra.mxu0 %v3793
      %3908 = vmatprep.subr.mxu0 0.0
      %3909 = vmatpush1.msra.mxu0 %v3794
      %3910 = vmatprep.subr.mxu0 0.0
      %3911 = vmatpush1.msra.mxu0 %v3795
      %3912 = vmatprep.subr.mxu0 0.0
      %3913 = vmatpush1.msra.mxu0 %v3796
      %3914 = vmatprep.subr.mxu0 0.0
      %3915 = vmatpush1.msra.mxu0 %v3797
      %3916 = vmatprep.subr.mxu0 0.0
      %3917 = vmatpush1.msra.mxu0 %v3798
      %3918 = vmatprep.subr.mxu0 0.0
      %3919 = vmatpush1.msra.mxu0 %v3799
      %3920 = vmatprep.subr.mxu0 0.0
      %3921 = vmatpush1.msra.mxu0 %v3800
      %3922 = vmatprep.subr.mxu0 0.0
      %3923 = vmatpush1.msra.mxu0 %v3801
      %3924 = vmatprep.subr.mxu0 0.0
      %3925 = vmatpush1.msra.mxu0 %v3802
      %3926 = vmatprep.subr.mxu0 0.0
      %3927 = vmatpush1.msra.mxu0 %v3803
      %3928 = vmatprep.subr.mxu0 0.0
      %3929 = vmatpush1.msra.mxu0 %v3804
      %3930 = vmatprep.subr.mxu0 0.0
      %3931 = vmatpush1.msra.mxu0 %v3805
      %3932 = vmatprep.subr.mxu0 0.0
      %3933 = vmatpush1.msra.mxu0 %v3806
      %3934 = vmatprep.subr.mxu0 0.0
      %3935 = vmatpush1.msra.mxu0 %v3807
      %3936 = vmatprep.subr.mxu0 0.0
      %3937 = vmatpush1.msra.mxu0 %v3808
      %3938 = vmatprep.subr.mxu0 0.0
      %3939 = vmatpush1.msra.mxu0 %v3809
      %3940 = vmatprep.subr.mxu0 0.0
      %3941 = vmatpush1.msra.mxu0 %v3810
      %3942 = vmatprep.subr.mxu0 0.0
      %3943 = vmatpush1.msra.mxu0 %v3811
      %3944 = vmatprep.subr.mxu0 0.0
      %3945 = vmatpush1.msra.mxu0 %v3812
      %3946 = vmatprep.subr.mxu0 0.0
      %3947 = vmatpush1.msra.mxu0 %v3813
      %3948 = vmatprep.mubr.f32.mxu0 %v3671
      %3949 = vmatmul.mubr.f32.gmra.mrb[0].mxu0 %v3669
      %v3950 = vpop.f32.mrb[0].mxu0
      %v3951 = vadd.f32 %v3881, %v3950
      %v3952 = vpop.f32.mrb[0].mxu0
      %3953 = vdwg.mxu0
      %3954 = vmatprep.subr.mxu0 0.0
      %3955 = vmatpush1.msra.mxu0 %v3685
      %3956 = vmatprep.subr.mxu0 0.0
      %3957 = vmatpush1.msra.mxu0 %v3686
      %3958 = vmatprep.subr.mxu0 0.0
      %3959 = vmatpush1.msra.mxu0 %v3687
      %3960 = vmatprep.subr.mxu0 0.0
      %3961 = vmatpush1.msra.mxu0 %v3688
      %3962 = vmatprep.subr.mxu0 0.0
      %3963 = vmatpush1.msra.mxu0 %v3689
      %3964 = vmatprep.subr.mxu0 0.0
      %3965 = vmatpush1.msra.mxu0 %v3690
      %3966 = vmatprep.subr.mxu0 0.0
      %3967 = vmatpush1.msra.mxu0 %v3691
      %3968 = vmatprep.subr.mxu0 0.0
      %3969 = vmatpush1.msra.mxu0 %v3692
      %3970 = vmatprep.subr.mxu0 0.0
      %3971 = vmatpush1.msra.mxu0 %v3693
      %3972 = vmatprep.subr.mxu0 0.0
      %3973 = vmatpush1.msra.mxu0 %v3694
      %3974 = vmatprep.subr.mxu0 0.0
      %3975 = vmatpush1.msra.mxu0 %v3695
      %3976 = vmatprep.subr.mxu0 0.0
      %3977 = vmatpush1.msra.mxu0 %v3696
      %3978 = vmatprep.subr.mxu0 0.0
      %3979 = vmatpush1.msra.mxu0 %v3697
      %3980 = vmatprep.subr.mxu0 0.0
      %3981 = vmatpush1.msra.mxu0 %v3698
      %3982 = vmatprep.subr.mxu0 0.0
      %3983 = vmatpush1.msra.mxu0 %v3699
      %3984 = vmatprep.subr.mxu0 0.0
      %3985 = vmatpush1.msra.mxu0 %v3700
      %3986 = vmatprep.subr.mxu0 0.0
      %3987 = vmatpush1.msra.mxu0 %v3701
      %3988 = vmatprep.subr.mxu0 0.0
      %3989 = vmatpush1.msra.mxu0 %v3702
      %3990 = vmatprep.subr.mxu0 0.0
      %3991 = vmatpush1.msra.mxu0 %v3703
      %3992 = vmatprep.subr.mxu0 0.0
      %3993 = vmatpush1.msra.mxu0 %v3704
      %3994 = vmatprep.subr.mxu0 0.0
      %3995 = vmatpush1.msra.mxu0 %v3705
      %3996 = vmatprep.subr.mxu0 0.0
      %3997 = vmatpush1.msra.mxu0 %v3706
      %3998 = vmatprep.subr.mxu0 0.0
      %3999 = vmatpush1.msra.mxu0 %v3707
      %4000 = vmatprep.subr.mxu0 0.0
      %4001 = vmatpush1.msra.mxu0 %v3708
      %4002 = vmatprep.subr.mxu0 0.0
      %4003 = vmatpush1.msra.mxu0 %v3709
      %4004 = vmatprep.subr.mxu0 0.0
      %4005 = vmatpush1.msra.mxu0 %v3710
      %4006 = vmatprep.subr.mxu0 0.0
      %4007 = vmatpush1.msra.mxu0 %v3711
      %4008 = vmatprep.subr.mxu0 0.0
      %4009 = vmatpush1.msra.mxu0 %v3712
      %4010 = vmatprep.subr.mxu0 0.0
      %4011 = vmatpush1.msra.mxu0 %v3713
      %4012 = vmatprep.subr.mxu0 0.0
      %4013 = vmatpush1.msra.mxu0 %v3714
      %4014 = vmatprep.subr.mxu0 0.0
      %4015 = vmatpush1.msra.mxu0 %v3715
      %4016 = vmatprep.subr.mxu0 0.0
      %4017 = vmatpush1.msra.mxu0 %v3716
      %4018 = vmatprep.mubr.f32.mxu0 %v3576
      %4019 = vmatmul.mubr.f32.gmra.mrb[0].mxu0 %v3574
      %v4020 = vpop.f32.mrb[0].mxu0
      %v4021 = vadd.f32 %v3951, %v4020
      %v4022 = vpop.f32.mrb[0].mxu0
      %4023 = vdwg.mxu0
      %4024 = vmatprep.subr.mxu0 0.0
      %4025 = vmatpush1.msra.mxu0 %v3717
      %4026 = vmatprep.subr.mxu0 0.0
      %4027 = vmatpush1.msra.mxu0 %v3718
      %4028 = vmatprep.subr.mxu0 0.0
      %4029 = vmatpush1.msra.mxu0 %v3719
      %4030 = vmatprep.subr.mxu0 0.0
      %4031 = vmatpush1.msra.mxu0 %v3720
      %4032 = vmatprep.subr.mxu0 0.0
      %4033 = vmatpush1.msra.mxu0 %v3721
      %4034 = vmatprep.subr.mxu0 0.0
      %4035 = vmatpush1.msra.mxu0 %v3722
      %4036 = vmatprep.subr.mxu0 0.0
      %4037 = vmatpush1.msra.mxu0 %v3723
      %4038 = vmatprep.subr.mxu0 0.0
      %4039 = vmatpush1.msra.mxu0 %v3724
      %4040 = vmatprep.subr.mxu0 0.0
      %4041 = vmatpush1.msra.mxu0 %v3725
      %4042 = vmatprep.subr.mxu0 0.0
      %4043 = vmatpush1.msra.mxu0 %v3726
      %4044 = vmatprep.subr.mxu0 0.0
      %4045 = vmatpush1.msra.mxu0 %v3727
      %4046 = vmatprep.subr.mxu0 0.0
      %4047 = vmatpush1.msra.mxu0 %v3728
      %4048 = vmatprep.subr.mxu0 0.0
      %4049 = vmatpush1.msra.mxu0 %v3729
      %4050 = vmatprep.subr.mxu0 0.0
      %4051 = vmatpush1.msra.mxu0 %v3730
      %4052 = vmatprep.subr.mxu0 0.0
      %4053 = vmatpush1.msra.mxu0 %v3731
      %4054 = vmatprep.subr.mxu0 0.0
      %4055 = vmatpush1.msra.mxu0 %v3732
      %4056 = vmatprep.subr.mxu0 0.0
      %4057 = vmatpush1.msra.mxu0 %v3733
      %4058 = vmatprep.subr.mxu0 0.0
      %4059 = vmatpush1.msra.mxu0 %v3734
      %4060 = vmatprep.subr.mxu0 0.0
      %4061 = vmatpush1.msra.mxu0 %v3735
      %4062 = vmatprep.subr.mxu0 0.0
      %4063 = vmatpush1.msra.mxu0 %v3736
      %4064 = vmatprep.subr.mxu0 0.0
      %4065 = vmatpush1.msra.mxu0 %v3737
      %4066 = vmatprep.subr.mxu0 0.0
      %4067 = vmatpush1.msra.mxu0 %v3738
      %4068 = vmatprep.subr.mxu0 0.0
      %4069 = vmatpush1.msra.mxu0 %v3739
      %4070 = vmatprep.subr.mxu0 0.0
      %4071 = vmatpush1.msra.mxu0 %v3740
      %4072 = vmatprep.subr.mxu0 0.0
      %4073 = vmatpush1.msra.mxu0 %v3741
      %4074 = vmatprep.subr.mxu0 0.0
      %4075 = vmatpush1.msra.mxu0 %v3742
      %4076 = vmatprep.subr.mxu0 0.0
      %4077 = vmatpush1.msra.mxu0 %v3743
      %4078 = vmatprep.subr.mxu0 0.0
      %4079 = vmatpush1.msra.mxu0 %v3744
      %4080 = vmatprep.subr.mxu0 0.0
      %4081 = vmatpush1.msra.mxu0 %v3745
      %4082 = vmatprep.subr.mxu0 0.0
      %4083 = vmatpush1.msra.mxu0 %v3746
      %4084 = vmatprep.subr.mxu0 0.0
      %4085 = vmatpush1.msra.mxu0 %v3747
      %4086 = vmatprep.subr.mxu0 0.0
      %4087 = vmatpush1.msra.mxu0 %v3748
      %4088 = vmatprep.mubr.f32.mxu0 %v3665
      %4089 = vmatmul.mubr.f32.gmra.mrb[0].mxu0 %v3663
      %v4090 = vpop.f32.mrb[0].mxu0
      %v4091 = vadd.f32 %v4021, %v4090
      %v4092 = vpop.f32.mrb[0].mxu0
      %4093 = vdwg.mxu0
      %s4094 = scalar_lea.vmem %s11, 1024
      %v4095 = vld [vmem:[%s4094] sm:$0xff]
      %v4096 = vld [vmem:[%s4094 + $0x8] sm:$0xff]
      %v4097 = vld [vmem:[%s4094 + $0x10] sm:$0xff]
      %v4098 = vld [vmem:[%s4094 + $0x18] sm:$0xff]
      %v4099 = vld [vmem:[%s4094 + $0x20] sm:$0xff]
      %v4100 = vld [vmem:[%s4094 + $0x28] sm:$0xff]
      %v4101 = vld [vmem:[%s4094 + $0x30] sm:$0xff]
      %v4102 = vld [vmem:[%s4094 + $0x38] sm:$0xff]
      %v4103 = vld [vmem:[%s4094 + $0x40] sm:$0xff]
      %v4104 = vld [vmem:[%s4094 + $0x48] sm:$0xff]
      %v4105 = vld [vmem:[%s4094 + $0x50] sm:$0xff]
      %v4106 = vld [vmem:[%s4094 + $0x58] sm:$0xff]
      %v4107 = vld [vmem:[%s4094 + $0x60] sm:$0xff]
      %v4108 = vld [vmem:[%s4094 + $0x68] sm:$0xff]
      %v4109 = vld [vmem:[%s4094 + $0x70] sm:$0xff]
      %v4110 = vld [vmem:[%s4094 + $0x78] sm:$0xff]
      %v4111 = vld [vmem:[%s4094 + $0x80] sm:$0xff]
      %v4112 = vld [vmem:[%s4094 + $0x88] sm:$0xff]
      %v4113 = vld [vmem:[%s4094 + $0x90] sm:$0xff]
      %v4114 = vld [vmem:[%s4094 + $0x98] sm:$0xff]
      %v4115 = vld [vmem:[%s4094 + $0xa0] sm:$0xff]
      %v4116 = vld [vmem:[%s4094 + $0xa8] sm:$0xff]
      %v4117 = vld [vmem:[%s4094 + $0xb0] sm:$0xff]
      %v4118 = vld [vmem:[%s4094 + $0xb8] sm:$0xff]
      %v4119 = vld [vmem:[%s4094 + $0xc0] sm:$0xff]
      %v4120 = vld [vmem:[%s4094 + $0xc8] sm:$0xff]
      %v4121 = vld [vmem:[%s4094 + $0xd0] sm:$0xff]
      %v4122 = vld [vmem:[%s4094 + $0xd8] sm:$0xff]
      %v4123 = vld [vmem:[%s4094 + $0xe0] sm:$0xff]
      %v4124 = vld [vmem:[%s4094 + $0xe8] sm:$0xff]
      %v4125 = vld [vmem:[%s4094 + $0xf0] sm:$0xff]
      %v4126 = vld [vmem:[%s4094 + $0xf8] sm:$0xff]
      %v4127 = vld [vmem:[%s4094 + $0x100] sm:$0xff]
      %v4128 = vld [vmem:[%s4094 + $0x108] sm:$0xff]
      %v4129 = vld [vmem:[%s4094 + $0x110] sm:$0xff]
      %v4130 = vld [vmem:[%s4094 + $0x118] sm:$0xff]
      %v4131 = vld [vmem:[%s4094 + $0x120] sm:$0xff]
      %v4132 = vld [vmem:[%s4094 + $0x128] sm:$0xff]
      %v4133 = vld [vmem:[%s4094 + $0x130] sm:$0xff]
      %v4134 = vld [vmem:[%s4094 + $0x138] sm:$0xff]
      %v4135 = vld [vmem:[%s4094 + $0x140] sm:$0xff]
      %v4136 = vld [vmem:[%s4094 + $0x148] sm:$0xff]
      %v4137 = vld [vmem:[%s4094 + $0x150] sm:$0xff]
      %v4138 = vld [vmem:[%s4094 + $0x158] sm:$0xff]
      %v4139 = vld [vmem:[%s4094 + $0x160] sm:$0xff]
      %v4140 = vld [vmem:[%s4094 + $0x168] sm:$0xff]
      %v4141 = vld [vmem:[%s4094 + $0x170] sm:$0xff]
      %v4142 = vld [vmem:[%s4094 + $0x178] sm:$0xff]
      %v4143 = vld [vmem:[%s4094 + $0x180] sm:$0xff]
      %v4144 = vld [vmem:[%s4094 + $0x188] sm:$0xff]
      %v4145 = vld [vmem:[%s4094 + $0x190] sm:$0xff]
      %v4146 = vld [vmem:[%s4094 + $0x198] sm:$0xff]
      %v4147 = vld [vmem:[%s4094 + $0x1a0] sm:$0xff]
      %v4148 = vld [vmem:[%s4094 + $0x1a8] sm:$0xff]
      %v4149 = vld [vmem:[%s4094 + $0x1b0] sm:$0xff]
      %v4150 = vld [vmem:[%s4094 + $0x1b8] sm:$0xff]
      %v4151 = vld [vmem:[%s4094 + $0x1c0] sm:$0xff]
      %v4152 = vld [vmem:[%s4094 + $0x1c8] sm:$0xff]
      %v4153 = vld [vmem:[%s4094 + $0x1d0] sm:$0xff]
      %v4154 = vld [vmem:[%s4094 + $0x1d8] sm:$0xff]
      %v4155 = vld [vmem:[%s4094 + $0x1e0] sm:$0xff]
      %v4156 = vld [vmem:[%s4094 + $0x1e8] sm:$0xff]
      %v4157 = vld [vmem:[%s4094 + $0x1f0] sm:$0xff]
      %v4158 = vld [vmem:[%s4094 + $0x1f8] sm:$0xff]
      %4159 = vmatprep.subr.mxu0 0.0
      %4160 = vmatpush1.msra.mxu0 %v4095
      %4161 = vmatprep.subr.mxu0 0.0
      %4162 = vmatpush1.msra.mxu0 %v4096
      %4163 = vmatprep.subr.mxu0 0.0
      %4164 = vmatpush1.msra.mxu0 %v4097
      %4165 = vmatprep.subr.mxu0 0.0
      %4166 = vmatpush1.msra.mxu0 %v4098
      %4167 = vmatprep.subr.mxu0 0.0
      %4168 = vmatpush1.msra.mxu0 %v4099
      %4169 = vmatprep.subr.mxu0 0.0
      %4170 = vmatpush1.msra.mxu0 %v4100
      %4171 = vmatprep.subr.mxu0 0.0
      %4172 = vmatpush1.msra.mxu0 %v4101
      %4173 = vmatprep.subr.mxu0 0.0
      %4174 = vmatpush1.msra.mxu0 %v4102
      %4175 = vmatprep.subr.mxu0 0.0
      %4176 = vmatpush1.msra.mxu0 %v4103
      %4177 = vmatprep.subr.mxu0 0.0
      %4178 = vmatpush1.msra.mxu0 %v4104
      %4179 = vmatprep.subr.mxu0 0.0
      %4180 = vmatpush1.msra.mxu0 %v4105
      %4181 = vmatprep.subr.mxu0 0.0
      %4182 = vmatpush1.msra.mxu0 %v4106
      %4183 = vmatprep.subr.mxu0 0.0
      %4184 = vmatpush1.msra.mxu0 %v4107
      %4185 = vmatprep.subr.mxu0 0.0
      %4186 = vmatpush1.msra.mxu0 %v4108
      %4187 = vmatprep.subr.mxu0 0.0
      %4188 = vmatpush1.msra.mxu0 %v4109
      %4189 = vmatprep.subr.mxu0 0.0
      %4190 = vmatpush1.msra.mxu0 %v4110
      %4191 = vmatprep.subr.mxu0 0.0
      %4192 = vmatpush1.msra.mxu0 %v4111
      %4193 = vmatprep.subr.mxu0 0.0
      %4194 = vmatpush1.msra.mxu0 %v4112
      %4195 = vmatprep.subr.mxu0 0.0
      %4196 = vmatpush1.msra.mxu0 %v4113
      %4197 = vmatprep.subr.mxu0 0.0
      %4198 = vmatpush1.msra.mxu0 %v4114
      %4199 = vmatprep.subr.mxu0 0.0
      %4200 = vmatpush1.msra.mxu0 %v4115
      %4201 = vmatprep.subr.mxu0 0.0
      %4202 = vmatpush1.msra.mxu0 %v4116
      %4203 = vmatprep.subr.mxu0 0.0
      %4204 = vmatpush1.msra.mxu0 %v4117
      %4205 = vmatprep.subr.mxu0 0.0
      %4206 = vmatpush1.msra.mxu0 %v4118
      %4207 = vmatprep.subr.mxu0 0.0
      %4208 = vmatpush1.msra.mxu0 %v4119
      %4209 = vmatprep.subr.mxu0 0.0
      %4210 = vmatpush1.msra.mxu0 %v4120
      %4211 = vmatprep.subr.mxu0 0.0
      %4212 = vmatpush1.msra.mxu0 %v4121
      %4213 = vmatprep.subr.mxu0 0.0
      %4214 = vmatpush1.msra.mxu0 %v4122
      %4215 = vmatprep.subr.mxu0 0.0
      %4216 = vmatpush1.msra.mxu0 %v4123
      %4217 = vmatprep.subr.mxu0 0.0
      %4218 = vmatpush1.msra.mxu0 %v4124
      %4219 = vmatprep.subr.mxu0 0.0
      %4220 = vmatpush1.msra.mxu0 %v4125
      %4221 = vmatprep.subr.mxu0 0.0
      %4222 = vmatpush1.msra.mxu0 %v4126
      %4223 = vmatprep.mubr.f32.mxu0 %v3588
      %4224 = vmatmul.mubr.f32.gmra.mrb[0].mxu0 %v3586
      %v4225 = vpop.f32.mrb[0].mxu0
      %v4226 = vadd.f32 0.0, %v4225
      %v4227 = vpop.f32.mrb[0].mxu0
      %4228 = vdwg.mxu0
      %4229 = vmatprep.subr.mxu0 0.0
      %4230 = vmatpush1.msra.mxu0 %v4127
      %4231 = vmatprep.subr.mxu0 0.0
      %4232 = vmatpush1.msra.mxu0 %v4128
      %4233 = vmatprep.subr.mxu0 0.0
      %4234 = vmatpush1.msra.mxu0 %v4129
      %4235 = vmatprep.subr.mxu0 0.0
      %4236 = vmatpush1.msra.mxu0 %v4130
      %4237 = vmatprep.subr.mxu0 0.0
      %4238 = vmatpush1.msra.mxu0 %v4131
      %4239 = vmatprep.subr.mxu0 0.0
      %4240 = vmatpush1.msra.mxu0 %v4132
      %4241 = vmatprep.subr.mxu0 0.0
      %4242 = vmatpush1.msra.mxu0 %v4133
      %4243 = vmatprep.subr.mxu0 0.0
      %4244 = vmatpush1.msra.mxu0 %v4134
      %4245 = vmatprep.subr.mxu0 0.0
      %4246 = vmatpush1.msra.mxu0 %v4135
      %4247 = vmatprep.subr.mxu0 0.0
      %4248 = vmatpush1.msra.mxu0 %v4136
      %4249 = vmatprep.subr.mxu0 0.0
      %4250 = vmatpush1.msra.mxu0 %v4137
      %4251 = vmatprep.subr.mxu0 0.0
      %4252 = vmatpush1.msra.mxu0 %v4138
      %4253 = vmatprep.subr.mxu0 0.0
      %4254 = vmatpush1.msra.mxu0 %v4139
      %4255 = vmatprep.subr.mxu0 0.0
      %4256 = vmatpush1.msra.mxu0 %v4140
      %4257 = vmatprep.subr.mxu0 0.0
      %4258 = vmatpush1.msra.mxu0 %v4141
      %4259 = vmatprep.subr.mxu0 0.0
      %4260 = vmatpush1.msra.mxu0 %v4142
      %4261 = vmatprep.subr.mxu0 0.0
      %4262 = vmatpush1.msra.mxu0 %v4143
      %4263 = vmatprep.subr.mxu0 0.0
      %4264 = vmatpush1.msra.mxu0 %v4144
      %4265 = vmatprep.subr.mxu0 0.0
      %4266 = vmatpush1.msra.mxu0 %v4145
      %4267 = vmatprep.subr.mxu0 0.0
      %4268 = vmatpush1.msra.mxu0 %v4146
      %4269 = vmatprep.subr.mxu0 0.0
      %4270 = vmatpush1.msra.mxu0 %v4147
      %4271 = vmatprep.subr.mxu0 0.0
      %4272 = vmatpush1.msra.mxu0 %v4148
      %4273 = vmatprep.subr.mxu0 0.0
      %4274 = vmatpush1.msra.mxu0 %v4149
      %4275 = vmatprep.subr.mxu0 0.0
      %4276 = vmatpush1.msra.mxu0 %v4150
      %4277 = vmatprep.subr.mxu0 0.0
      %4278 = vmatpush1.msra.mxu0 %v4151
      %4279 = vmatprep.subr.mxu0 0.0
      %4280 = vmatpush1.msra.mxu0 %v4152
      %4281 = vmatprep.subr.mxu0 0.0
      %4282 = vmatpush1.msra.mxu0 %v4153
      %4283 = vmatprep.subr.mxu0 0.0
      %4284 = vmatpush1.msra.mxu0 %v4154
      %4285 = vmatprep.subr.mxu0 0.0
      %4286 = vmatpush1.msra.mxu0 %v4155
      %4287 = vmatprep.subr.mxu0 0.0
      %4288 = vmatpush1.msra.mxu0 %v4156
      %4289 = vmatprep.subr.mxu0 0.0
      %4290 = vmatpush1.msra.mxu0 %v4157
      %4291 = vmatprep.subr.mxu0 0.0
      %4292 = vmatpush1.msra.mxu0 %v4158
      %4293 = vmatprep.mubr.f32.mxu0 %v3677
      %4294 = vmatmul.mubr.f32.gmra.mrb[0].mxu0 %v3675
      %v4295 = vpop.f32.mrb[0].mxu0
      %v4296 = vadd.f32 %v4226, %v4295
      %v4297 = vpop.f32.mrb[0].mxu0
      %4298 = vdwg.mxu0
      %v4299 = vadd.f32 %v4091, %v4296
      %s4300 = scalar_lea.vmem %s11, 1536
      %v4301 = vld [vmem:[%s4300] sm:$0xff]
      %v4302 = vld [vmem:[%s4300 + $0x8] sm:$0xff]
      %v4303 = vld [vmem:[%s4300 + $0x10] sm:$0xff]
      %v4304 = vld [vmem:[%s4300 + $0x18] sm:$0xff]
      %v4305 = vld [vmem:[%s4300 + $0x20] sm:$0xff]
      %v4306 = vld [vmem:[%s4300 + $0x28] sm:$0xff]
      %v4307 = vld [vmem:[%s4300 + $0x30] sm:$0xff]
      %v4308 = vld [vmem:[%s4300 + $0x38] sm:$0xff]
      %v4309 = vld [vmem:[%s4300 + $0x40] sm:$0xff]
      %v4310 = vld [vmem:[%s4300 + $0x48] sm:$0xff]
      %v4311 = vld [vmem:[%s4300 + $0x50] sm:$0xff]
      %v4312 = vld [vmem:[%s4300 + $0x58] sm:$0xff]
      %v4313 = vld [vmem:[%s4300 + $0x60] sm:$0xff]
      %v4314 = vld [vmem:[%s4300 + $0x68] sm:$0xff]
      %v4315 = vld [vmem:[%s4300 + $0x70] sm:$0xff]
      %v4316 = vld [vmem:[%s4300 + $0x78] sm:$0xff]
      %v4317 = vld [vmem:[%s4300 + $0x80] sm:$0xff]
      %v4318 = vld [vmem:[%s4300 + $0x88] sm:$0xff]
      %v4319 = vld [vmem:[%s4300 + $0x90] sm:$0xff]
      %v4320 = vld [vmem:[%s4300 + $0x98] sm:$0xff]
      %v4321 = vld [vmem:[%s4300 + $0xa0] sm:$0xff]
      %v4322 = vld [vmem:[%s4300 + $0xa8] sm:$0xff]
      %v4323 = vld [vmem:[%s4300 + $0xb0] sm:$0xff]
      %v4324 = vld [vmem:[%s4300 + $0xb8] sm:$0xff]
      %v4325 = vld [vmem:[%s4300 + $0xc0] sm:$0xff]
      %v4326 = vld [vmem:[%s4300 + $0xc8] sm:$0xff]
      %v4327 = vld [vmem:[%s4300 + $0xd0] sm:$0xff]
      %v4328 = vld [vmem:[%s4300 + $0xd8] sm:$0xff]
      %v4329 = vld [vmem:[%s4300 + $0xe0] sm:$0xff]
      %v4330 = vld [vmem:[%s4300 + $0xe8] sm:$0xff]
      %v4331 = vld [vmem:[%s4300 + $0xf0] sm:$0xff]
      %v4332 = vld [vmem:[%s4300 + $0xf8] sm:$0xff]
      %v4333 = vld [vmem:[%s4300 + $0x100] sm:$0xff]
      %v4334 = vld [vmem:[%s4300 + $0x108] sm:$0xff]
      %v4335 = vld [vmem:[%s4300 + $0x110] sm:$0xff]
      %v4336 = vld [vmem:[%s4300 + $0x118] sm:$0xff]
      %v4337 = vld [vmem:[%s4300 + $0x120] sm:$0xff]
      %v4338 = vld [vmem:[%s4300 + $0x128] sm:$0xff]
      %v4339 = vld [vmem:[%s4300 + $0x130] sm:$0xff]
      %v4340 = vld [vmem:[%s4300 + $0x138] sm:$0xff]
      %v4341 = vld [vmem:[%s4300 + $0x140] sm:$0xff]
      %v4342 = vld [vmem:[%s4300 + $0x148] sm:$0xff]
      %v4343 = vld [vmem:[%s4300 + $0x150] sm:$0xff]
      %v4344 = vld [vmem:[%s4300 + $0x158] sm:$0xff]
      %v4345 = vld [vmem:[%s4300 + $0x160] sm:$0xff]
      %v4346 = vld [vmem:[%s4300 + $0x168] sm:$0xff]
      %v4347 = vld [vmem:[%s4300 + $0x170] sm:$0xff]
      %v4348 = vld [vmem:[%s4300 + $0x178] sm:$0xff]
      %v4349 = vld [vmem:[%s4300 + $0x180] sm:$0xff]
      %v4350 = vld [vmem:[%s4300 + $0x188] sm:$0xff]
      %v4351 = vld [vmem:[%s4300 + $0x190] sm:$0xff]
      %v4352 = vld [vmem:[%s4300 + $0x198] sm:$0xff]
      %v4353 = vld [vmem:[%s4300 + $0x1a0] sm:$0xff]
      %v4354 = vld [vmem:[%s4300 + $0x1a8] sm:$0xff]
      %v4355 = vld [vmem:[%s4300 + $0x1b0] sm:$0xff]
      %v4356 = vld [vmem:[%s4300 + $0x1b8] sm:$0xff]
      %v4357 = vld [vmem:[%s4300 + $0x1c0] sm:$0xff]
      %v4358 = vld [vmem:[%s4300 + $0x1c8] sm:$0xff]
      %v4359 = vld [vmem:[%s4300 + $0x1d0] sm:$0xff]
      %v4360 = vld [vmem:[%s4300 + $0x1d8] sm:$0xff]
      %v4361 = vld [vmem:[%s4300 + $0x1e0] sm:$0xff]
      %v4362 = vld [vmem:[%s4300 + $0x1e8] sm:$0xff]
      %v4363 = vld [vmem:[%s4300 + $0x1f0] sm:$0xff]
      %v4364 = vld [vmem:[%s4300 + $0x1f8] sm:$0xff]
      %4365 = vmatprep.subr.mxu0 0.0
      %4366 = vmatpush1.msra.mxu0 %v4301
      %4367 = vmatprep.subr.mxu0 0.0
      %4368 = vmatpush1.msra.mxu0 %v4302
      %4369 = vmatprep.subr.mxu0 0.0
      %4370 = vmatpush1.msra.mxu0 %v4303
      %4371 = vmatprep.subr.mxu0 0.0
      %4372 = vmatpush1.msra.mxu0 %v4304
      %4373 = vmatprep.subr.mxu0 0.0
      %4374 = vmatpush1.msra.mxu0 %v4305
      %4375 = vmatprep.subr.mxu0 0.0
      %4376 = vmatpush1.msra.mxu0 %v4306
      %4377 = vmatprep.subr.mxu0 0.0
      %4378 = vmatpush1.msra.mxu0 %v4307
      %4379 = vmatprep.subr.mxu0 0.0
      %4380 = vmatpush1.msra.mxu0 %v4308
      %4381 = vmatprep.subr.mxu0 0.0
      %4382 = vmatpush1.msra.mxu0 %v4309
      %4383 = vmatprep.subr.mxu0 0.0
      %4384 = vmatpush1.msra.mxu0 %v4310
      %4385 = vmatprep.subr.mxu0 0.0
      %4386 = vmatpush1.msra.mxu0 %v4311
      %4387 = vmatprep.subr.mxu0 0.0
      %4388 = vmatpush1.msra.mxu0 %v4312
      %4389 = vmatprep.subr.mxu0 0.0
      %4390 = vmatpush1.msra.mxu0 %v4313
      %4391 = vmatprep.subr.mxu0 0.0
      %4392 = vmatpush1.msra.mxu0 %v4314
      %4393 = vmatprep.subr.mxu0 0.0
      %4394 = vmatpush1.msra.mxu0 %v4315
      %4395 = vmatprep.subr.mxu0 0.0
      %4396 = vmatpush1.msra.mxu0 %v4316
      %4397 = vmatprep.subr.mxu0 0.0
      %4398 = vmatpush1.msra.mxu0 %v4317
      %4399 = vmatprep.subr.mxu0 0.0
      %4400 = vmatpush1.msra.mxu0 %v4318
      %4401 = vmatprep.subr.mxu0 0.0
      %4402 = vmatpush1.msra.mxu0 %v4319
      %4403 = vmatprep.subr.mxu0 0.0
      %4404 = vmatpush1.msra.mxu0 %v4320
      %4405 = vmatprep.subr.mxu0 0.0
      %4406 = vmatpush1.msra.mxu0 %v4321
      %4407 = vmatprep.subr.mxu0 0.0
      %4408 = vmatpush1.msra.mxu0 %v4322
      %4409 = vmatprep.subr.mxu0 0.0
      %4410 = vmatpush1.msra.mxu0 %v4323
      %4411 = vmatprep.subr.mxu0 0.0
      %4412 = vmatpush1.msra.mxu0 %v4324
      %4413 = vmatprep.subr.mxu0 0.0
      %4414 = vmatpush1.msra.mxu0 %v4325
      %4415 = vmatprep.subr.mxu0 0.0
      %4416 = vmatpush1.msra.mxu0 %v4326
      %4417 = vmatprep.subr.mxu0 0.0
      %4418 = vmatpush1.msra.mxu0 %v4327
      %4419 = vmatprep.subr.mxu0 0.0
      %4420 = vmatpush1.msra.mxu0 %v4328
      %4421 = vmatprep.subr.mxu0 0.0
      %4422 = vmatpush1.msra.mxu0 %v4329
      %4423 = vmatprep.subr.mxu0 0.0
      %4424 = vmatpush1.msra.mxu0 %v4330
      %4425 = vmatprep.subr.mxu0 0.0
      %4426 = vmatpush1.msra.mxu0 %v4331
      %4427 = vmatprep.subr.mxu0 0.0
      %4428 = vmatpush1.msra.mxu0 %v4332
      %4429 = vmatprep.mubr.f32.mxu0 %v3594
      %4430 = vmatmul.mubr.f32.gmra.mrb[0].mxu0 %v3592
      %v4431 = vpop.f32.mrb[0].mxu0
      %v4432 = vadd.f32 0.0, %v4431
      %v4433 = vpop.f32.mrb[0].mxu0
      %4434 = vdwg.mxu0
      %4435 = vmatprep.subr.mxu0 0.0
      %4436 = vmatpush1.msra.mxu0 %v4333
      %4437 = vmatprep.subr.mxu0 0.0
      %4438 = vmatpush1.msra.mxu0 %v4334
      %4439 = vmatprep.subr.mxu0 0.0
      %4440 = vmatpush1.msra.mxu0 %v4335
      %4441 = vmatprep.subr.mxu0 0.0
      %4442 = vmatpush1.msra.mxu0 %v4336
      %4443 = vmatprep.subr.mxu0 0.0
      %4444 = vmatpush1.msra.mxu0 %v4337
      %4445 = vmatprep.subr.mxu0 0.0
      %4446 = vmatpush1.msra.mxu0 %v4338
      %4447 = vmatprep.subr.mxu0 0.0
      %4448 = vmatpush1.msra.mxu0 %v4339
      %4449 = vmatprep.subr.mxu0 0.0
      %4450 = vmatpush1.msra.mxu0 %v4340
      %4451 = vmatprep.subr.mxu0 0.0
      %4452 = vmatpush1.msra.mxu0 %v4341
      %4453 = vmatprep.subr.mxu0 0.0
      %4454 = vmatpush1.msra.mxu0 %v4342
      %4455 = vmatprep.subr.mxu0 0.0
      %4456 = vmatpush1.msra.mxu0 %v4343
      %4457 = vmatprep.subr.mxu0 0.0
      %4458 = vmatpush1.msra.mxu0 %v4344
      %4459 = vmatprep.subr.mxu0 0.0
      %4460 = vmatpush1.msra.mxu0 %v4345
      %4461 = vmatprep.subr.mxu0 0.0
      %4462 = vmatpush1.msra.mxu0 %v4346
      %4463 = vmatprep.subr.mxu0 0.0
      %4464 = vmatpush1.msra.mxu0 %v4347
      %4465 = vmatprep.subr.mxu0 0.0
      %4466 = vmatpush1.msra.mxu0 %v4348
      %4467 = vmatprep.subr.mxu0 0.0
      %4468 = vmatpush1.msra.mxu0 %v4349
      %4469 = vmatprep.subr.mxu0 0.0
      %4470 = vmatpush1.msra.mxu0 %v4350
      %4471 = vmatprep.subr.mxu0 0.0
      %4472 = vmatpush1.msra.mxu0 %v4351
      %4473 = vmatprep.subr.mxu0 0.0
      %4474 = vmatpush1.msra.mxu0 %v4352
      %4475 = vmatprep.subr.mxu0 0.0
      %4476 = vmatpush1.msra.mxu0 %v4353
      %4477 = vmatprep.subr.mxu0 0.0
      %4478 = vmatpush1.msra.mxu0 %v4354
      %4479 = vmatprep.subr.mxu0 0.0
      %4480 = vmatpush1.msra.mxu0 %v4355
      %4481 = vmatprep.subr.mxu0 0.0
      %4482 = vmatpush1.msra.mxu0 %v4356
      %4483 = vmatprep.subr.mxu0 0.0
      %4484 = vmatpush1.msra.mxu0 %v4357
      %4485 = vmatprep.subr.mxu0 0.0
      %4486 = vmatpush1.msra.mxu0 %v4358
      %4487 = vmatprep.subr.mxu0 0.0
      %4488 = vmatpush1.msra.mxu0 %v4359
      %4489 = vmatprep.subr.mxu0 0.0
      %4490 = vmatpush1.msra.mxu0 %v4360
      %4491 = vmatprep.subr.mxu0 0.0
      %4492 = vmatpush1.msra.mxu0 %v4361
      %4493 = vmatprep.subr.mxu0 0.0
      %4494 = vmatpush1.msra.mxu0 %v4362
      %4495 = vmatprep.subr.mxu0 0.0
      %4496 = vmatpush1.msra.mxu0 %v4363
      %4497 = vmatprep.subr.mxu0 0.0
      %4498 = vmatpush1.msra.mxu0 %v4364
      %4499 = vmatprep.mubr.f32.mxu0 %v3683
      %4500 = vmatmul.mubr.f32.gmra.mrb[0].mxu0 %v3681
      %v4501 = vpop.f32.mrb[0].mxu0
      %v4502 = vadd.f32 %v4432, %v4501
      %v4503 = vpop.f32.mrb[0].mxu0
      %4504 = vdwg.mxu0
      %v4505 = vadd.f32 %v4299, %v4502
      %v4506 = vld [vmem:[#allocation2] sm:$0x1]
      %v4508 = vlaneseq
      %v4509 = vshrl.u32 %v4508, 7
      %v4510 = vsub.s32 0, %v4509
      %v4511 = vrot.slane %v4506, %v4510
      %v4513 = vadd.f32 %v4505, %v4511
      %vm4514 = vcmask 4096
      %4515 = vst.msk [vmem:[%s440] sm:$0x1f] %vm4514, %v4513
      %p4516 = scmp.lt.s32.totalorder %s26, 1
      %s4517 = scalar_select %p4516, %s26, 1
      %s4518 = smul.addr %s4517, 8
      %s4519 = scalar_lea.vmem %s13, %s4518
      // Predicated region
      $region73: #{discriminator_forward.1} parent=71 // pred_check
        %p4520 = pneg %p322
      $region74: #{discriminator_forward.1} parent=71 // pred_check_branch
        %4522 = sbr.rel (%p4520) target = $region76
      $region75: #{discriminator_forward.1} parent=71 // pred_region
        _
      $region76: #{discriminator_forward.1} parent=71 // pred_fallthru
        _
    $region72: #{discriminator_forward.1} parent=5 // pred_fallthru
      _
    %p4523 = scmp.le.s32.totalorder 2, %s21
    // Predicated region
    $region77: #{discriminator_forward.1} parent=5 // pred_check
      %p4524 = pneg %p4523
    $region78: #{discriminator_forward.1} parent=5 // pred_check_branch
      %4526 = sbr.rel (%p4524) target = $region80
    $region79: #{discriminator_forward.1} parent=5 // pred_region
      %s4527 = ssub.s32 %s21, 2
      // Predicated region
      $region81: #{discriminator_forward.1} parent=79 // pred_check
        %p4528 = pneg %p328
      $region82: #{discriminator_forward.1} parent=79 // pred_check_branch
        %4530 = sbr.rel (%p4528) target = $region84
      $region83: #{discriminator_forward.1} parent=79 // pred_region
        %p4531 = scmp.lt.s32.totalorder %s27, 1
        %s4532 = scalar_select %p4531, %s27, 1
        %s4533 = smul.addr %s4532, 8
        %s4534 = scalar_lea.vmem %s13, %s4533
      $region84: #{discriminator_forward.1} parent=79 // pred_fallthru
        _
    $region80: #{discriminator_forward.1} parent=5 // pred_fallthru
      _
  $region6: #{discriminator_forward.1} parent=0 // loop_footer
    %s25 = sadd.s32 1, %s21
  $region7: #{discriminator_forward.1} parent=0 // loop_footer_branch
    %20 = sbr.rel target = $region3
  $region8: #{discriminator_forward.1} parent=0 // loop_exit
    _

</llo_original>
